<compile_context>
chip_gen: v6e
topology: v6e:2x2x1
jax: 0.10.0
libtpu: 0.0.40
codegen_flags: <defaults>
</compile_context>

<pallas_src>
import functools
import numpy as np

import jax
import jax.numpy as jnp
from jax import lax
from jax.experimental import pallas as pl
from jax.experimental.pallas import tpu as pltpu


# ---------------------------------------------------------------------------
# Pallas kernels 1-3: AutoEncoder1d forward, channels-first (C, T) layout.
#   encode:  z[co,t] = tanh(be + We0.xo[t-1] + We1.xe[t] + We2.xo[t])
#            (stride-2 conv written on even/odd input phases)
#   decode:  nearest x2 upsample folded into two output phases of the k=3 conv:
#            y[2t]   = bd + Wd0.z[t-1] + (Wd1+Wd2).z[t]
#            y[2t+1] = bd + (Wd0+Wd1).z[t] + Wd2.z[t+1]
# Time is the lane axis, channels are sublanes; all boundary handling is done
# with pl.ds-shifted windows of zero-padded refs (no HBM im2col / repeat).
# ---------------------------------------------------------------------------
def _encode_body(xe_ref, xop_ref, we_ref, be_ref, th):
    acc = jnp.dot(we_ref[0], xop_ref[:, pl.ds(0, th)],
                  preferred_element_type=jnp.float32)
    acc = acc + jnp.dot(we_ref[1], xe_ref[...],
                        preferred_element_type=jnp.float32)
    acc = acc + jnp.dot(we_ref[2], xop_ref[:, pl.ds(1, th)],
                        preferred_element_type=jnp.float32)
    return jnp.tanh(acc + be_ref[...])          # f32 (C_hid, Th)


def _decode_body(zp_ref, wd_ref, bd_ref, th):
    # zp_ref: (C_hid, Th+2) bf16, zero column on each side.
    # wd_ref: (4, C_in, C_hid) = [Wd0, Wd1+Wd2, Wd0+Wd1, Wd2]
    ye = jnp.dot(wd_ref[0], zp_ref[:, pl.ds(0, th)],
                 preferred_element_type=jnp.float32)
    ye = ye + jnp.dot(wd_ref[1], zp_ref[:, pl.ds(1, th)],
                      preferred_element_type=jnp.float32)
    yo = jnp.dot(wd_ref[2], zp_ref[:, pl.ds(1, th)],
                 preferred_element_type=jnp.float32)
    yo = yo + jnp.dot(wd_ref[3], zp_ref[:, pl.ds(2, th)],
                      preferred_element_type=jnp.float32)
    return ye + bd_ref[...], yo + bd_ref[...]


def _ae_fused_kernel(xe_ref, xop_ref, we_ref, be_ref, wd_ref, bd_ref,
                     z_ref, ye_ref, yo_ref, zp_ref, *, th):
    # Fused encode + decode for one batch element; latent staged in VMEM.
    z = _encode_body(xe_ref, xop_ref, we_ref, be_ref, th)
    z_ref[...] = z
    zp_ref[...] = jnp.zeros_like(zp_ref)
    zp_ref[:, pl.ds(1, th)] = z.astype(jnp.bfloat16)
    ye, yo = _decode_body(zp_ref, wd_ref, bd_ref, th)
    ye_ref[...] = ye
    yo_ref[...] = yo


def _ae_encode_kernel(xe_ref, xop_ref, we_ref, be_ref, z_ref, *, th):
    z_ref[...] = _encode_body(xe_ref, xop_ref, we_ref, be_ref, th)


def _ae_decode_kernel(zp_ref, wd_ref, bd_ref, ye_ref, yo_ref, *, th):
    ye, yo = _decode_body(zp_ref, wd_ref, bd_ref, th)
    ye_ref[...] = ye
    yo_ref[...] = yo


_CONV_CP = pltpu.CompilerParams(dimension_semantics=("parallel",))


def _prep_enc(params):
    we = params["w_enc"].astype(jnp.bfloat16)                   # (3, C_hid, C_in)
    be = params["b_enc"].reshape(-1, 1).astype(jnp.float32)     # (C_hid, 1)
    return we, be


def _prep_dec(params):
    w = params["w_dec"]                                         # (3, C_in, C_hid)
    wd = jnp.stack([w[0], w[1] + w[2], w[0] + w[1], w[2]]).astype(jnp.bfloat16)
    bd = params["b_dec"].reshape(-1, 1).astype(jnp.float32)     # (C_in, 1)
    return wd, bd


def _split_even_odd(x):
    # (B, C, T) f32 -> bf16 even samples (B,C,T/2) and left-zero-padded odd
    # samples (B,C,T/2+1).  Folds the conv zero-pad + stride-2 deinterleave
    # into two tiny XLA slices (bf16 halves their HBM footprint).
    xb = x.astype(jnp.bfloat16)
    xe = xb[:, :, 0::2]
    xop = jnp.pad(xb[:, :, 1::2], ((0, 0), (0, 0), (1, 0)))
    return xe, xop


def _interleave_phases(ye, yo):
    B, C, th = ye.shape
    return jnp.stack([ye, yo], axis=-1).reshape(B, C, 2 * th)


@jax.jit
def _ae_encode_decode_impl(params, x):
    B, c_in, T = x.shape
    assert T % 2 == 0
    th = T // 2
    c_hid = params["w_enc"].shape[1]
    xe, xop = _split_even_odd(x)
    we, be = _prep_enc(params)
    wd, bd = _prep_dec(params)
    z, ye, yo = pl.pallas_call(
        functools.partial(_ae_fused_kernel, th=th),
        out_shape=(jax.ShapeDtypeStruct((B, c_hid, th), jnp.float32),
                   jax.ShapeDtypeStruct((B, c_in, th), jnp.float32),
                   jax.ShapeDtypeStruct((B, c_in, th), jnp.float32)),
        grid_spec=pltpu.PrefetchScalarGridSpec(
            num_scalar_prefetch=0,
            grid=(B,),
            in_specs=[
                pl.BlockSpec((None, c_in, th), lambda b: (b, 0, 0)),
                pl.BlockSpec((None, c_in, th + 1), lambda b: (b, 0, 0)),
                pl.BlockSpec((3, c_hid, c_in), lambda b: (0, 0, 0)),
                pl.BlockSpec((c_hid, 1), lambda b: (0, 0)),
                pl.BlockSpec((4, c_in, c_hid), lambda b: (0, 0, 0)),
                pl.BlockSpec((c_in, 1), lambda b: (0, 0)),
            ],
            out_specs=(
                pl.BlockSpec((None, c_hid, th), lambda b: (b, 0, 0)),
                pl.BlockSpec((None, c_in, th), lambda b: (b, 0, 0)),
                pl.BlockSpec((None, c_in, th), lambda b: (b, 0, 0)),
            ),
            scratch_shapes=[pltpu.VMEM((c_hid, th + 2), jnp.bfloat16)],
        ),
        compiler_params=_CONV_CP,
    )(xe, xop, we, be, wd, bd)
    y = _interleave_phases(ye, yo)
    return z, y


@jax.jit
def _ae_encode_impl(params, x):
    B, c_in, T = x.shape
    assert T % 2 == 0
    th = T // 2
    c_hid = params["w_enc"].shape[1]
    xe, xop = _split_even_odd(x)
    we, be = _prep_enc(params)
    return pl.pallas_call(
        functools.partial(_ae_encode_kernel, th=th),
        out_shape=jax.ShapeDtypeStruct((B, c_hid, th), jnp.float32),
        grid_spec=pltpu.PrefetchScalarGridSpec(
            num_scalar_prefetch=0,
            grid=(B,),
            in_specs=[
                pl.BlockSpec((None, c_in, th), lambda b: (b, 0, 0)),
                pl.BlockSpec((None, c_in, th + 1), lambda b: (b, 0, 0)),
                pl.BlockSpec((3, c_hid, c_in), lambda b: (0, 0, 0)),
                pl.BlockSpec((c_hid, 1), lambda b: (0, 0)),
            ],
            out_specs=pl.BlockSpec((None, c_hid, th), lambda b: (b, 0, 0)),
        ),
        compiler_params=_CONV_CP,
    )(xe, xop, we, be)


@jax.jit
def _ae_decode_impl(params, z):
    B, c_hid, th = z.shape
    c_in = params["w_dec"].shape[1]
    wd, bd = _prep_dec(params)
    zp = jnp.pad(z.astype(jnp.bfloat16), ((0, 0), (0, 0), (1, 1)))
    ye, yo = pl.pallas_call(
        functools.partial(_ae_decode_kernel, th=th),
        out_shape=(jax.ShapeDtypeStruct((B, c_in, th), jnp.float32),
                   jax.ShapeDtypeStruct((B, c_in, th), jnp.float32)),
        grid_spec=pltpu.PrefetchScalarGridSpec(
            num_scalar_prefetch=0,
            grid=(B,),
            in_specs=[
                pl.BlockSpec((None, c_hid, th + 2), lambda b: (b, 0, 0)),
                pl.BlockSpec((4, c_in, c_hid), lambda b: (0, 0, 0)),
                pl.BlockSpec((c_in, 1), lambda b: (0, 0)),
            ],
            out_specs=(
                pl.BlockSpec((None, c_in, th), lambda b: (b, 0, 0)),
                pl.BlockSpec((None, c_in, th), lambda b: (b, 0, 0)),
            ),
        ),
        compiler_params=_CONV_CP,
    )(zp, wd, bd)
    return _interleave_phases(ye, yo)


def ae_encode_decode(params, x):
    z, y = _ae_encode_decode_impl(params, x)
    return z, y, {"xs": [x, z]}, {"xs": [z, y]}


def ae_encode(params, x):
    z = _ae_encode_impl(params, x)
    return z, {"xs": [x, z]}


def ae_decode(params, z):
    y = _ae_decode_impl(params, z)
    return y, {"xs": [z, y]}


# ---------------------------------------------------------------------------
# Pallas kernel 4: STFT magnitude + fused loss partial reductions.
#   For one (pair, bin-tile):  [cos|sin] matmul, magnitude, then masked partial
#   sums of (target-input)^2, target^2, |log(input)-log(target)|.
# Output per grid step is a single (8,128) tile of broadcast scalars; the
# NFxNBP magnitude tensor never touches HBM.
# ---------------------------------------------------------------------------
SCALES = [2048, 1024, 512, 256, 128]
OVERLAP = 0.75
HOPS = [int(s * (1.0 - OVERLAP)) for s in SCALES]
WIN_LENGTHS = list(SCALES)
STFT_EPS = 1e-8
_STFT_VMEM_LIMIT = 32 * 1024 * 1024


def _stft_loss_kernel(f_ref, cs_ref, o_ref, *, tb, n_bins, g_real, eps):
    # f_ref: (2, Gp, n_fft) bf16 (row 0 = input frames, row 1 = target frames)
    # cs_ref: (n_fft, 2*tb) bf16  ([cos | sin] for this bin tile, window baked)
    # o_ref:  (8, 128) f32 partial sums for this (pair, bin-tile)
    j = pl.program_id(0)
    gp = f_ref.shape[1]
    cs = cs_ref[...]
    ri_in = jnp.dot(f_ref[0], cs, preferred_element_type=jnp.float32)
    ri_tg = jnp.dot(f_ref[1], cs, preferred_element_type=jnp.float32)
    mag_in = jnp.sqrt(jnp.maximum(ri_in[:, :tb] ** 2 + ri_in[:, tb:] ** 2, eps))
    mag_tg = jnp.sqrt(jnp.maximum(ri_tg[:, :tb] ** 2 + ri_tg[:, tb:] ** 2, eps))
    # Mask out zero-padded bins and zero-padded frame rows from the reductions.
    col = lax.broadcasted_iota(jnp.int32, (gp, tb), 1) + j * tb
    row = lax.broadcasted_iota(jnp.int32, (gp, tb), 0)
    valid = (col < n_bins) & (row < g_real)
    d2 = jnp.sum(jnp.where(valid, (mag_tg - mag_in) ** 2, 0.0))
    t2 = jnp.sum(jnp.where(valid, mag_tg * mag_tg, 0.0))
    la = jnp.sum(jnp.where(valid, jnp.abs(jnp.log(mag_in) - jnp.log(mag_tg)),
                           0.0))
    o_ref[...] = jnp.concatenate(
        [jnp.broadcast_to(d2, (1, 128)),
         jnp.broadcast_to(t2, (1, 128)),
         jnp.broadcast_to(la, (1, 128)),
         jnp.zeros((5, 128), jnp.float32)], axis=0)


def _plan_bins(n_bins):
    # Pick (padded bin count, tile) so that the tile is >=256 lanes (v6e/v7x
    # MXU width), a multiple of 128, and the grid count is even (v7x megacore),
    # minimizing padded waste.
    best = None
    for tb in (256, 384, 512, 640, 768, 896, 1024):
        for g in (2, 4, 6, 8):
            nbp = tb * g
            if nbp >= n_bins:
                cand = (nbp - n_bins, g, tb)
                if best is None or cand < best:
                    best = cand
                break
    _, g, tb = best
    return g * tb, tb


_DFT_CACHE = {}


def dft_basis(n_fft, win_length):
    """Hann-window-baked one-sided DFT basis, bf16, [cos|sin] per bin tile."""
    # TODO(synk): assumes win_length == n_fft (true for this module's config);
    # the general torch.stft centered zero-padded window case is not implemented.
    assert win_length == n_fft
    key = (n_fft, win_length)
    if key not in _DFT_CACHE:
        n_bins = n_fft // 2 + 1
        nbp, tb = _plan_bins(n_bins)
        nt = nbp // tb
        n = np.arange(n_fft, dtype=np.float64)
        win = 0.5 - 0.5 * np.cos(2.0 * np.pi * n / win_length)  # periodic Hann
        k = np.arange(n_bins, dtype=np.float64)[None, :]
        ang = 2.0 * np.pi * n[:, None] * k / n_fft
        cos = np.zeros((n_fft, nbp), np.float32)
        sin = np.zeros((n_fft, nbp), np.float32)
        cos[:, :n_bins] = win[:, None] * np.cos(ang)
        sin[:, :n_bins] = win[:, None] * np.sin(ang)
        basis = np.zeros((nt, n_fft, 2 * tb), np.float32)
        for j in range(nt):
            basis[j, :, :tb] = cos[:, j * tb:(j + 1) * tb]
            basis[j, :, tb:] = sin[:, j * tb:(j + 1) * tb]
        # TODO(synk): bf16 basis is numerically marginal for the log-magnitude
        # term vs. the f32 PyTorch reference; switch to f32 if tolerance demands.
        _DFT_CACHE[key] = (jnp.asarray(basis, dtype=jnp.bfloat16),
                           nbp, tb, nt, n_bins)
    return _DFT_CACHE[key]


def frame_signal(sig, n_fft, hop):
    """sig: (N, T) -> centered frames (N, n_frames, n_fft), torch.stft semantics."""
    N, T = sig.shape
    pad = n_fft // 2
    xp = jnp.pad(sig, ((0, 0), (pad, pad)), mode="reflect")
    n_frames = 1 + T // hop
    idx = jnp.arange(n_frames)[:, None] * hop + jnp.arange(n_fft)[None, :]
    return xp[:, idx]


def _stft_vmem_need(gp, n_fft, tb):
    frames_blk = 2 * gp * n_fft * 2            # bf16 frames block
    basis_blk = n_fft * (2 * tb) * 2           # bf16 [cos|sin] tile
    out_blk = 8 * 128 * 4
    inter = 12 * gp * tb * 4                   # f32 in-kernel intermediates
    return 2 * (frames_blk + basis_blk + out_blk) + inter


def _scale_pair_losses(sigs4, n_fft, hop, win_len):
    """sigs4: (4B, T) bf16 rows [x_sum | y_sum | x_diff | y_diff] -> (2,) losses."""
    four_b, _ = sigs4.shape
    B = four_b // 4
    basis, _, tb, nt, n_bins = dft_basis(n_fft, win_len)
    fr = frame_signal(sigs4, n_fft, hop)             # (4B, NFr, n_fft) bf16
    n_frames = fr.shape[1]
    g = B * n_frames
    gp = ((g + 15) // 16) * 16                       # bf16 sublane-pack alignment
    fr = fr.reshape(4, g, n_fft)
    fr = jnp.pad(fr, ((0, 0), (0, gp - g), (0, 0)))
    fr = fr.reshape(2, 2, gp, n_fft)                 # (pair, input/target, Gp, n_fft)

    need = _stft_vmem_need(gp, n_fft, tb)
    # TODO(synk): tile the frame axis (extra grid dim) for long audio on v7x.
    assert need <= _STFT_VMEM_LIMIT - (4 << 20), (
        f"STFT frames block too large for resident VMEM ({need} bytes)")

    partials = pl.pallas_call(
        functools.partial(_stft_loss_kernel, tb=tb, n_bins=n_bins, g_real=g,
                          eps=STFT_EPS),
        out_shape=jax.ShapeDtypeStruct((2, nt, 8, 128), jnp.float32),
        grid_spec=pltpu.PrefetchScalarGridSpec(
            num_scalar_prefetch=0,
            grid=(nt, 2),                            # (bin tile, pair): 4 steps
            in_specs=[
                pl.BlockSpec((None, 2, gp, n_fft), lambda j, p: (p, 0, 0, 0)),
                pl.BlockSpec((None, n_fft, 2 * tb), lambda j, p: (j, 0, 0)),
            ],
            out_specs=pl.BlockSpec((None, None, 8, 128),
                                   lambda j, p: (p, j, 0, 0)),
        ),
        compiler_params=pltpu.CompilerParams(
            dimension_semantics=("parallel", "parallel"),
            vmem_limit_bytes=_STFT_VMEM_LIMIT),
    )(fr, basis)

    d2 = jnp.sum(partials[:, :, 0, 0], axis=1)       # (2,) Σ(target-input)^2
    t2 = jnp.sum(partials[:, :, 1, 0], axis=1)       # (2,) Σ target^2
    la = jnp.sum(partials[:, :, 2, 0], axis=1)       # (2,) Σ |log in - log tg|
    sc = jnp.sqrt(d2) / jnp.sqrt(t2)
    log_l1 = la / float(g * n_bins)
    return sc + log_l1                               # (2,): [sum pair, diff pair]


@jax.jit
def sum_and_difference_stft_loss(x, y):
    """auraloss.freq.SumAndDifferenceSTFTLoss(input=x, target=y). x,y: (B,2,T)."""
    B, C, T = x.shape
    assert C == 2, "SumAndDifferenceSTFTLoss requires stereo input"
    x_sum, x_diff = x[:, 0] + x[:, 1], x[:, 0] - x[:, 1]
    y_sum, y_diff = y[:, 0] + y[:, 1], y[:, 0] - y[:, 1]
    # bf16 framing: halves the 4x-overlap frame gather and the STFT LHS DMA.
    sigs4 = jnp.concatenate([x_sum, y_sum, x_diff, y_diff],
                            axis=0).astype(jnp.bfloat16)       # (4B, T)
    sum_loss, diff_loss = 0.0, 0.0
    for n_fft, hop, win_len in zip(SCALES, HOPS, WIN_LENGTHS):
        pair = _scale_pair_losses(sigs4, n_fft, hop, win_len)
        sum_loss = sum_loss + pair[0]
        diff_loss = diff_loss + pair[1]
    sum_loss = sum_loss / len(SCALES)
    diff_loss = diff_loss / len(SCALES)
    return (sum_loss + diff_loss) / 2.0


# ---------------------------------------------------------------------------
# Simple AutoEncoder1d stand-in (the PyTorch module takes these as arguments)
#   encode: Conv1d(c_in -> c_hidden, k=3, stride=2, pad=1) + tanh bottleneck
#   decode: nearest-upsample x2 + Conv1d(c_hidden -> c_in, k=3, stride=1, pad=1)
# ---------------------------------------------------------------------------
def make_autoencoder_params(key, c_in, c_hidden):
    k1, k2, k3, k4 = jax.random.split(key, 4)
    se = 1.0 / np.sqrt(c_in * 3)
    sd = 1.0 / np.sqrt(c_hidden * 3)
    return dict(
        w_enc=jax.random.normal(k1, (3, c_hidden, c_in), jnp.float32) * se,
        b_enc=jax.random.normal(k2, (c_hidden,), jnp.float32) * 0.01,
        w_dec=jax.random.normal(k3, (3, c_in, c_hidden), jnp.float32) * sd,
        b_dec=jax.random.normal(k4, (c_in,), jnp.float32) * 0.01,
    )


# ---------------------------------------------------------------------------
# StackedPipeline (JAX/Pallas version)
# ---------------------------------------------------------------------------
class StackedPipelinePallas:
    def __init__(self, autoencoders, num_stage_steps, use_inner_loss=False):
        assert len(autoencoders) == len(num_stage_steps) + 1, \
            "len(num_stage_steps)+1 must equal len(autoencoders)"
        self.autoencoders = autoencoders
        self.num_stage_steps = num_stage_steps
        self.use_inner_loss = use_inner_loss
        self.step_id = 0
        self.stage_id = 0
        self.training = True   # nn.Module default

    def step(self):
        for i, step in enumerate(self.num_stage_steps):
            if self.step_id == step:
                self.stage_id += 1
                self.stage_changed()
                print(f"Stage {self.stage_id - 1} completed.")
        self.step_id += 1

    def stage_changed(self):
        # TODO(synk): requires_grad_()/train()/eval() toggling is training-infra
        # state with no Pallas equivalent; it does not affect the forward math.
        pass

    def encode(self, x, with_info=False):
        info = dict(encoders=[])
        for i in range(self.stage_id + 1):
            x, info_encoder = ae_encode(self.autoencoders[i], x)
            info["encoders"] += [info_encoder]
        return (x, info) if with_info else x

    def decode(self, x, with_info=False):
        info = dict(decoders=[])
        for i in reversed(range(self.stage_id + 1)):
            x, info_decoder = ae_decode(self.autoencoders[i], x)
            info["decoders"] += [info_decoder]
        return (x, info) if with_info else x

    def forward(self, x, with_info=False):
        if self.training:
            self.step()
        n = self.stage_id + 1
        enc_infos, dec_infos = [], []
        h = x
        for i in range(n - 1):                       # outer encoders (stage > 0)
            h, ie = ae_encode(self.autoencoders[i], h)
            enc_infos.append(ie)
        # innermost autoencoder: encode + decode fused in one pallas_call
        z, h, ie, idd = ae_encode_decode(self.autoencoders[n - 1], h)
        enc_infos.append(ie)
        dec_infos.append(idd)
        for i in reversed(range(n - 1)):             # outer decoders (stage > 0)
            h, idd = ae_decode(self.autoencoders[i], h)
            dec_infos.append(idd)
        y = h
        info = dict(encoders=enc_infos, decoders=dec_infos, latent=z)
        if self.use_inner_loss and self.stage_id > 0:
            inner_input = info["encoders"][-1]["xs"][0]
            inner_output = info["decoders"][0]["xs"][-1]
            loss = jnp.mean((inner_input - inner_output) ** 2)
        else:
            loss = sum_and_difference_stft_loss(x, y)
        return (loss, info) if with_info else loss


# ---------------------------------------------------------------------------
if __name__ == "__main__":
    key = jax.random.PRNGKey(0)
    k_x, k_ae0, k_ae1, k_ae2 = jax.random.split(key, 4)

    # Stereo audio, small length (must exceed the largest STFT pad of 1024).
    B, C, T = 2, 2, 4096
    x = jax.random.normal(k_x, (B, C, T), dtype=jnp.float32)

    autoencoders = [
        make_autoencoder_params(k_ae0, 2, 8),
        make_autoencoder_params(k_ae1, 8, 16),
        make_autoencoder_params(k_ae2, 16, 32),
    ]
    pipeline = StackedPipelinePallas(autoencoders, num_stage_steps=[3, 6],
                                     use_inner_loss=False)

    loss = pipeline.forward(x)
    loss = jax.block_until_ready(loss)
    assert jnp.isfinite(loss), f"non-finite loss: {loss}"
    print("KERNEL_OK")
</pallas_src>

<mosaic_0001>
module attributes {stable_mosaic.version = 11 : i64} {
  func.func @_ae_fused_kernel(%arg0: i32, %arg1: memref<1x2x2048xbf16, #tpu.memory_space<vmem>>, %arg2: memref<1x2x2049xbf16, #tpu.memory_space<vmem>>, %arg3: memref<3x8x2xbf16, #tpu.memory_space<vmem>>, %arg4: memref<8x1xf32, #tpu.memory_space<vmem>>, %arg5: memref<4x2x8xbf16, #tpu.memory_space<vmem>>, %arg6: memref<2x1xf32, #tpu.memory_space<vmem>>, %arg7: memref<1x8x2048xf32, #tpu.memory_space<vmem>>, %arg8: memref<1x2x2048xf32, #tpu.memory_space<vmem>>, %arg9: memref<1x2x2048xf32, #tpu.memory_space<vmem>>, %arg10: memref<8x2050xbf16, #tpu.memory_space<vmem>>) attributes {dimension_semantics = [#tpu.dimension_semantics<parallel>], iteration_bounds = array<i64: 2>, scalar_prefetch = 0 : i64, scratch_operands = 1 : i64, tpu.core_type = #tpu.core_type<tc>, window_params = [{transform_indices = @transform_0, window_bounds = array<i64: 1, 2, 2048>}, {transform_indices = @transform_1, window_bounds = array<i64: 1, 2, 2049>}, {pipeline_mode = #tpu.pipeline_mode<synchronous>, transform_indices = @transform_2, window_bounds = array<i64: 3, 8, 2>}, {pipeline_mode = #tpu.pipeline_mode<synchronous>, transform_indices = @transform_3, window_bounds = array<i64: 8, 1>}, {pipeline_mode = #tpu.pipeline_mode<synchronous>, transform_indices = @transform_4, window_bounds = array<i64: 4, 2, 8>}, {pipeline_mode = #tpu.pipeline_mode<synchronous>, transform_indices = @transform_5, window_bounds = array<i64: 2, 1>}, {transform_indices = @transform_6, window_bounds = array<i64: 1, 8, 2048>}, {transform_indices = @transform_7, window_bounds = array<i64: 1, 2, 2048>}, {transform_indices = @transform_8, window_bounds = array<i64: 1, 2, 2048>}]} {
    %c0 = arith.constant 0 : index
    %c0_0 = arith.constant 0 : index
    %c0_1 = arith.constant 0 : index
    %0 = vector.load %arg3[%c0, %c0_0, %c0_1] : memref<3x8x2xbf16, #tpu.memory_space<vmem>>, vector<1x8x2xbf16>
    %1 = vector.shape_cast %0 : vector<1x8x2xbf16> to vector<8x2xbf16>
    %c0_2 = arith.constant 0 : index
    %c0_3 = arith.constant 0 : index
    %c0_4 = arith.constant 0 : index
    %2 = vector.load %arg2[%c0_2, %c0_3, %c0_4] : memref<1x2x2049xbf16, #tpu.memory_space<vmem>>, vector<1x2x2048xbf16>
    %3 = vector.shape_cast %2 : vector<1x2x2048xbf16> to vector<2x2048xbf16>
    %cst = arith.constant dense<0.000000e+00> : vector<8x2048xf32>
    %4 = tpu.matmul %1, %3, %cst {dimension_numbers = #tpu.dot_dimension_numbers<[1], [0], [0], [1], [0, 0, 1, 1], [], []>} : vector<8x2xbf16>, vector<2x2048xbf16>, vector<8x2048xf32> -> vector<8x2048xf32>
    %c1 = arith.constant 1 : index
    %c0_5 = arith.constant 0 : index
    %c0_6 = arith.constant 0 : index
    %5 = vector.load %arg3[%c1, %c0_5, %c0_6] : memref<3x8x2xbf16, #tpu.memory_space<vmem>>, vector<1x8x2xbf16>
    %6 = vector.shape_cast %5 : vector<1x8x2xbf16> to vector<8x2xbf16>
    %c0_7 = arith.constant 0 : index
    %c0_8 = arith.constant 0 : index
    %c0_9 = arith.constant 0 : index
    %7 = vector.load %arg1[%c0_7, %c0_8, %c0_9] : memref<1x2x2048xbf16, #tpu.memory_space<vmem>>, vector<1x2x2048xbf16>
    %8 = vector.shape_cast %7 : vector<1x2x2048xbf16> to vector<2x2048xbf16>
    %cst_10 = arith.constant dense<0.000000e+00> : vector<8x2048xf32>
    %9 = tpu.matmul %6, %8, %cst_10 {dimension_numbers = #tpu.dot_dimension_numbers<[1], [0], [0], [1], [0, 0, 1, 1], [], []>} : vector<8x2xbf16>, vector<2x2048xbf16>, vector<8x2048xf32> -> vector<8x2048xf32>
    %10 = arith.addf %4, %9 : vector<8x2048xf32>
    %c2 = arith.constant 2 : index
    %c0_11 = arith.constant 0 : index
    %c0_12 = arith.constant 0 : index
    %11 = vector.load %arg3[%c2, %c0_11, %c0_12] : memref<3x8x2xbf16, #tpu.memory_space<vmem>>, vector<1x8x2xbf16>
    %12 = vector.shape_cast %11 : vector<1x8x2xbf16> to vector<8x2xbf16>
    %c0_13 = arith.constant 0 : index
    %c0_14 = arith.constant 0 : index
    %c1_15 = arith.constant 1 : index
    %13 = vector.load %arg2[%c0_13, %c0_14, %c1_15] : memref<1x2x2049xbf16, #tpu.memory_space<vmem>>, vector<1x2x2048xbf16>
    %14 = vector.shape_cast %13 : vector<1x2x2048xbf16> to vector<2x2048xbf16>
    %cst_16 = arith.constant dense<0.000000e+00> : vector<8x2048xf32>
    %15 = tpu.matmul %12, %14, %cst_16 {dimension_numbers = #tpu.dot_dimension_numbers<[1], [0], [0], [1], [0, 0, 1, 1], [], []>} : vector<8x2xbf16>, vector<2x2048xbf16>, vector<8x2048xf32> -> vector<8x2048xf32>
    %16 = arith.addf %10, %15 : vector<8x2048xf32>
    %c0_17 = arith.constant 0 : index
    %c0_18 = arith.constant 0 : index
    %17 = vector.load %arg4[%c0_17, %c0_18] : memref<8x1xf32, #tpu.memory_space<vmem>>, vector<8x1xf32>
    %18 = vector.broadcast %17 : vector<8x1xf32> to vector<8x2048xf32>
    %19 = arith.addf %16, %18 : vector<8x2048xf32>
    %20 = math.tanh %19 : vector<8x2048xf32>
    %c0_19 = arith.constant 0 : index
    %c0_20 = arith.constant 0 : index
    %c0_21 = arith.constant 0 : index
    %21 = vector.load %arg7[%c0_19, %c0_20, %c0_21] : memref<1x8x2048xf32, #tpu.memory_space<vmem>>, vector<1x8x2048xf32>
    %22 = vector.shape_cast %21 : vector<1x8x2048xf32> to vector<8x2048xf32>
    %23 = vector.shape_cast %20 : vector<8x2048xf32> to vector<1x8x2048xf32>
    tpu.vector_store %arg7[%c0_19, %c0_20, %c0_21], %23 {strides = array<i32>} : memref<1x8x2048xf32, #tpu.memory_space<vmem>>, vector<1x8x2048xf32>,
    %cst_22 = arith.constant 0.000000e+00 : bf16
    %24 = vector.broadcast %cst_22 : bf16 to vector<8x2050xbf16>
    %c0_23 = arith.constant 0 : index
    %c0_24 = arith.constant 0 : index
    %25 = vector.load %arg10[%c0_23, %c0_24] : memref<8x2050xbf16, #tpu.memory_space<vmem>>, vector<8x2050xbf16>
    tpu.vector_store %arg10[%c0_23, %c0_24], %24 {strides = array<i32>} : memref<8x2050xbf16, #tpu.memory_space<vmem>>, vector<8x2050xbf16>,
    %26 = arith.truncf %20 : vector<8x2048xf32> to vector<8x2048xbf16>
    %c0_25 = arith.constant 0 : index
    %c1_26 = arith.constant 1 : index
    %27 = vector.load %arg10[%c0_25, %c1_26] : memref<8x2050xbf16, #tpu.memory_space<vmem>>, vector<8x2048xbf16>
    tpu.vector_store %arg10[%c0_25, %c1_26], %26 {strides = array<i32>} : memref<8x2050xbf16, #tpu.memory_space<vmem>>, vector<8x2048xbf16>,
    %c0_27 = arith.constant 0 : index
    %c0_28 = arith.constant 0 : index
    %c0_29 = arith.constant 0 : index
    %28 = vector.load %arg5[%c0_27, %c0_28, %c0_29] : memref<4x2x8xbf16, #tpu.memory_space<vmem>>, vector<1x2x8xbf16>
    %29 = vector.shape_cast %28 : vector<1x2x8xbf16> to vector<2x8xbf16>
    %c0_30 = arith.constant 0 : index
    %c0_31 = arith.constant 0 : index
    %30 = vector.load %arg10[%c0_30, %c0_31] : memref<8x2050xbf16, #tpu.memory_space<vmem>>, vector<8x2048xbf16>
    %cst_32 = arith.constant dense<0.000000e+00> : vector<2x2048xf32>
    %31 = tpu.matmul %29, %30, %cst_32 {dimension_numbers = #tpu.dot_dimension_numbers<[1], [0], [0], [1], [0, 0, 1, 1], [], []>} : vector<2x8xbf16>, vector<8x2048xbf16>, vector<2x2048xf32> -> vector<2x2048xf32>
    %c1_33 = arith.constant 1 : index
    %c0_34 = arith.constant 0 : index
    %c0_35 = arith.constant 0 : index
    %32 = vector.load %arg5[%c1_33, %c0_34, %c0_35] : memref<4x2x8xbf16, #tpu.memory_space<vmem>>, vector<1x2x8xbf16>
    %33 = vector.shape_cast %32 : vector<1x2x8xbf16> to vector<2x8xbf16>
    %c0_36 = arith.constant 0 : index
    %c1_37 = arith.constant 1 : index
    %34 = vector.load %arg10[%c0_36, %c1_37] : memref<8x2050xbf16, #tpu.memory_space<vmem>>, vector<8x2048xbf16>
    %cst_38 = arith.constant dense<0.000000e+00> : vector<2x2048xf32>
    %35 = tpu.matmul %33, %34, %cst_38 {dimension_numbers = #tpu.dot_dimension_numbers<[1], [0], [0], [1], [0, 0, 1, 1], [], []>} : vector<2x8xbf16>, vector<8x2048xbf16>, vector<2x2048xf32> -> vector<2x2048xf32>
    %36 = arith.addf %31, %35 : vector<2x2048xf32>
    %c2_39 = arith.constant 2 : index
    %c0_40 = arith.constant 0 : index
    %c0_41 = arith.constant 0 : index
    %37 = vector.load %arg5[%c2_39, %c0_40, %c0_41] : memref<4x2x8xbf16, #tpu.memory_space<vmem>>, vector<1x2x8xbf16>
    %38 = vector.shape_cast %37 : vector<1x2x8xbf16> to vector<2x8xbf16>
    %c0_42 = arith.constant 0 : index
    %c1_43 = arith.constant 1 : index
    %39 = vector.load %arg10[%c0_42, %c1_43] : memref<8x2050xbf16, #tpu.memory_space<vmem>>, vector<8x2048xbf16>
    %cst_44 = arith.constant dense<0.000000e+00> : vector<2x2048xf32>
    %40 = tpu.matmul %38, %39, %cst_44 {dimension_numbers = #tpu.dot_dimension_numbers<[1], [0], [0], [1], [0, 0, 1, 1], [], []>} : vector<2x8xbf16>, vector<8x2048xbf16>, vector<2x2048xf32> -> vector<2x2048xf32>
    %c3 = arith.constant 3 : index
    %c0_45 = arith.constant 0 : index
    %c0_46 = arith.constant 0 : index
    %41 = vector.load %arg5[%c3, %c0_45, %c0_46] : memref<4x2x8xbf16, #tpu.memory_space<vmem>>, vector<1x2x8xbf16>
    %42 = vector.shape_cast %41 : vector<1x2x8xbf16> to vector<2x8xbf16>
    %c0_47 = arith.constant 0 : index
    %c2_48 = arith.constant 2 : index
    %43 = vector.load %arg10[%c0_47, %c2_48] : memref<8x2050xbf16, #tpu.memory_space<vmem>>, vector<8x2048xbf16>
    %cst_49 = arith.constant dense<0.000000e+00> : vector<2x2048xf32>
    %44 = tpu.matmul %42, %43, %cst_49 {dimension_numbers = #tpu.dot_dimension_numbers<[1], [0], [0], [1], [0, 0, 1, 1], [], []>} : vector<2x8xbf16>, vector<8x2048xbf16>, vector<2x2048xf32> -> vector<2x2048xf32>
    %45 = arith.addf %40, %44 : vector<2x2048xf32>
    %c0_50 = arith.constant 0 : index
    %c0_51 = arith.constant 0 : index
    %46 = vector.load %arg6[%c0_50, %c0_51] : memref<2x1xf32, #tpu.memory_space<vmem>>, vector<2x1xf32>
    %47 = vector.broadcast %46 : vector<2x1xf32> to vector<2x2048xf32>
    %48 = arith.addf %36, %47 : vector<2x2048xf32>
    %c0_52 = arith.constant 0 : index
    %c0_53 = arith.constant 0 : index
    %49 = vector.load %arg6[%c0_52, %c0_53] : memref<2x1xf32, #tpu.memory_space<vmem>>, vector<2x1xf32>
    %50 = vector.broadcast %49 : vector<2x1xf32> to vector<2x2048xf32>
    %51 = arith.addf %45, %50 : vector<2x2048xf32>
    %c0_54 = arith.constant 0 : index
    %c0_55 = arith.constant 0 : index
    %c0_56 = arith.constant 0 : index
    %52 = vector.load %arg8[%c0_54, %c0_55, %c0_56] : memref<1x2x2048xf32, #tpu.memory_space<vmem>>, vector<1x2x2048xf32>
    %53 = vector.shape_cast %52 : vector<1x2x2048xf32> to vector<2x2048xf32>
    %54 = vector.shape_cast %48 : vector<2x2048xf32> to vector<1x2x2048xf32>
    tpu.vector_store %arg8[%c0_54, %c0_55, %c0_56], %54 {strides = array<i32>} : memref<1x2x2048xf32, #tpu.memory_space<vmem>>, vector<1x2x2048xf32>,
    %c0_57 = arith.constant 0 : index
    %c0_58 = arith.constant 0 : index
    %c0_59 = arith.constant 0 : index
    %55 = vector.load %arg9[%c0_57, %c0_58, %c0_59] : memref<1x2x2048xf32, #tpu.memory_space<vmem>>, vector<1x2x2048xf32>
    %56 = vector.shape_cast %55 : vector<1x2x2048xf32> to vector<2x2048xf32>
    %57 = vector.shape_cast %51 : vector<2x2048xf32> to vector<1x2x2048xf32>
    tpu.vector_store %arg9[%c0_57, %c0_58, %c0_59], %57 {strides = array<i32>} : memref<1x2x2048xf32, #tpu.memory_space<vmem>>, vector<1x2x2048xf32>,
    return
  }
  func.func @transform_0(%arg0: i32) -> (i32, i32, i32) {
    %c0_i32 = arith.constant 0 : i32
    %c0_i32_0 = arith.constant 0 : i32
    %c0_i32_1 = arith.constant 0 : i32
    return %arg0, %c0_i32, %c0_i32_0 : i32, i32, i32
  }
  func.func @transform_1(%arg0: i32) -> (i32, i32, i32) {
    %c0_i32 = arith.constant 0 : i32
    %c0_i32_0 = arith.constant 0 : i32
    %c0_i32_1 = arith.constant 0 : i32
    return %arg0, %c0_i32, %c0_i32_0 : i32, i32, i32
  }
  func.func @transform_2(%arg0: i32) -> (i32, i32, i32) {
    %c0_i32 = arith.constant 0 : i32
    %c0_i32_0 = arith.constant 0 : i32
    %c0_i32_1 = arith.constant 0 : i32
    %c0_i32_2 = arith.constant 0 : i32
    return %c0_i32, %c0_i32_0, %c0_i32_1 : i32, i32, i32
  }
  func.func @transform_3(%arg0: i32) -> (i32, i32) {
    %c0_i32 = arith.constant 0 : i32
    %c0_i32_0 = arith.constant 0 : i32
    %c0_i32_1 = arith.constant 0 : i32
    return %c0_i32, %c0_i32_0 : i32, i32
  }
  func.func @transform_4(%arg0: i32) -> (i32, i32, i32) {
    %c0_i32 = arith.constant 0 : i32
    %c0_i32_0 = arith.constant 0 : i32
    %c0_i32_1 = arith.constant 0 : i32
    %c0_i32_2 = arith.constant 0 : i32
    return %c0_i32, %c0_i32_0, %c0_i32_1 : i32, i32, i32
  }
  func.func @transform_5(%arg0: i32) -> (i32, i32) {
    %c0_i32 = arith.constant 0 : i32
    %c0_i32_0 = arith.constant 0 : i32
    %c0_i32_1 = arith.constant 0 : i32
    return %c0_i32, %c0_i32_0 : i32, i32
  }
  func.func @transform_6(%arg0: i32) -> (i32, i32, i32) {
    %c0_i32 = arith.constant 0 : i32
    %c0_i32_0 = arith.constant 0 : i32
    %c0_i32_1 = arith.constant 0 : i32
    return %arg0, %c0_i32, %c0_i32_0 : i32, i32, i32
  }
  func.func @transform_7(%arg0: i32) -> (i32, i32, i32) {
    %c0_i32 = arith.constant 0 : i32
    %c0_i32_0 = arith.constant 0 : i32
    %c0_i32_1 = arith.constant 0 : i32
    return %arg0, %c0_i32, %c0_i32_0 : i32, i32, i32
  }
  func.func @transform_8(%arg0: i32) -> (i32, i32, i32) {
    %c0_i32 = arith.constant 0 : i32
    %c0_i32_0 = arith.constant 0 : i32
    %c0_i32_1 = arith.constant 0 : i32
    return %arg0, %c0_i32, %c0_i32_0 : i32, i32, i32
  }
}

</mosaic_0001>

<llo_original>
// kernel: _ae_encode_decode_impl.1
$region0: #{_ae_encode_decode_impl.1}
  #allocation0 [shape = 'u32[]', space=smem, size = 0x4, offset = 0x4, fixed_abs, tag = 'smem constant byte address 0x4 - core index']
  #allocation1 [shape = 'u32[144,128]{1,0:T(1,128)}', space=vmem, size = 0x12000, scoped, tag = 'internal scratch']
  #allocation2 [shape = 'bf16[8,2050]{1,0:T(8,128)(2,1)}', space=vmem, size = 0x8800, scoped, tag = 'scratch operand']
  %s0 = inlined_call_operand.vmem [shape: bf16[2,2,2048], index: 0, kind: input, shape index: {}]
  %s1 = inlined_call_operand.vmem [shape: bf16[2,2,2049], index: 1, kind: input, shape index: {}]
  %s2 = inlined_call_operand.vmem [shape: bf16[3,8,2], index: 2, kind: input, shape index: {}]
  %s3 = inlined_call_operand.vmem [shape: f32[8,1], index: 3, kind: input, shape index: {}]
  %s4 = inlined_call_operand.vmem [shape: bf16[4,2,8], index: 4, kind: input, shape index: {}]
  %s5 = inlined_call_operand.vmem [shape: f32[2,1], index: 5, kind: input, shape index: {}]
  %s6 = inlined_call_operand.hbm [shape: f32[2,8,2048], index: 6, kind: output, shape index: {0}]
  %s7 = inlined_call_operand.vmem [shape: f32[2,2,2048], index: 7, kind: output, shape index: {1}]
  %s8 = inlined_call_operand.vmem [shape: f32[2,2,2048], index: 8, kind: output, shape index: {2}]
  %9 = xla_tuple %s6, %s7, %s8
  %s10 = sld [smem:[#allocation0]]
  $region73: #{_ae_encode_decode_impl.1} parent=0
    _
  %s12 = ssub.s32 1, %s10
  %s13 = scalar_select 0, %s12, %s10
  $region1: #{_ae_encode_decode_impl.1} parent=0
    #allocation3 [shape = 'u8[131072]{0}', space=vmem, size = 0x20000, scoped, tag = 'output window, operand 0']
    #allocation4 [shape = 's32[2]{0}', space=sflag, size = 0x8, scoped, tag = 'scoped memory for _ae_encode_decode_impl.1']
    %14 = vsyncpa [#allocation4], 0
    %s15 = scalar_lea.sflag [#allocation4], 1
    %16 = vsyncpa %s15, 0
    loop: start=0, step=1, limit=4
    $region2: #{_ae_encode_decode_impl.1} parent=1 // loop_pre_header
      _
    $region3: #{_ae_encode_decode_impl.1} parent=1 // loop_header
      %s18 = sphi 0, %s22
      %p19 = scmp.ge.s32.totalorder %s18, 4
      %s28 = sphi 0, %s30
      %s31 = sphi 0, %s28
      %s32 = sphi 0, %s31
      %s48 = sphi 0, %s32
      %s54 = sphi 0, %s56
      %s57 = sphi 0, %s54
      %s58 = sphi 0, %s57
      %s74 = sphi 0, %s58
      %s78 = sphi 0, %s78
      %s80 = sphi 0, %s78
      %s81 = sphi 0, %s80
      %s95 = sphi 0, %s81
      %s99 = sphi 0, %s99
      %s101 = sphi 0, %s99
      %s102 = sphi 0, %s101
      %s116 = sphi 0, %s102
      %s120 = sphi 0, %s120
      %s122 = sphi 0, %s120
      %s123 = sphi 0, %s122
      %s137 = sphi 0, %s123
      %s141 = sphi 0, %s141
      %s143 = sphi 0, %s141
      %s144 = sphi 0, %s143
      %s158 = sphi 0, %s144
      %s164 = sphi 0, %s166
      %s167 = sphi 0, %s164
      %s168 = sphi 0, %s167
      %s184 = sphi 0, %s168
      %s190 = sphi 0, %s192
      %s193 = sphi 0, %s190
      %s194 = sphi 0, %s193
      %s210 = sphi 0, %s194
      %s216 = sphi 0, %s218
      %s219 = sphi 0, %s216
      %s220 = sphi 0, %s219
      %s236 = sphi 0, %s220
    $region4: #{_ae_encode_decode_impl.1} parent=1 // loop_header_branch
      %21 = sbr.rel (%p19) target = $region8
    $region5: #{_ae_encode_decode_impl.1} parent=1 // loop_body
      %s23 = ssub.s32 %s18, 1
      %s24 = ssub.s32 %s18, 2
      %s25 = sadd.s32 %s18, 1
      %s26 = ssub.s32 %s18, %s25
      %p27 = scmp.eq.s32.totalorder %s26, 0
      %s29 = sadd.s32 %s28, 1
      %s30 = scalar_select %p27, %s28, %s29
      %p33 = pneg %p27
      %p34 = scmp.eq.s32.totalorder %s18, 1
      %p35 = por %p33, %p34
      %p36 = scmp.ne.s32.totalorder %s28, %s31
      %p37 = scmp.eq.s32.totalorder %s18, 0
      %p38 = por %p36, %p37
      %p39 = scmp.ne.s32.totalorder %s28, %s31
      %p40 = scmp.eq.s32.totalorder %s23, 1
      %p41 = por %p39, %p40
      %p42 = scmp.ne.s32.totalorder %s31, %s32
      %p43 = scmp.eq.s32.totalorder %s23, 0
      %p44 = por %p42, %p43
      %p45 = scmp.ne.s32.totalorder %s31, %s32
      %p46 = scmp.eq.s32.totalorder %s24, 1
      %p47 = por %p45, %p46
      %p49 = scmp.ne.s32.totalorder %s32, %s48
      %p50 = scmp.eq.s32.totalorder %s24, 0
      %p51 = por %p49, %p50
      %s52 = ssub.s32 %s18, %s25
      %p53 = scmp.eq.s32.totalorder %s52, 0
      %s55 = sadd.s32 %s54, 1
      %s56 = scalar_select %p53, %s54, %s55
      %p59 = pneg %p53
      %p60 = scmp.eq.s32.totalorder %s18, 1
      %p61 = por %p59, %p60
      %p62 = scmp.ne.s32.totalorder %s54, %s57
      %p63 = scmp.eq.s32.totalorder %s18, 0
      %p64 = por %p62, %p63
      %p65 = scmp.ne.s32.totalorder %s54, %s57
      %p66 = scmp.eq.s32.totalorder %s23, 1
      %p67 = por %p65, %p66
      %p68 = scmp.ne.s32.totalorder %s57, %s58
      %p69 = scmp.eq.s32.totalorder %s23, 0
      %p70 = por %p68, %p69
      %p71 = scmp.ne.s32.totalorder %s57, %s58
      %p72 = scmp.eq.s32.totalorder %s24, 1
      %p73 = por %p71, %p72
      %p75 = scmp.ne.s32.totalorder %s58, %s74
      %p76 = scmp.eq.s32.totalorder %s24, 0
      %p77 = por %p75, %p76
      %s79 = sadd.s32 %s78, 1
      %p82 = scmp.eq.s32.totalorder %s18, 1
      %p83 = scmp.ne.s32.totalorder %s78, %s80
      %p84 = scmp.eq.s32.totalorder %s18, 0
      %p85 = por %p83, %p84
      %p86 = scmp.ne.s32.totalorder %s78, %s80
      %p87 = scmp.eq.s32.totalorder %s23, 1
      %p88 = por %p86, %p87
      %p89 = scmp.ne.s32.totalorder %s80, %s81
      %p90 = scmp.eq.s32.totalorder %s23, 0
      %p91 = por %p89, %p90
      %p92 = scmp.ne.s32.totalorder %s80, %s81
      %p93 = scmp.eq.s32.totalorder %s24, 1
      %p94 = por %p92, %p93
      %p96 = scmp.ne.s32.totalorder %s81, %s95
      %p97 = scmp.eq.s32.totalorder %s24, 0
      %p98 = por %p96, %p97
      %s100 = sadd.s32 %s99, 1
      %p103 = scmp.eq.s32.totalorder %s18, 1
      %p104 = scmp.ne.s32.totalorder %s99, %s101
      %p105 = scmp.eq.s32.totalorder %s18, 0
      %p106 = por %p104, %p105
      %p107 = scmp.ne.s32.totalorder %s99, %s101
      %p108 = scmp.eq.s32.totalorder %s23, 1
      %p109 = por %p107, %p108
      %p110 = scmp.ne.s32.totalorder %s101, %s102
      %p111 = scmp.eq.s32.totalorder %s23, 0
      %p112 = por %p110, %p111
      %p113 = scmp.ne.s32.totalorder %s101, %s102
      %p114 = scmp.eq.s32.totalorder %s24, 1
      %p115 = por %p113, %p114
      %p117 = scmp.ne.s32.totalorder %s102, %s116
      %p118 = scmp.eq.s32.totalorder %s24, 0
      %p119 = por %p117, %p118
      %s121 = sadd.s32 %s120, 1
      %p124 = scmp.eq.s32.totalorder %s18, 1
      %p125 = scmp.ne.s32.totalorder %s120, %s122
      %p126 = scmp.eq.s32.totalorder %s18, 0
      %p127 = por %p125, %p126
      %p128 = scmp.ne.s32.totalorder %s120, %s122
      %p129 = scmp.eq.s32.totalorder %s23, 1
      %p130 = por %p128, %p129
      %p131 = scmp.ne.s32.totalorder %s122, %s123
      %p132 = scmp.eq.s32.totalorder %s23, 0
      %p133 = por %p131, %p132
      %p134 = scmp.ne.s32.totalorder %s122, %s123
      %p135 = scmp.eq.s32.totalorder %s24, 1
      %p136 = por %p134, %p135
      %p138 = scmp.ne.s32.totalorder %s123, %s137
      %p139 = scmp.eq.s32.totalorder %s24, 0
      %p140 = por %p138, %p139
      %s142 = sadd.s32 %s141, 1
      %p145 = scmp.eq.s32.totalorder %s18, 1
      %p146 = scmp.ne.s32.totalorder %s141, %s143
      %p147 = scmp.eq.s32.totalorder %s18, 0
      %p148 = por %p146, %p147
      %p149 = scmp.ne.s32.totalorder %s141, %s143
      %p150 = scmp.eq.s32.totalorder %s23, 1
      %p151 = por %p149, %p150
      %p152 = scmp.ne.s32.totalorder %s143, %s144
      %p153 = scmp.eq.s32.totalorder %s23, 0
      %p154 = por %p152, %p153
      %p155 = scmp.ne.s32.totalorder %s143, %s144
      %p156 = scmp.eq.s32.totalorder %s24, 1
      %p157 = por %p155, %p156
      %p159 = scmp.ne.s32.totalorder %s144, %s158
      %p160 = scmp.eq.s32.totalorder %s24, 0
      %p161 = por %p159, %p160
      %s162 = ssub.s32 %s18, %s25
      %p163 = scmp.eq.s32.totalorder %s162, 0
      %s165 = sadd.s32 %s164, 1
      %s166 = scalar_select %p163, %s164, %s165
      %p169 = pneg %p163
      %p170 = scmp.eq.s32.totalorder %s18, 1
      %p171 = por %p169, %p170
      %p172 = scmp.ne.s32.totalorder %s164, %s167
      %p173 = scmp.eq.s32.totalorder %s18, 0
      %p174 = por %p172, %p173
      %p175 = scmp.ne.s32.totalorder %s164, %s167
      %p176 = scmp.eq.s32.totalorder %s23, 1
      %p177 = por %p175, %p176
      %p178 = scmp.ne.s32.totalorder %s167, %s168
      %p179 = scmp.eq.s32.totalorder %s23, 0
      %p180 = por %p178, %p179
      %p181 = scmp.ne.s32.totalorder %s167, %s168
      %p182 = scmp.eq.s32.totalorder %s24, 1
      %p183 = por %p181, %p182
      %p185 = scmp.ne.s32.totalorder %s168, %s184
      %p186 = scmp.eq.s32.totalorder %s24, 0
      %p187 = por %p185, %p186
      %s188 = ssub.s32 %s18, %s25
      %p189 = scmp.eq.s32.totalorder %s188, 0
      %s191 = sadd.s32 %s190, 1
      %s192 = scalar_select %p189, %s190, %s191
      %p195 = pneg %p189
      %p196 = scmp.eq.s32.totalorder %s18, 1
      %p197 = por %p195, %p196
      %p198 = scmp.ne.s32.totalorder %s190, %s193
      %p199 = scmp.eq.s32.totalorder %s18, 0
      %p200 = por %p198, %p199
      %p201 = scmp.ne.s32.totalorder %s190, %s193
      %p202 = scmp.eq.s32.totalorder %s23, 1
      %p203 = por %p201, %p202
      %p204 = scmp.ne.s32.totalorder %s193, %s194
      %p205 = scmp.eq.s32.totalorder %s23, 0
      %p206 = por %p204, %p205
      %p207 = scmp.ne.s32.totalorder %s193, %s194
      %p208 = scmp.eq.s32.totalorder %s24, 1
      %p209 = por %p207, %p208
      %p211 = scmp.ne.s32.totalorder %s194, %s210
      %p212 = scmp.eq.s32.totalorder %s24, 0
      %p213 = por %p211, %p212
      %s214 = ssub.s32 %s18, %s25
      %p215 = scmp.eq.s32.totalorder %s214, 0
      %s217 = sadd.s32 %s216, 1
      %s218 = scalar_select %p215, %s216, %s217
      %p221 = pneg %p215
      %p222 = scmp.eq.s32.totalorder %s18, 1
      %p223 = por %p221, %p222
      %p224 = scmp.ne.s32.totalorder %s216, %s219
      %p225 = scmp.eq.s32.totalorder %s18, 0
      %p226 = por %p224, %p225
      %p227 = scmp.ne.s32.totalorder %s216, %s219
      %p228 = scmp.eq.s32.totalorder %s23, 1
      %p229 = por %p227, %p228
      %p230 = scmp.ne.s32.totalorder %s219, %s220
      %p231 = scmp.eq.s32.totalorder %s23, 0
      %p232 = por %p230, %p231
      %p233 = scmp.ne.s32.totalorder %s219, %s220
      %p234 = scmp.eq.s32.totalorder %s24, 1
      %p235 = por %p233, %p234
      %p237 = scmp.ne.s32.totalorder %s220, %s236
      %p238 = scmp.eq.s32.totalorder %s24, 0
      %p239 = por %p237, %p238
      %p240 = scmp.le.s32.totalorder 1, %s18
      %p241 = scmp.lt.s32.totalorder %s18, 3
      %p242 = pnand %p240, %p241
      %p243 = pneg %p242
      // Predicated region
      $region9: #{_ae_encode_decode_impl.1} parent=5 // pred_check
        _
      $region10: #{_ae_encode_decode_impl.1} parent=5 // pred_check_branch
        %245 = sbr.rel (%p242) target = $region12
      $region11: #{_ae_encode_decode_impl.1} parent=5 // pred_region
        %s246 = ssub.s32 %s18, 1
        // Predicated region
        $region13: #{_ae_encode_decode_impl.1} parent=11 // pred_check
          %p247 = pneg %p91
        $region14: #{_ae_encode_decode_impl.1} parent=11 // pred_check_branch
          %249 = sbr.rel (%p247) target = $region16
        $region15: #{_ae_encode_decode_impl.1} parent=11 // pred_region
          _
        $region16: #{_ae_encode_decode_impl.1} parent=11 // pred_fallthru
          _
        // Predicated region
        $region17: #{_ae_encode_decode_impl.1} parent=11 // pred_check
          %p250 = pneg %p112
        $region18: #{_ae_encode_decode_impl.1} parent=11 // pred_check_branch
          %252 = sbr.rel (%p250) target = $region20
        $region19: #{_ae_encode_decode_impl.1} parent=11 // pred_region
          _
        $region20: #{_ae_encode_decode_impl.1} parent=11 // pred_fallthru
          _
        // Predicated region
        $region21: #{_ae_encode_decode_impl.1} parent=11 // pred_check
          %p253 = pneg %p133
        $region22: #{_ae_encode_decode_impl.1} parent=11 // pred_check_branch
          %255 = sbr.rel (%p253) target = $region24
        $region23: #{_ae_encode_decode_impl.1} parent=11 // pred_region
          _
        $region24: #{_ae_encode_decode_impl.1} parent=11 // pred_fallthru
          _
        // Predicated region
        $region25: #{_ae_encode_decode_impl.1} parent=11 // pred_check
          %p256 = pneg %p154
        $region26: #{_ae_encode_decode_impl.1} parent=11 // pred_check_branch
          %258 = sbr.rel (%p256) target = $region28
        $region27: #{_ae_encode_decode_impl.1} parent=11 // pred_region
          _
        $region28: #{_ae_encode_decode_impl.1} parent=11 // pred_fallthru
          _
      $region12: #{_ae_encode_decode_impl.1} parent=5 // pred_fallthru
        _
      %p259 = scmp.lt.s32.totalorder %s18, 2
      // Predicated region
      $region29: #{_ae_encode_decode_impl.1} parent=5 // pred_check
        %p260 = pneg %p259
      $region30: #{_ae_encode_decode_impl.1} parent=5 // pred_check_branch
        %262 = sbr.rel (%p260) target = $region32
      $region31: #{_ae_encode_decode_impl.1} parent=5 // pred_region
        // Predicated region
        $region33: #{_ae_encode_decode_impl.1} parent=31 // pred_check
          %p263 = pneg %p38
        $region34: #{_ae_encode_decode_impl.1} parent=31 // pred_check_branch
          %265 = sbr.rel (%p263) target = $region36
        $region35: #{_ae_encode_decode_impl.1} parent=31 // pred_region
          %p266 = scmp.lt.s32.totalorder %s18, 1
          %s267 = scalar_select %p266, %s18, 1
          %s268 = smul.addr %s267, 16
          %s269 = scalar_lea.vmem %s0, %s268
        $region36: #{_ae_encode_decode_impl.1} parent=31 // pred_fallthru
          _
        // Predicated region
        $region37: #{_ae_encode_decode_impl.1} parent=31 // pred_check
          %p270 = pneg %p64
        $region38: #{_ae_encode_decode_impl.1} parent=31 // pred_check_branch
          %272 = sbr.rel (%p270) target = $region40
        $region39: #{_ae_encode_decode_impl.1} parent=31 // pred_region
          %p273 = scmp.lt.s32.totalorder %s18, 1
          %s274 = scalar_select %p273, %s18, 1
          %s275 = smul.addr %s274, 17
          %s276 = scalar_lea.vmem %s1, %s275
        $region40: #{_ae_encode_decode_impl.1} parent=31 // pred_fallthru
          _
      $region32: #{_ae_encode_decode_impl.1} parent=5 // pred_fallthru
        _
      %p277 = scmp.le.s32.totalorder 1, %s18
      %p278 = scmp.lt.s32.totalorder %s18, 3
      %p279 = pnand %p277, %p278
      %p280 = pneg %p279
      // Predicated region
      $region41: #{_ae_encode_decode_impl.1} parent=5 // pred_check
        _
      $region42: #{_ae_encode_decode_impl.1} parent=5 // pred_check_branch
        %282 = sbr.rel (%p279) target = $region44
      $region43: #{_ae_encode_decode_impl.1} parent=5 // pred_region
        %s283 = ssub.s32 %s18, 1
        %p284 = scmp.lt.s32.totalorder %s23, 1
        %s285 = scalar_select %p284, %s23, 1
        %s286 = smul.addr %s285, 16
        %s287 = scalar_lea.vmem %s0, %s286
        %p288 = pneg %p44
        %p289 = pneg %p41
        %p290 = scmp.lt.s32.totalorder %s23, 1
        %s291 = scalar_select %p290, %s23, 1
        %s292 = smul.addr %s291, 17
        %s293 = scalar_lea.vmem %s1, %s292
        %p294 = pneg %p70
        %p295 = pneg %p67
        %p296 = pneg %p91
        %p297 = pneg %p88
        %p298 = pneg %p112
        %p299 = pneg %p109
        %p300 = pneg %p133
        %p301 = pneg %p130
        %p302 = pneg %p154
        %p303 = pneg %p151
        %p304 = pneg %p180
        %p305 = pneg %p177
        %s306 = sand.u32 %s167, 1
        %s307 = scalar_lea.sflag [#allocation4], %s306
        %s308 = sand.u32 %s167, 1
        %s309 = smul.addr %s308, 128
        %s310 = scalar_lea.vmem [#allocation3], %s309
        %p311 = pneg %p206
        %p312 = pneg %p203
        %p313 = scmp.lt.s32.totalorder %s23, 1
        %s314 = scalar_select %p313, %s23, 1
        %s315 = smul.addr %s314, 16
        %s316 = smul.addr %s315, 2
        %s317 = scalar_lea.vmem %s7, %s316
        %p318 = pneg %p232
        %p319 = pneg %p229
        %p320 = scmp.lt.s32.totalorder %s23, 1
        %s321 = scalar_select %p320, %s23, 1
        %s322 = smul.addr %s321, 16
        %s323 = smul.addr %s322, 2
        %s324 = scalar_lea.vmem %s8, %s323
        %p325 = scmp.lt.s32.totalorder %s23, 1
        %s326 = scalar_select %p325, %s23, 1
        %s327 = smul.addr %s326, 16
        %s328 = scalar_lea.vmem %s0, %s327
        %p329 = scmp.lt.s32.totalorder %s23, 1
        %s330 = scalar_select %p329, %s23, 1
        %s331 = smul.addr %s330, 17
        %s332 = scalar_lea.vmem %s1, %s331
        %p333 = scmp.lt.s32.totalorder %s23, 1
        %s334 = scalar_select %p333, %s23, 1
        %s335 = smul.addr %s334, 16
        %s336 = smul.addr %s335, 2
        %s337 = scalar_lea.vmem %s7, %s336
        %p338 = scmp.lt.s32.totalorder %s23, 1
        %s339 = scalar_select %p338, %s23, 1
        %s340 = smul.addr %s339, 16
        %s341 = smul.addr %s340, 2
        %s342 = scalar_lea.vmem %s8, %s341
        %v344 = vld [vmem:[%s2] sm:$0xf]
        %v345 = vld [vmem:[%s332] sm:$0xff]
        %v346 = vld [vmem:[%s332 + $0x8] sm:$0xff]
        %s347 = scalar_lea.vmem %s2, 4
        %v348 = vld [vmem:[%s347] sm:$0xf]
        %v349 = vld [vmem:[%s328] sm:$0xff]
        %v350 = vld [vmem:[%s328 + $0x8] sm:$0xff]
        %v353 = vcombine.high %v349, %v349
        %v355 = vunpack.c.l.s4 1966171168
        %v356 = vunpack.c.0.s8 %v355
        %v357 = vlaneseq
        %v358 = vshrl.u32 %v357, 7
        %v359 = vsub.s32 %v356, %v358
        %v360 = vrot.slane %v349, %v359
        %v362 = vunpack.c.l.s4 1966171168
        %v363 = vunpack.c.0.s8 %v362
        %v364 = vlaneseq
        %v365 = vshrl.u32 %v364, 7
        %v366 = vsub.s32 %v363, %v365
        %v367 = vrot.slane %v353, %v366
        %v368 = vcombine.high %v360, %v360
        %v369 = vcombine.high %v367, %v367
        %v371 = vunpack.c.l.s4 1966171168
        %v372 = vunpack.c.0.s8 %v371
        %v373 = vlaneseq
        %v374 = vshrl.u32 %v373, 7
        %v375 = vsub.s32 %v372, %v374
        %v376 = vrot.slane %v360, %v375
        %v378 = vunpack.c.l.s4 1966171168
        %v379 = vunpack.c.0.s8 %v378
        %v380 = vlaneseq
        %v381 = vshrl.u32 %v380, 7
        %v382 = vsub.s32 %v379, %v381
        %v383 = vrot.slane %v367, %v382
        %v385 = vunpack.c.l.s4 1966171168
        %v386 = vunpack.c.0.s8 %v385
        %v387 = vlaneseq
        %v388 = vshrl.u32 %v387, 7
        %v389 = vsub.s32 %v386, %v388
        %v390 = vrot.slane %v368, %v389
        %v392 = vunpack.c.l.s4 1966171168
        %v393 = vunpack.c.0.s8 %v392
        %v394 = vlaneseq
        %v395 = vshrl.u32 %v394, 7
        %v396 = vsub.s32 %v393, %v395
        %v397 = vrot.slane %v369, %v396
        %v398 = vcombine.high %v376, %v376
        %v399 = vcombine.high %v383, %v383
        %v400 = vcombine.high %v390, %v390
        %v401 = vcombine.high %v397, %v397
        %v402 = vcombine.high %v350, %v350
        %v404 = vunpack.c.l.s4 1966171168
        %v405 = vunpack.c.0.s8 %v404
        %v406 = vlaneseq
        %v407 = vshrl.u32 %v406, 7
        %v408 = vsub.s32 %v405, %v407
        %v409 = vrot.slane %v350, %v408
        %v411 = vunpack.c.l.s4 1966171168
        %v412 = vunpack.c.0.s8 %v411
        %v413 = vlaneseq
        %v414 = vshrl.u32 %v413, 7
        %v415 = vsub.s32 %v412, %v414
        %v416 = vrot.slane %v402, %v415
        %v417 = vcombine.high %v409, %v409
        %v418 = vcombine.high %v416, %v416
        %v420 = vunpack.c.l.s4 1966171168
        %v421 = vunpack.c.0.s8 %v420
        %v422 = vlaneseq
        %v423 = vshrl.u32 %v422, 7
        %v424 = vsub.s32 %v421, %v423
        %v425 = vrot.slane %v409, %v424
        %v427 = vunpack.c.l.s4 1966171168
        %v428 = vunpack.c.0.s8 %v427
        %v429 = vlaneseq
        %v430 = vshrl.u32 %v429, 7
        %v431 = vsub.s32 %v428, %v430
        %v432 = vrot.slane %v416, %v431
        %v434 = vunpack.c.l.s4 1966171168
        %v435 = vunpack.c.0.s8 %v434
        %v436 = vlaneseq
        %v437 = vshrl.u32 %v436, 7
        %v438 = vsub.s32 %v435, %v437
        %v439 = vrot.slane %v417, %v438
        %v441 = vunpack.c.l.s4 1966171168
        %v442 = vunpack.c.0.s8 %v441
        %v443 = vlaneseq
        %v444 = vshrl.u32 %v443, 7
        %v445 = vsub.s32 %v442, %v444
        %v446 = vrot.slane %v418, %v445
        %v447 = vcombine.high %v425, %v425
        %v448 = vcombine.high %v432, %v432
        %v449 = vcombine.high %v439, %v439
        %v450 = vcombine.high %v446, %v446
        %vm451 = vcmask 15360
        %v453 = vsel %vm451, %v348, 0
        %vm455 = vcmask 1040384
        %v457 = vsel %vm455, %v376, 0
        %v460 = vsel %vm455, %v390, 0
        %v463 = vsel %vm455, %v398, 0
        %v466 = vsel %vm455, %v400, 0
        %v469 = vsel %vm455, %v383, 0
        %v472 = vsel %vm455, %v397, 0
        %v475 = vsel %vm455, %v399, 0
        %v478 = vsel %vm455, %v401, 0
        %v481 = vsel %vm455, %v425, 0
        %v484 = vsel %vm455, %v439, 0
        %v487 = vsel %vm455, %v447, 0
        %v490 = vsel %vm455, %v449, 0
        %v493 = vsel %vm455, %v432, 0
        %v496 = vsel %vm455, %v446, 0
        %v499 = vsel %vm455, %v448, 0
        %v502 = vsel %vm455, %v450, 0
        %504 = vmatprep.subr.bf16.mxu0 0
        %505 = vmatpush1.bf16.msra.mxu0 0
        %506 = vmatprep.subr.bf16.mxu0 0
        %507 = vmatpush1.bf16.msra.mxu0 0
        %508 = vmatprep.subr.bf16.mxu0 0
        %509 = vmatpush1.bf16.msra.mxu0 0
        %510 = vmatprep.subr.bf16.mxu0 0
        %511 = vmatpush1.bf16.msra.mxu0 0
        %512 = vmatprep.subr.bf16.mxu0 0
        %513 = vmatpush1.bf16.msra.mxu0 0
        %514 = vmatprep.subr.bf16.mxu0 0
        %515 = vmatpush1.bf16.msra.mxu0 0
        %516 = vmatprep.subr.bf16.mxu0 0
        %517 = vmatpush1.bf16.msra.mxu0 0
        %518 = vmatprep.subr.bf16.mxu0 %v460
        %519 = vmatpush1.bf16.msra.mxu0 %v457
        %520 = vmatprep.subr.bf16.mxu0 0
        %521 = vmatpush2.bf16.msra.mxu0 0
        %522 = vmatprep.subr.bf16.mxu0 0
        %523 = vmatpush2.bf16.msra.mxu0 0
        %524 = vmatprep.subr.bf16.mxu0 0
        %525 = vmatpush2.bf16.msra.mxu0 0
        %526 = vmatprep.subr.bf16.mxu0 0
        %527 = vmatpush2.bf16.msra.mxu0 0
        %528 = vmatprep.subr.bf16.mxu0 0
        %529 = vmatpush2.bf16.msra.mxu0 0
        %530 = vmatprep.subr.bf16.mxu0 0
        %531 = vmatpush2.bf16.msra.mxu0 0
        %532 = vmatprep.subr.bf16.mxu0 0
        %533 = vmatpush2.bf16.msra.mxu0 0
        %534 = vmatprep.subr.bf16.mxu0 0
        %535 = vmatpush2.bf16.msra.mxu0 0
        %536 = vmatprep.mubr.bf16.mxu0 0
        %537 = vmatmul.mubr.bf16.gmra.mxu0 %v453
        %v538 = vpop.f32.mrf.mxu0
        %v539 = vadd.f32 0.0, %v538
        %v540 = vpop.f32.mrf.mxu0
        %v541 = vadd.f32 0.0, %v540
        %v542 = vpop.f32.mrf.mxu0
        %v543 = vpop.f32.mrf.mxu0
        %544 = vdwg.mxu0
        %545 = vmatprep.subr.bf16.mxu0 0
        %546 = vmatpush1.bf16.msra.mxu0 0
        %547 = vmatprep.subr.bf16.mxu0 0
        %548 = vmatpush1.bf16.msra.mxu0 0
        %549 = vmatprep.subr.bf16.mxu0 0
        %550 = vmatpush1.bf16.msra.mxu0 0
        %551 = vmatprep.subr.bf16.mxu0 0
        %552 = vmatpush1.bf16.msra.mxu0 0
        %553 = vmatprep.subr.bf16.mxu0 0
        %554 = vmatpush1.bf16.msra.mxu0 0
        %555 = vmatprep.subr.bf16.mxu0 0
        %556 = vmatpush1.bf16.msra.mxu0 0
        %557 = vmatprep.subr.bf16.mxu0 0
        %558 = vmatpush1.bf16.msra.mxu0 0
        %559 = vmatprep.subr.bf16.mxu0 %v466
        %560 = vmatpush1.bf16.msra.mxu0 %v463
        %561 = vmatprep.subr.bf16.mxu0 0
        %562 = vmatpush2.bf16.msra.mxu0 0
        %563 = vmatprep.subr.bf16.mxu0 0
        %564 = vmatpush2.bf16.msra.mxu0 0
        %565 = vmatprep.subr.bf16.mxu0 0
        %566 = vmatpush2.bf16.msra.mxu0 0
        %567 = vmatprep.subr.bf16.mxu0 0
        %568 = vmatpush2.bf16.msra.mxu0 0
        %569 = vmatprep.subr.bf16.mxu0 0
        %570 = vmatpush2.bf16.msra.mxu0 0
        %571 = vmatprep.subr.bf16.mxu0 0
        %572 = vmatpush2.bf16.msra.mxu0 0
        %573 = vmatprep.subr.bf16.mxu0 0
        %574 = vmatpush2.bf16.msra.mxu0 0
        %575 = vmatprep.subr.bf16.mxu0 0
        %576 = vmatpush2.bf16.msra.mxu0 0
        %577 = vmatprep.mubr.bf16.mxu0 0
        %578 = vmatmul.mubr.bf16.gmra.mxu0 %v453
        %v579 = vpop.f32.mrf.mxu0
        %v580 = vadd.f32 0.0, %v579
        %v581 = vpop.f32.mrf.mxu0
        %v582 = vadd.f32 0.0, %v581
        %v583 = vpop.f32.mrf.mxu0
        %v584 = vpop.f32.mrf.mxu0
        %585 = vdwg.mxu0
        %586 = vmatprep.subr.bf16.mxu0 0
        %587 = vmatpush1.bf16.msra.mxu0 0
        %588 = vmatprep.subr.bf16.mxu0 0
        %589 = vmatpush1.bf16.msra.mxu0 0
        %590 = vmatprep.subr.bf16.mxu0 0
        %591 = vmatpush1.bf16.msra.mxu0 0
        %592 = vmatprep.subr.bf16.mxu0 0
        %593 = vmatpush1.bf16.msra.mxu0 0
        %594 = vmatprep.subr.bf16.mxu0 0
        %595 = vmatpush1.bf16.msra.mxu0 0
        %596 = vmatprep.subr.bf16.mxu0 0
        %597 = vmatpush1.bf16.msra.mxu0 0
        %598 = vmatprep.subr.bf16.mxu0 0
        %599 = vmatpush1.bf16.msra.mxu0 0
        %600 = vmatprep.subr.bf16.mxu0 %v472
        %601 = vmatpush1.bf16.msra.mxu0 %v469
        %602 = vmatprep.subr.bf16.mxu0 0
        %603 = vmatpush2.bf16.msra.mxu0 0
        %604 = vmatprep.subr.bf16.mxu0 0
        %605 = vmatpush2.bf16.msra.mxu0 0
        %606 = vmatprep.subr.bf16.mxu0 0
        %607 = vmatpush2.bf16.msra.mxu0 0
        %608 = vmatprep.subr.bf16.mxu0 0
        %609 = vmatpush2.bf16.msra.mxu0 0
        %610 = vmatprep.subr.bf16.mxu0 0
        %611 = vmatpush2.bf16.msra.mxu0 0
        %612 = vmatprep.subr.bf16.mxu0 0
        %613 = vmatpush2.bf16.msra.mxu0 0
        %614 = vmatprep.subr.bf16.mxu0 0
        %615 = vmatpush2.bf16.msra.mxu0 0
        %616 = vmatprep.subr.bf16.mxu0 0
        %617 = vmatpush2.bf16.msra.mxu0 0
        %618 = vmatprep.mubr.bf16.mxu0 0
        %619 = vmatmul.mubr.bf16.gmra.mxu0 %v453
        %v620 = vpop.f32.mrf.mxu0
        %v621 = vadd.f32 0.0, %v620
        %v622 = vpop.f32.mrf.mxu0
        %v623 = vadd.f32 0.0, %v622
        %v624 = vpop.f32.mrf.mxu0
        %v625 = vpop.f32.mrf.mxu0
        %626 = vdwg.mxu0
        %627 = vmatprep.subr.bf16.mxu0 0
        %628 = vmatpush1.bf16.msra.mxu0 0
        %629 = vmatprep.subr.bf16.mxu0 0
        %630 = vmatpush1.bf16.msra.mxu0 0
        %631 = vmatprep.subr.bf16.mxu0 0
        %632 = vmatpush1.bf16.msra.mxu0 0
        %633 = vmatprep.subr.bf16.mxu0 0
        %634 = vmatpush1.bf16.msra.mxu0 0
        %635 = vmatprep.subr.bf16.mxu0 0
        %636 = vmatpush1.bf16.msra.mxu0 0
        %637 = vmatprep.subr.bf16.mxu0 0
        %638 = vmatpush1.bf16.msra.mxu0 0
        %639 = vmatprep.subr.bf16.mxu0 0
        %640 = vmatpush1.bf16.msra.mxu0 0
        %641 = vmatprep.subr.bf16.mxu0 %v478
        %642 = vmatpush1.bf16.msra.mxu0 %v475
        %643 = vmatprep.subr.bf16.mxu0 0
        %644 = vmatpush2.bf16.msra.mxu0 0
        %645 = vmatprep.subr.bf16.mxu0 0
        %646 = vmatpush2.bf16.msra.mxu0 0
        %647 = vmatprep.subr.bf16.mxu0 0
        %648 = vmatpush2.bf16.msra.mxu0 0
        %649 = vmatprep.subr.bf16.mxu0 0
        %650 = vmatpush2.bf16.msra.mxu0 0
        %651 = vmatprep.subr.bf16.mxu0 0
        %652 = vmatpush2.bf16.msra.mxu0 0
        %653 = vmatprep.subr.bf16.mxu0 0
        %654 = vmatpush2.bf16.msra.mxu0 0
        %655 = vmatprep.subr.bf16.mxu0 0
        %656 = vmatpush2.bf16.msra.mxu0 0
        %657 = vmatprep.subr.bf16.mxu0 0
        %658 = vmatpush2.bf16.msra.mxu0 0
        %659 = vmatprep.mubr.bf16.mxu0 0
        %660 = vmatmul.mubr.bf16.gmra.mxu0 %v453
        %v661 = vpop.f32.mrf.mxu0
        %v662 = vadd.f32 0.0, %v661
        %v663 = vpop.f32.mrf.mxu0
        %v664 = vadd.f32 0.0, %v663
        %v665 = vpop.f32.mrf.mxu0
        %v666 = vpop.f32.mrf.mxu0
        %667 = vdwg.mxu0
        %668 = vmatprep.subr.bf16.mxu0 0
        %669 = vmatpush1.bf16.msra.mxu0 0
        %670 = vmatprep.subr.bf16.mxu0 0
        %671 = vmatpush1.bf16.msra.mxu0 0
        %672 = vmatprep.subr.bf16.mxu0 0
        %673 = vmatpush1.bf16.msra.mxu0 0
        %674 = vmatprep.subr.bf16.mxu0 0
        %675 = vmatpush1.bf16.msra.mxu0 0
        %676 = vmatprep.subr.bf16.mxu0 0
        %677 = vmatpush1.bf16.msra.mxu0 0
        %678 = vmatprep.subr.bf16.mxu0 0
        %679 = vmatpush1.bf16.msra.mxu0 0
        %680 = vmatprep.subr.bf16.mxu0 0
        %681 = vmatpush1.bf16.msra.mxu0 0
        %682 = vmatprep.subr.bf16.mxu0 %v484
        %683 = vmatpush1.bf16.msra.mxu0 %v481
        %684 = vmatprep.subr.bf16.mxu0 0
        %685 = vmatpush2.bf16.msra.mxu0 0
        %686 = vmatprep.subr.bf16.mxu0 0
        %687 = vmatpush2.bf16.msra.mxu0 0
        %688 = vmatprep.subr.bf16.mxu0 0
        %689 = vmatpush2.bf16.msra.mxu0 0
        %690 = vmatprep.subr.bf16.mxu0 0
        %691 = vmatpush2.bf16.msra.mxu0 0
        %692 = vmatprep.subr.bf16.mxu0 0
        %693 = vmatpush2.bf16.msra.mxu0 0
        %694 = vmatprep.subr.bf16.mxu0 0
        %695 = vmatpush2.bf16.msra.mxu0 0
        %696 = vmatprep.subr.bf16.mxu0 0
        %697 = vmatpush2.bf16.msra.mxu0 0
        %698 = vmatprep.subr.bf16.mxu0 0
        %699 = vmatpush2.bf16.msra.mxu0 0
        %700 = vmatprep.mubr.bf16.mxu0 0
        %701 = vmatmul.mubr.bf16.gmra.mxu0 %v453
        %v702 = vpop.f32.mrf.mxu0
        %v703 = vadd.f32 0.0, %v702
        %v704 = vpop.f32.mrf.mxu0
        %v705 = vadd.f32 0.0, %v704
        %v706 = vpop.f32.mrf.mxu0
        %v707 = vpop.f32.mrf.mxu0
        %708 = vdwg.mxu0
        %709 = vmatprep.subr.bf16.mxu0 0
        %710 = vmatpush1.bf16.msra.mxu0 0
        %711 = vmatprep.subr.bf16.mxu0 0
        %712 = vmatpush1.bf16.msra.mxu0 0
        %713 = vmatprep.subr.bf16.mxu0 0
        %714 = vmatpush1.bf16.msra.mxu0 0
        %715 = vmatprep.subr.bf16.mxu0 0
        %716 = vmatpush1.bf16.msra.mxu0 0
        %717 = vmatprep.subr.bf16.mxu0 0
        %718 = vmatpush1.bf16.msra.mxu0 0
        %719 = vmatprep.subr.bf16.mxu0 0
        %720 = vmatpush1.bf16.msra.mxu0 0
        %721 = vmatprep.subr.bf16.mxu0 0
        %722 = vmatpush1.bf16.msra.mxu0 0
        %723 = vmatprep.subr.bf16.mxu0 %v490
        %724 = vmatpush1.bf16.msra.mxu0 %v487
        %725 = vmatprep.subr.bf16.mxu0 0
        %726 = vmatpush2.bf16.msra.mxu0 0
        %727 = vmatprep.subr.bf16.mxu0 0
        %728 = vmatpush2.bf16.msra.mxu0 0
        %729 = vmatprep.subr.bf16.mxu0 0
        %730 = vmatpush2.bf16.msra.mxu0 0
        %731 = vmatprep.subr.bf16.mxu0 0
        %732 = vmatpush2.bf16.msra.mxu0 0
        %733 = vmatprep.subr.bf16.mxu0 0
        %734 = vmatpush2.bf16.msra.mxu0 0
        %735 = vmatprep.subr.bf16.mxu0 0
        %736 = vmatpush2.bf16.msra.mxu0 0
        %737 = vmatprep.subr.bf16.mxu0 0
        %738 = vmatpush2.bf16.msra.mxu0 0
        %739 = vmatprep.subr.bf16.mxu0 0
        %740 = vmatpush2.bf16.msra.mxu0 0
        %741 = vmatprep.mubr.bf16.mxu0 0
        %742 = vmatmul.mubr.bf16.gmra.mxu0 %v453
        %v743 = vpop.f32.mrf.mxu0
        %v744 = vadd.f32 0.0, %v743
        %v745 = vpop.f32.mrf.mxu0
        %v746 = vadd.f32 0.0, %v745
        %v747 = vpop.f32.mrf.mxu0
        %v748 = vpop.f32.mrf.mxu0
        %749 = vdwg.mxu0
        %750 = vmatprep.subr.bf16.mxu0 0
        %751 = vmatpush1.bf16.msra.mxu0 0
        %752 = vmatprep.subr.bf16.mxu0 0
        %753 = vmatpush1.bf16.msra.mxu0 0
        %754 = vmatprep.subr.bf16.mxu0 0
        %755 = vmatpush1.bf16.msra.mxu0 0
        %756 = vmatprep.subr.bf16.mxu0 0
        %757 = vmatpush1.bf16.msra.mxu0 0
        %758 = vmatprep.subr.bf16.mxu0 0
        %759 = vmatpush1.bf16.msra.mxu0 0
        %760 = vmatprep.subr.bf16.mxu0 0
        %761 = vmatpush1.bf16.msra.mxu0 0
        %762 = vmatprep.subr.bf16.mxu0 0
        %763 = vmatpush1.bf16.msra.mxu0 0
        %764 = vmatprep.subr.bf16.mxu0 %v496
        %765 = vmatpush1.bf16.msra.mxu0 %v493
        %766 = vmatprep.subr.bf16.mxu0 0
        %767 = vmatpush2.bf16.msra.mxu0 0
        %768 = vmatprep.subr.bf16.mxu0 0
        %769 = vmatpush2.bf16.msra.mxu0 0
        %770 = vmatprep.subr.bf16.mxu0 0
        %771 = vmatpush2.bf16.msra.mxu0 0
        %772 = vmatprep.subr.bf16.mxu0 0
        %773 = vmatpush2.bf16.msra.mxu0 0
        %774 = vmatprep.subr.bf16.mxu0 0
        %775 = vmatpush2.bf16.msra.mxu0 0
        %776 = vmatprep.subr.bf16.mxu0 0
        %777 = vmatpush2.bf16.msra.mxu0 0
        %778 = vmatprep.subr.bf16.mxu0 0
        %779 = vmatpush2.bf16.msra.mxu0 0
        %780 = vmatprep.subr.bf16.mxu0 0
        %781 = vmatpush2.bf16.msra.mxu0 0
        %782 = vmatprep.mubr.bf16.mxu0 0
        %783 = vmatmul.mubr.bf16.gmra.mxu0 %v453
        %v784 = vpop.f32.mrf.mxu0
        %v785 = vadd.f32 0.0, %v784
        %v786 = vpop.f32.mrf.mxu0
        %v787 = vadd.f32 0.0, %v786
        %v788 = vpop.f32.mrf.mxu0
        %v789 = vpop.f32.mrf.mxu0
        %790 = vdwg.mxu0
        %791 = vmatprep.subr.bf16.mxu0 0
        %792 = vmatpush1.bf16.msra.mxu0 0
        %793 = vmatprep.subr.bf16.mxu0 0
        %794 = vmatpush1.bf16.msra.mxu0 0
        %795 = vmatprep.subr.bf16.mxu0 0
        %796 = vmatpush1.bf16.msra.mxu0 0
        %797 = vmatprep.subr.bf16.mxu0 0
        %798 = vmatpush1.bf16.msra.mxu0 0
        %799 = vmatprep.subr.bf16.mxu0 0
        %800 = vmatpush1.bf16.msra.mxu0 0
        %801 = vmatprep.subr.bf16.mxu0 0
        %802 = vmatpush1.bf16.msra.mxu0 0
        %803 = vmatprep.subr.bf16.mxu0 0
        %804 = vmatpush1.bf16.msra.mxu0 0
        %805 = vmatprep.subr.bf16.mxu0 %v502
        %806 = vmatpush1.bf16.msra.mxu0 %v499
        %807 = vmatprep.subr.bf16.mxu0 0
        %808 = vmatpush2.bf16.msra.mxu0 0
        %809 = vmatprep.subr.bf16.mxu0 0
        %810 = vmatpush2.bf16.msra.mxu0 0
        %811 = vmatprep.subr.bf16.mxu0 0
        %812 = vmatpush2.bf16.msra.mxu0 0
        %813 = vmatprep.subr.bf16.mxu0 0
        %814 = vmatpush2.bf16.msra.mxu0 0
        %815 = vmatprep.subr.bf16.mxu0 0
        %816 = vmatpush2.bf16.msra.mxu0 0
        %817 = vmatprep.subr.bf16.mxu0 0
        %818 = vmatpush2.bf16.msra.mxu0 0
        %819 = vmatprep.subr.bf16.mxu0 0
        %820 = vmatpush2.bf16.msra.mxu0 0
        %821 = vmatprep.subr.bf16.mxu0 0
        %822 = vmatpush2.bf16.msra.mxu0 0
        %823 = vmatprep.mubr.bf16.mxu0 0
        %824 = vmatmul.mubr.bf16.gmra.mxu0 %v453
        %v825 = vpop.f32.mrf.mxu0
        %v826 = vadd.f32 0.0, %v825
        %v827 = vpop.f32.mrf.mxu0
        %v828 = vadd.f32 0.0, %v827
        %v829 = vpop.f32.mrf.mxu0
        %v830 = vpop.f32.mrf.mxu0
        %831 = vdwg.mxu0
        %v834 = vcombine.high %v345, %v345
        %v836 = vunpack.c.l.s4 1966171168
        %v837 = vunpack.c.0.s8 %v836
        %v838 = vlaneseq
        %v839 = vshrl.u32 %v838, 7
        %v840 = vsub.s32 %v837, %v839
        %v841 = vrot.slane %v345, %v840
        %v843 = vunpack.c.l.s4 1966171168
        %v844 = vunpack.c.0.s8 %v843
        %v845 = vlaneseq
        %v846 = vshrl.u32 %v845, 7
        %v847 = vsub.s32 %v844, %v846
        %v848 = vrot.slane %v834, %v847
        %v849 = vcombine.high %v841, %v841
        %v850 = vcombine.high %v848, %v848
        %v852 = vunpack.c.l.s4 1966171168
        %v853 = vunpack.c.0.s8 %v852
        %v854 = vlaneseq
        %v855 = vshrl.u32 %v854, 7
        %v856 = vsub.s32 %v853, %v855
        %v857 = vrot.slane %v841, %v856
        %v859 = vunpack.c.l.s4 1966171168
        %v860 = vunpack.c.0.s8 %v859
        %v861 = vlaneseq
        %v862 = vshrl.u32 %v861, 7
        %v863 = vsub.s32 %v860, %v862
        %v864 = vrot.slane %v848, %v863
        %v866 = vunpack.c.l.s4 1966171168
        %v867 = vunpack.c.0.s8 %v866
        %v868 = vlaneseq
        %v869 = vshrl.u32 %v868, 7
        %v870 = vsub.s32 %v867, %v869
        %v871 = vrot.slane %v849, %v870
        %v873 = vunpack.c.l.s4 1966171168
        %v874 = vunpack.c.0.s8 %v873
        %v875 = vlaneseq
        %v876 = vshrl.u32 %v875, 7
        %v877 = vsub.s32 %v874, %v876
        %v878 = vrot.slane %v850, %v877
        %v879 = vcombine.high %v857, %v857
        %v880 = vcombine.high %v864, %v864
        %v881 = vcombine.high %v871, %v871
        %v882 = vcombine.high %v878, %v878
        %v883 = vcombine.high %v346, %v346
        %v885 = vunpack.c.l.s4 1966171168
        %v886 = vunpack.c.0.s8 %v885
        %v887 = vlaneseq
        %v888 = vshrl.u32 %v887, 7
        %v889 = vsub.s32 %v886, %v888
        %v890 = vrot.slane %v346, %v889
        %v892 = vunpack.c.l.s4 1966171168
        %v893 = vunpack.c.0.s8 %v892
        %v894 = vlaneseq
        %v895 = vshrl.u32 %v894, 7
        %v896 = vsub.s32 %v893, %v895
        %v897 = vrot.slane %v883, %v896
        %v898 = vcombine.high %v890, %v890
        %v899 = vcombine.high %v897, %v897
        %v901 = vunpack.c.l.s4 1966171168
        %v902 = vunpack.c.0.s8 %v901
        %v903 = vlaneseq
        %v904 = vshrl.u32 %v903, 7
        %v905 = vsub.s32 %v902, %v904
        %v906 = vrot.slane %v890, %v905
        %v908 = vunpack.c.l.s4 1966171168
        %v909 = vunpack.c.0.s8 %v908
        %v910 = vlaneseq
        %v911 = vshrl.u32 %v910, 7
        %v912 = vsub.s32 %v909, %v911
        %v913 = vrot.slane %v897, %v912
        %v915 = vunpack.c.l.s4 1966171168
        %v916 = vunpack.c.0.s8 %v915
        %v917 = vlaneseq
        %v918 = vshrl.u32 %v917, 7
        %v919 = vsub.s32 %v916, %v918
        %v920 = vrot.slane %v898, %v919
        %v922 = vunpack.c.l.s4 1966171168
        %v923 = vunpack.c.0.s8 %v922
        %v924 = vlaneseq
        %v925 = vshrl.u32 %v924, 7
        %v926 = vsub.s32 %v923, %v925
        %v927 = vrot.slane %v899, %v926
        %v928 = vcombine.high %v906, %v906
        %v929 = vcombine.high %v913, %v913
        %v930 = vcombine.high %v920, %v920
        %v931 = vcombine.high %v927, %v927
        %v933 = vsel %vm451, %v344, 0
        %v936 = vsel %vm455, %v857, 0
        %v939 = vsel %vm455, %v871, 0
        %v942 = vsel %vm455, %v879, 0
        %v945 = vsel %vm455, %v881, 0
        %v948 = vsel %vm455, %v864, 0
        %v951 = vsel %vm455, %v878, 0
        %v954 = vsel %vm455, %v880, 0
        %v957 = vsel %vm455, %v882, 0
        %v960 = vsel %vm455, %v906, 0
        %v963 = vsel %vm455, %v920, 0
        %v966 = vsel %vm455, %v928, 0
        %v969 = vsel %vm455, %v930, 0
        %v972 = vsel %vm455, %v913, 0
        %v975 = vsel %vm455, %v927, 0
        %v978 = vsel %vm455, %v929, 0
        %v981 = vsel %vm455, %v931, 0
        %983 = vmatprep.subr.bf16.mxu0 0
        %984 = vmatpush1.bf16.msra.mxu0 0
        %985 = vmatprep.subr.bf16.mxu0 0
        %986 = vmatpush1.bf16.msra.mxu0 0
        %987 = vmatprep.subr.bf16.mxu0 0
        %988 = vmatpush1.bf16.msra.mxu0 0
        %989 = vmatprep.subr.bf16.mxu0 0
        %990 = vmatpush1.bf16.msra.mxu0 0
        %991 = vmatprep.subr.bf16.mxu0 0
        %992 = vmatpush1.bf16.msra.mxu0 0
        %993 = vmatprep.subr.bf16.mxu0 0
        %994 = vmatpush1.bf16.msra.mxu0 0
        %995 = vmatprep.subr.bf16.mxu0 0
        %996 = vmatpush1.bf16.msra.mxu0 0
        %997 = vmatprep.subr.bf16.mxu0 %v939
        %998 = vmatpush1.bf16.msra.mxu0 %v936
        %999 = vmatprep.subr.bf16.mxu0 0
        %1000 = vmatpush2.bf16.msra.mxu0 0
        %1001 = vmatprep.subr.bf16.mxu0 0
        %1002 = vmatpush2.bf16.msra.mxu0 0
        %1003 = vmatprep.subr.bf16.mxu0 0
        %1004 = vmatpush2.bf16.msra.mxu0 0
        %1005 = vmatprep.subr.bf16.mxu0 0
        %1006 = vmatpush2.bf16.msra.mxu0 0
        %1007 = vmatprep.subr.bf16.mxu0 0
        %1008 = vmatpush2.bf16.msra.mxu0 0
        %1009 = vmatprep.subr.bf16.mxu0 0
        %1010 = vmatpush2.bf16.msra.mxu0 0
        %1011 = vmatprep.subr.bf16.mxu0 0
        %1012 = vmatpush2.bf16.msra.mxu0 0
        %1013 = vmatprep.subr.bf16.mxu0 0
        %1014 = vmatpush2.bf16.msra.mxu0 0
        %1015 = vmatprep.mubr.bf16.mxu0 0
        %1016 = vmatmul.mubr.bf16.gmra.mxu0 %v933
        %v1017 = vpop.f32.mrf.mxu0
        %v1018 = vadd.f32 %v539, %v1017
        %v1019 = vpop.f32.mrf.mxu0
        %v1020 = vadd.f32 %v541, %v1019
        %v1021 = vpop.f32.mrf.mxu0
        %v1022 = vpop.f32.mrf.mxu0
        %1023 = vdwg.mxu0
        %1024 = vmatprep.subr.bf16.mxu0 0
        %1025 = vmatpush1.bf16.msra.mxu0 0
        %1026 = vmatprep.subr.bf16.mxu0 0
        %1027 = vmatpush1.bf16.msra.mxu0 0
        %1028 = vmatprep.subr.bf16.mxu0 0
        %1029 = vmatpush1.bf16.msra.mxu0 0
        %1030 = vmatprep.subr.bf16.mxu0 0
        %1031 = vmatpush1.bf16.msra.mxu0 0
        %1032 = vmatprep.subr.bf16.mxu0 0
        %1033 = vmatpush1.bf16.msra.mxu0 0
        %1034 = vmatprep.subr.bf16.mxu0 0
        %1035 = vmatpush1.bf16.msra.mxu0 0
        %1036 = vmatprep.subr.bf16.mxu0 0
        %1037 = vmatpush1.bf16.msra.mxu0 0
        %1038 = vmatprep.subr.bf16.mxu0 %v945
        %1039 = vmatpush1.bf16.msra.mxu0 %v942
        %1040 = vmatprep.subr.bf16.mxu0 0
        %1041 = vmatpush2.bf16.msra.mxu0 0
        %1042 = vmatprep.subr.bf16.mxu0 0
        %1043 = vmatpush2.bf16.msra.mxu0 0
        %1044 = vmatprep.subr.bf16.mxu0 0
        %1045 = vmatpush2.bf16.msra.mxu0 0
        %1046 = vmatprep.subr.bf16.mxu0 0
        %1047 = vmatpush2.bf16.msra.mxu0 0
        %1048 = vmatprep.subr.bf16.mxu0 0
        %1049 = vmatpush2.bf16.msra.mxu0 0
        %1050 = vmatprep.subr.bf16.mxu0 0
        %1051 = vmatpush2.bf16.msra.mxu0 0
        %1052 = vmatprep.subr.bf16.mxu0 0
        %1053 = vmatpush2.bf16.msra.mxu0 0
        %1054 = vmatprep.subr.bf16.mxu0 0
        %1055 = vmatpush2.bf16.msra.mxu0 0
        %1056 = vmatprep.mubr.bf16.mxu0 0
        %1057 = vmatmul.mubr.bf16.gmra.mxu0 %v933
        %v1058 = vpop.f32.mrf.mxu0
        %v1059 = vadd.f32 %v580, %v1058
        %v1060 = vpop.f32.mrf.mxu0
        %v1061 = vadd.f32 %v582, %v1060
        %v1062 = vpop.f32.mrf.mxu0
        %v1063 = vpop.f32.mrf.mxu0
        %1064 = vdwg.mxu0
        %1065 = vmatprep.subr.bf16.mxu0 0
        %1066 = vmatpush1.bf16.msra.mxu0 0
        %1067 = vmatprep.subr.bf16.mxu0 0
        %1068 = vmatpush1.bf16.msra.mxu0 0
        %1069 = vmatprep.subr.bf16.mxu0 0
        %1070 = vmatpush1.bf16.msra.mxu0 0
        %1071 = vmatprep.subr.bf16.mxu0 0
        %1072 = vmatpush1.bf16.msra.mxu0 0
        %1073 = vmatprep.subr.bf16.mxu0 0
        %1074 = vmatpush1.bf16.msra.mxu0 0
        %1075 = vmatprep.subr.bf16.mxu0 0
        %1076 = vmatpush1.bf16.msra.mxu0 0
        %1077 = vmatprep.subr.bf16.mxu0 0
        %1078 = vmatpush1.bf16.msra.mxu0 0
        %1079 = vmatprep.subr.bf16.mxu0 %v951
        %1080 = vmatpush1.bf16.msra.mxu0 %v948
        %1081 = vmatprep.subr.bf16.mxu0 0
        %1082 = vmatpush2.bf16.msra.mxu0 0
        %1083 = vmatprep.subr.bf16.mxu0 0
        %1084 = vmatpush2.bf16.msra.mxu0 0
        %1085 = vmatprep.subr.bf16.mxu0 0
        %1086 = vmatpush2.bf16.msra.mxu0 0
        %1087 = vmatprep.subr.bf16.mxu0 0
        %1088 = vmatpush2.bf16.msra.mxu0 0
        %1089 = vmatprep.subr.bf16.mxu0 0
        %1090 = vmatpush2.bf16.msra.mxu0 0
        %1091 = vmatprep.subr.bf16.mxu0 0
        %1092 = vmatpush2.bf16.msra.mxu0 0
        %1093 = vmatprep.subr.bf16.mxu0 0
        %1094 = vmatpush2.bf16.msra.mxu0 0
        %1095 = vmatprep.subr.bf16.mxu0 0
        %1096 = vmatpush2.bf16.msra.mxu0 0
        %1097 = vmatprep.mubr.bf16.mxu0 0
        %1098 = vmatmul.mubr.bf16.gmra.mxu0 %v933
        %v1099 = vpop.f32.mrf.mxu0
        %v1100 = vadd.f32 %v621, %v1099
        %v1101 = vpop.f32.mrf.mxu0
        %v1102 = vadd.f32 %v623, %v1101
        %v1103 = vpop.f32.mrf.mxu0
        %v1104 = vpop.f32.mrf.mxu0
        %1105 = vdwg.mxu0
        %1106 = vmatprep.subr.bf16.mxu0 0
        %1107 = vmatpush1.bf16.msra.mxu0 0
        %1108 = vmatprep.subr.bf16.mxu0 0
        %1109 = vmatpush1.bf16.msra.mxu0 0
        %1110 = vmatprep.subr.bf16.mxu0 0
        %1111 = vmatpush1.bf16.msra.mxu0 0
        %1112 = vmatprep.subr.bf16.mxu0 0
        %1113 = vmatpush1.bf16.msra.mxu0 0
        %1114 = vmatprep.subr.bf16.mxu0 0
        %1115 = vmatpush1.bf16.msra.mxu0 0
        %1116 = vmatprep.subr.bf16.mxu0 0
        %1117 = vmatpush1.bf16.msra.mxu0 0
        %1118 = vmatprep.subr.bf16.mxu0 0
        %1119 = vmatpush1.bf16.msra.mxu0 0
        %1120 = vmatprep.subr.bf16.mxu0 %v957
        %1121 = vmatpush1.bf16.msra.mxu0 %v954
        %1122 = vmatprep.subr.bf16.mxu0 0
        %1123 = vmatpush2.bf16.msra.mxu0 0
        %1124 = vmatprep.subr.bf16.mxu0 0
        %1125 = vmatpush2.bf16.msra.mxu0 0
        %1126 = vmatprep.subr.bf16.mxu0 0
        %1127 = vmatpush2.bf16.msra.mxu0 0
        %1128 = vmatprep.subr.bf16.mxu0 0
        %1129 = vmatpush2.bf16.msra.mxu0 0
        %1130 = vmatprep.subr.bf16.mxu0 0
        %1131 = vmatpush2.bf16.msra.mxu0 0
        %1132 = vmatprep.subr.bf16.mxu0 0
        %1133 = vmatpush2.bf16.msra.mxu0 0
        %1134 = vmatprep.subr.bf16.mxu0 0
        %1135 = vmatpush2.bf16.msra.mxu0 0
        %1136 = vmatprep.subr.bf16.mxu0 0
        %1137 = vmatpush2.bf16.msra.mxu0 0
        %1138 = vmatprep.mubr.bf16.mxu0 0
        %1139 = vmatmul.mubr.bf16.gmra.mxu0 %v933
        %v1140 = vpop.f32.mrf.mxu0
        %v1141 = vadd.f32 %v662, %v1140
        %v1142 = vpop.f32.mrf.mxu0
        %v1143 = vadd.f32 %v664, %v1142
        %v1144 = vpop.f32.mrf.mxu0
        %v1145 = vpop.f32.mrf.mxu0
        %1146 = vdwg.mxu0
        %1147 = vmatprep.subr.bf16.mxu0 0
        %1148 = vmatpush1.bf16.msra.mxu0 0
        %1149 = vmatprep.subr.bf16.mxu0 0
        %1150 = vmatpush1.bf16.msra.mxu0 0
        %1151 = vmatprep.subr.bf16.mxu0 0
        %1152 = vmatpush1.bf16.msra.mxu0 0
        %1153 = vmatprep.subr.bf16.mxu0 0
        %1154 = vmatpush1.bf16.msra.mxu0 0
        %1155 = vmatprep.subr.bf16.mxu0 0
        %1156 = vmatpush1.bf16.msra.mxu0 0
        %1157 = vmatprep.subr.bf16.mxu0 0
        %1158 = vmatpush1.bf16.msra.mxu0 0
        %1159 = vmatprep.subr.bf16.mxu0 0
        %1160 = vmatpush1.bf16.msra.mxu0 0
        %1161 = vmatprep.subr.bf16.mxu0 %v963
        %1162 = vmatpush1.bf16.msra.mxu0 %v960
        %1163 = vmatprep.subr.bf16.mxu0 0
        %1164 = vmatpush2.bf16.msra.mxu0 0
        %1165 = vmatprep.subr.bf16.mxu0 0
        %1166 = vmatpush2.bf16.msra.mxu0 0
        %1167 = vmatprep.subr.bf16.mxu0 0
        %1168 = vmatpush2.bf16.msra.mxu0 0
        %1169 = vmatprep.subr.bf16.mxu0 0
        %1170 = vmatpush2.bf16.msra.mxu0 0
        %1171 = vmatprep.subr.bf16.mxu0 0
        %1172 = vmatpush2.bf16.msra.mxu0 0
        %1173 = vmatprep.subr.bf16.mxu0 0
        %1174 = vmatpush2.bf16.msra.mxu0 0
        %1175 = vmatprep.subr.bf16.mxu0 0
        %1176 = vmatpush2.bf16.msra.mxu0 0
        %1177 = vmatprep.subr.bf16.mxu0 0
        %1178 = vmatpush2.bf16.msra.mxu0 0
        %1179 = vmatprep.mubr.bf16.mxu0 0
        %1180 = vmatmul.mubr.bf16.gmra.mxu0 %v933
        %v1181 = vpop.f32.mrf.mxu0
        %v1182 = vadd.f32 %v703, %v1181
        %v1183 = vpop.f32.mrf.mxu0
        %v1184 = vadd.f32 %v705, %v1183
        %v1185 = vpop.f32.mrf.mxu0
        %v1186 = vpop.f32.mrf.mxu0
        %1187 = vdwg.mxu0
        %1188 = vmatprep.subr.bf16.mxu0 0
        %1189 = vmatpush1.bf16.msra.mxu0 0
        %1190 = vmatprep.subr.bf16.mxu0 0
        %1191 = vmatpush1.bf16.msra.mxu0 0
        %1192 = vmatprep.subr.bf16.mxu0 0
        %1193 = vmatpush1.bf16.msra.mxu0 0
        %1194 = vmatprep.subr.bf16.mxu0 0
        %1195 = vmatpush1.bf16.msra.mxu0 0
        %1196 = vmatprep.subr.bf16.mxu0 0
        %1197 = vmatpush1.bf16.msra.mxu0 0
        %1198 = vmatprep.subr.bf16.mxu0 0
        %1199 = vmatpush1.bf16.msra.mxu0 0
        %1200 = vmatprep.subr.bf16.mxu0 0
        %1201 = vmatpush1.bf16.msra.mxu0 0
        %1202 = vmatprep.subr.bf16.mxu0 %v969
        %1203 = vmatpush1.bf16.msra.mxu0 %v966
        %1204 = vmatprep.subr.bf16.mxu0 0
        %1205 = vmatpush2.bf16.msra.mxu0 0
        %1206 = vmatprep.subr.bf16.mxu0 0
        %1207 = vmatpush2.bf16.msra.mxu0 0
        %1208 = vmatprep.subr.bf16.mxu0 0
        %1209 = vmatpush2.bf16.msra.mxu0 0
        %1210 = vmatprep.subr.bf16.mxu0 0
        %1211 = vmatpush2.bf16.msra.mxu0 0
        %1212 = vmatprep.subr.bf16.mxu0 0
        %1213 = vmatpush2.bf16.msra.mxu0 0
        %1214 = vmatprep.subr.bf16.mxu0 0
        %1215 = vmatpush2.bf16.msra.mxu0 0
        %1216 = vmatprep.subr.bf16.mxu0 0
        %1217 = vmatpush2.bf16.msra.mxu0 0
        %1218 = vmatprep.subr.bf16.mxu0 0
        %1219 = vmatpush2.bf16.msra.mxu0 0
        %1220 = vmatprep.mubr.bf16.mxu0 0
        %1221 = vmatmul.mubr.bf16.gmra.mxu0 %v933
        %v1222 = vpop.f32.mrf.mxu0
        %v1223 = vadd.f32 %v744, %v1222
        %v1224 = vpop.f32.mrf.mxu0
        %v1225 = vadd.f32 %v746, %v1224
        %v1226 = vpop.f32.mrf.mxu0
        %v1227 = vpop.f32.mrf.mxu0
        %1228 = vdwg.mxu0
        %1229 = vmatprep.subr.bf16.mxu0 0
        %1230 = vmatpush1.bf16.msra.mxu0 0
        %1231 = vmatprep.subr.bf16.mxu0 0
        %1232 = vmatpush1.bf16.msra.mxu0 0
        %1233 = vmatprep.subr.bf16.mxu0 0
        %1234 = vmatpush1.bf16.msra.mxu0 0
        %1235 = vmatprep.subr.bf16.mxu0 0
        %1236 = vmatpush1.bf16.msra.mxu0 0
        %1237 = vmatprep.subr.bf16.mxu0 0
        %1238 = vmatpush1.bf16.msra.mxu0 0
        %1239 = vmatprep.subr.bf16.mxu0 0
        %1240 = vmatpush1.bf16.msra.mxu0 0
        %1241 = vmatprep.subr.bf16.mxu0 0
        %1242 = vmatpush1.bf16.msra.mxu0 0
        %1243 = vmatprep.subr.bf16.mxu0 %v975
        %1244 = vmatpush1.bf16.msra.mxu0 %v972
        %1245 = vmatprep.subr.bf16.mxu0 0
        %1246 = vmatpush2.bf16.msra.mxu0 0
        %1247 = vmatprep.subr.bf16.mxu0 0
        %1248 = vmatpush2.bf16.msra.mxu0 0
        %1249 = vmatprep.subr.bf16.mxu0 0
        %1250 = vmatpush2.bf16.msra.mxu0 0
        %1251 = vmatprep.subr.bf16.mxu0 0
        %1252 = vmatpush2.bf16.msra.mxu0 0
        %1253 = vmatprep.subr.bf16.mxu0 0
        %1254 = vmatpush2.bf16.msra.mxu0 0
        %1255 = vmatprep.subr.bf16.mxu0 0
        %1256 = vmatpush2.bf16.msra.mxu0 0
        %1257 = vmatprep.subr.bf16.mxu0 0
        %1258 = vmatpush2.bf16.msra.mxu0 0
        %1259 = vmatprep.subr.bf16.mxu0 0
        %1260 = vmatpush2.bf16.msra.mxu0 0
        %1261 = vmatprep.mubr.bf16.mxu0 0
        %1262 = vmatmul.mubr.bf16.gmra.mxu0 %v933
        %v1263 = vpop.f32.mrf.mxu0
        %v1264 = vadd.f32 %v785, %v1263
        %v1265 = vpop.f32.mrf.mxu0
        %v1266 = vadd.f32 %v787, %v1265
        %v1267 = vpop.f32.mrf.mxu0
        %v1268 = vpop.f32.mrf.mxu0
        %1269 = vdwg.mxu0
        %1270 = vmatprep.subr.bf16.mxu0 0
        %1271 = vmatpush1.bf16.msra.mxu0 0
        %1272 = vmatprep.subr.bf16.mxu0 0
        %1273 = vmatpush1.bf16.msra.mxu0 0
        %1274 = vmatprep.subr.bf16.mxu0 0
        %1275 = vmatpush1.bf16.msra.mxu0 0
        %1276 = vmatprep.subr.bf16.mxu0 0
        %1277 = vmatpush1.bf16.msra.mxu0 0
        %1278 = vmatprep.subr.bf16.mxu0 0
        %1279 = vmatpush1.bf16.msra.mxu0 0
        %1280 = vmatprep.subr.bf16.mxu0 0
        %1281 = vmatpush1.bf16.msra.mxu0 0
        %1282 = vmatprep.subr.bf16.mxu0 0
        %1283 = vmatpush1.bf16.msra.mxu0 0
        %1284 = vmatprep.subr.bf16.mxu0 %v981
        %1285 = vmatpush1.bf16.msra.mxu0 %v978
        %1286 = vmatprep.subr.bf16.mxu0 0
        %1287 = vmatpush2.bf16.msra.mxu0 0
        %1288 = vmatprep.subr.bf16.mxu0 0
        %1289 = vmatpush2.bf16.msra.mxu0 0
        %1290 = vmatprep.subr.bf16.mxu0 0
        %1291 = vmatpush2.bf16.msra.mxu0 0
        %1292 = vmatprep.subr.bf16.mxu0 0
        %1293 = vmatpush2.bf16.msra.mxu0 0
        %1294 = vmatprep.subr.bf16.mxu0 0
        %1295 = vmatpush2.bf16.msra.mxu0 0
        %1296 = vmatprep.subr.bf16.mxu0 0
        %1297 = vmatpush2.bf16.msra.mxu0 0
        %1298 = vmatprep.subr.bf16.mxu0 0
        %1299 = vmatpush2.bf16.msra.mxu0 0
        %1300 = vmatprep.subr.bf16.mxu0 0
        %1301 = vmatpush2.bf16.msra.mxu0 0
        %1302 = vmatprep.mubr.bf16.mxu0 0
        %1303 = vmatmul.mubr.bf16.gmra.mxu0 %v933
        %v1304 = vpop.f32.mrf.mxu0
        %v1305 = vadd.f32 %v826, %v1304
        %v1306 = vpop.f32.mrf.mxu0
        %v1307 = vadd.f32 %v828, %v1306
        %v1308 = vpop.f32.mrf.mxu0
        %v1309 = vpop.f32.mrf.mxu0
        %1310 = vdwg.mxu0
        %s1311 = scalar_lea.vmem %s2, 8
        %v1312 = vld [vmem:[%s1311] sm:$0xf]
        %v1313 = vld [vmem:[%s332] sm:$0xff]
        %v1314 = vld [vmem:[%s332 + $0x8] sm:$0xff]
        %v1315 = vld [vmem:[%s332 + $0x10] sm:$0x1]
        %v1319 = vcombine.high %v1313, %v1313
        %v1321 = vunpack.c.l.s4 1966171168
        %v1322 = vunpack.c.0.s8 %v1321
        %v1323 = vlaneseq
        %v1324 = vshrl.u32 %v1323, 7
        %v1325 = vsub.s32 %v1322, %v1324
        %v1326 = vrot.slane %v1313, %v1325
        %v1328 = vunpack.c.l.s4 1966171168
        %v1329 = vunpack.c.0.s8 %v1328
        %v1330 = vlaneseq
        %v1331 = vshrl.u32 %v1330, 7
        %v1332 = vsub.s32 %v1329, %v1331
        %v1333 = vrot.slane %v1319, %v1332
        %v1334 = vcombine.high %v1326, %v1326
        %v1335 = vcombine.high %v1333, %v1333
        %v1337 = vunpack.c.l.s4 1966171168
        %v1338 = vunpack.c.0.s8 %v1337
        %v1339 = vlaneseq
        %v1340 = vshrl.u32 %v1339, 7
        %v1341 = vsub.s32 %v1338, %v1340
        %v1342 = vrot.slane %v1326, %v1341
        %v1344 = vunpack.c.l.s4 1966171168
        %v1345 = vunpack.c.0.s8 %v1344
        %v1346 = vlaneseq
        %v1347 = vshrl.u32 %v1346, 7
        %v1348 = vsub.s32 %v1345, %v1347
        %v1349 = vrot.slane %v1333, %v1348
        %v1351 = vunpack.c.l.s4 1966171168
        %v1352 = vunpack.c.0.s8 %v1351
        %v1353 = vlaneseq
        %v1354 = vshrl.u32 %v1353, 7
        %v1355 = vsub.s32 %v1352, %v1354
        %v1356 = vrot.slane %v1334, %v1355
        %v1358 = vunpack.c.l.s4 1966171168
        %v1359 = vunpack.c.0.s8 %v1358
        %v1360 = vlaneseq
        %v1361 = vshrl.u32 %v1360, 7
        %v1362 = vsub.s32 %v1359, %v1361
        %v1363 = vrot.slane %v1335, %v1362
        %v1364 = vcombine.high %v1342, %v1342
        %v1365 = vcombine.high %v1349, %v1349
        %v1366 = vcombine.high %v1356, %v1356
        %v1367 = vcombine.high %v1363, %v1363
        %v1368 = vcombine.high %v1314, %v1314
        %v1370 = vunpack.c.l.s4 1966171168
        %v1371 = vunpack.c.0.s8 %v1370
        %v1372 = vlaneseq
        %v1373 = vshrl.u32 %v1372, 7
        %v1374 = vsub.s32 %v1371, %v1373
        %v1375 = vrot.slane %v1314, %v1374
        %v1377 = vunpack.c.l.s4 1966171168
        %v1378 = vunpack.c.0.s8 %v1377
        %v1379 = vlaneseq
        %v1380 = vshrl.u32 %v1379, 7
        %v1381 = vsub.s32 %v1378, %v1380
        %v1382 = vrot.slane %v1368, %v1381
        %v1383 = vcombine.high %v1375, %v1375
        %v1384 = vcombine.high %v1382, %v1382
        %v1386 = vunpack.c.l.s4 1966171168
        %v1387 = vunpack.c.0.s8 %v1386
        %v1388 = vlaneseq
        %v1389 = vshrl.u32 %v1388, 7
        %v1390 = vsub.s32 %v1387, %v1389
        %v1391 = vrot.slane %v1375, %v1390
        %v1393 = vunpack.c.l.s4 1966171168
        %v1394 = vunpack.c.0.s8 %v1393
        %v1395 = vlaneseq
        %v1396 = vshrl.u32 %v1395, 7
        %v1397 = vsub.s32 %v1394, %v1396
        %v1398 = vrot.slane %v1382, %v1397
        %v1400 = vunpack.c.l.s4 1966171168
        %v1401 = vunpack.c.0.s8 %v1400
        %v1402 = vlaneseq
        %v1403 = vshrl.u32 %v1402, 7
        %v1404 = vsub.s32 %v1401, %v1403
        %v1405 = vrot.slane %v1383, %v1404
        %v1407 = vunpack.c.l.s4 1966171168
        %v1408 = vunpack.c.0.s8 %v1407
        %v1409 = vlaneseq
        %v1410 = vshrl.u32 %v1409, 7
        %v1411 = vsub.s32 %v1408, %v1410
        %v1412 = vrot.slane %v1384, %v1411
        %v1413 = vcombine.high %v1391, %v1391
        %v1414 = vcombine.high %v1398, %v1398
        %v1415 = vcombine.high %v1405, %v1405
        %v1416 = vcombine.high %v1412, %v1412
        %v1418 = vunpack.c.l.s4 1966171168
        %v1419 = vunpack.c.0.s8 %v1418
        %v1420 = vlaneseq
        %v1421 = vshrl.u32 %v1420, 7
        %v1422 = vsub.s32 %v1419, %v1421
        %v1423 = vrot.slane %v1315, %v1422
        %v1425 = vunpack.c.l.s4 1966171168
        %v1426 = vunpack.c.0.s8 %v1425
        %v1427 = vlaneseq
        %v1428 = vshrl.u32 %v1427, 7
        %v1429 = vsub.s32 %v1426, %v1428
        %v1430 = vrot.slane %v1423, %v1429
        %1431 = vrot.lane.b32.xlu0 %v1342, 127
        %v1432 = vpop.permute.xlu0 %1431
        %1433 = vrot.lane.b32.xlu0 %v1356, 127
        %v1434 = vpop.permute.xlu0 %1433
        %1435 = vrot.lane.b32.xlu0 %v1364, 127
        %v1436 = vpop.permute.xlu0 %1435
        %1437 = vrot.lane.b32.xlu0 %v1366, 127
        %v1438 = vpop.permute.xlu0 %1437
        %1439 = vrot.lane.b32.xlu0 %v1349, 127
        %v1440 = vpop.permute.xlu0 %1439
        %1441 = vrot.lane.b32.xlu0 %v1363, 127
        %v1442 = vpop.permute.xlu0 %1441
        %1443 = vrot.lane.b32.xlu0 %v1365, 127
        %v1444 = vpop.permute.xlu0 %1443
        %1445 = vrot.lane.b32.xlu0 %v1367, 127
        %v1446 = vpop.permute.xlu0 %1445
        %1447 = vrot.lane.b32.xlu0 %v1391, 127
        %v1448 = vpop.permute.xlu0 %1447
        %1449 = vrot.lane.b32.xlu0 %v1405, 127
        %v1450 = vpop.permute.xlu0 %1449
        %1451 = vrot.lane.b32.xlu0 %v1413, 127
        %v1452 = vpop.permute.xlu0 %1451
        %1453 = vrot.lane.b32.xlu0 %v1415, 127
        %v1454 = vpop.permute.xlu0 %1453
        %1455 = vrot.lane.b32.xlu0 %v1398, 127
        %v1456 = vpop.permute.xlu0 %1455
        %1457 = vrot.lane.b32.xlu0 %v1412, 127
        %v1458 = vpop.permute.xlu0 %1457
        %1459 = vrot.lane.b32.xlu0 %v1414, 127
        %v1460 = vpop.permute.xlu0 %1459
        %1461 = vrot.lane.b32.xlu0 %v1416, 127
        %v1462 = vpop.permute.xlu0 %1461
        %1463 = vrot.lane.b32.xlu0 %v1430, 127
        %v1464 = vpop.permute.xlu0 %1463
        %vm1465 = vcmask 1039360
        %v1466 = vsel %vm1465, %v1432, %v1434
        %v1467 = vsel %vm1465, %v1434, %v1436
        %v1468 = vsel %vm1465, %v1436, %v1438
        %v1469 = vsel %vm1465, %v1438, %v1440
        %v1470 = vsel %vm1465, %v1440, %v1442
        %v1471 = vsel %vm1465, %v1442, %v1444
        %v1472 = vsel %vm1465, %v1444, %v1446
        %v1473 = vsel %vm1465, %v1446, %v1448
        %v1474 = vsel %vm1465, %v1448, %v1450
        %v1475 = vsel %vm1465, %v1450, %v1452
        %v1476 = vsel %vm1465, %v1452, %v1454
        %v1477 = vsel %vm1465, %v1454, %v1456
        %v1478 = vsel %vm1465, %v1456, %v1458
        %v1479 = vsel %vm1465, %v1458, %v1460
        %v1480 = vsel %vm1465, %v1460, %v1462
        %v1481 = vsel %vm1465, %v1462, %v1464
        %v1483 = vsel %vm451, %v1312, 0
        %v1486 = vsel %vm455, %v1466, 0
        %v1489 = vsel %vm455, %v1467, 0
        %v1492 = vsel %vm455, %v1468, 0
        %v1495 = vsel %vm455, %v1469, 0
        %v1498 = vsel %vm455, %v1470, 0
        %v1501 = vsel %vm455, %v1471, 0
        %v1504 = vsel %vm455, %v1472, 0
        %v1507 = vsel %vm455, %v1473, 0
        %v1510 = vsel %vm455, %v1474, 0
        %v1513 = vsel %vm455, %v1475, 0
        %v1516 = vsel %vm455, %v1476, 0
        %v1519 = vsel %vm455, %v1477, 0
        %v1522 = vsel %vm455, %v1478, 0
        %v1525 = vsel %vm455, %v1479, 0
        %v1528 = vsel %vm455, %v1480, 0
        %v1531 = vsel %vm455, %v1481, 0
        %1533 = vmatprep.subr.bf16.mxu0 0
        %1534 = vmatpush1.bf16.msra.mxu0 0
        %1535 = vmatprep.subr.bf16.mxu0 0
        %1536 = vmatpush1.bf16.msra.mxu0 0
        %1537 = vmatprep.subr.bf16.mxu0 0
        %1538 = vmatpush1.bf16.msra.mxu0 0
        %1539 = vmatprep.subr.bf16.mxu0 0
        %1540 = vmatpush1.bf16.msra.mxu0 0
        %1541 = vmatprep.subr.bf16.mxu0 0
        %1542 = vmatpush1.bf16.msra.mxu0 0
        %1543 = vmatprep.subr.bf16.mxu0 0
        %1544 = vmatpush1.bf16.msra.mxu0 0
        %1545 = vmatprep.subr.bf16.mxu0 0
        %1546 = vmatpush1.bf16.msra.mxu0 0
        %1547 = vmatprep.subr.bf16.mxu0 %v1489
        %1548 = vmatpush1.bf16.msra.mxu0 %v1486
        %1549 = vmatprep.subr.bf16.mxu0 0
        %1550 = vmatpush2.bf16.msra.mxu0 0
        %1551 = vmatprep.subr.bf16.mxu0 0
        %1552 = vmatpush2.bf16.msra.mxu0 0
        %1553 = vmatprep.subr.bf16.mxu0 0
        %1554 = vmatpush2.bf16.msra.mxu0 0
        %1555 = vmatprep.subr.bf16.mxu0 0
        %1556 = vmatpush2.bf16.msra.mxu0 0
        %1557 = vmatprep.subr.bf16.mxu0 0
        %1558 = vmatpush2.bf16.msra.mxu0 0
        %1559 = vmatprep.subr.bf16.mxu0 0
        %1560 = vmatpush2.bf16.msra.mxu0 0
        %1561 = vmatprep.subr.bf16.mxu0 0
        %1562 = vmatpush2.bf16.msra.mxu0 0
        %1563 = vmatprep.subr.bf16.mxu0 0
        %1564 = vmatpush2.bf16.msra.mxu0 0
        %1565 = vmatprep.mubr.bf16.mxu0 0
        %1566 = vmatmul.mubr.bf16.gmra.mxu0 %v1483
        %v1567 = vpop.f32.mrf.mxu0
        %v1568 = vadd.f32 0.0, %v1567
        %v1569 = vpop.f32.mrf.mxu0
        %v1570 = vadd.f32 0.0, %v1569
        %v1571 = vpop.f32.mrf.mxu0
        %v1572 = vpop.f32.mrf.mxu0
        %1573 = vdwg.mxu0
        %1574 = vmatprep.subr.bf16.mxu0 0
        %1575 = vmatpush1.bf16.msra.mxu0 0
        %1576 = vmatprep.subr.bf16.mxu0 0
        %1577 = vmatpush1.bf16.msra.mxu0 0
        %1578 = vmatprep.subr.bf16.mxu0 0
        %1579 = vmatpush1.bf16.msra.mxu0 0
        %1580 = vmatprep.subr.bf16.mxu0 0
        %1581 = vmatpush1.bf16.msra.mxu0 0
        %1582 = vmatprep.subr.bf16.mxu0 0
        %1583 = vmatpush1.bf16.msra.mxu0 0
        %1584 = vmatprep.subr.bf16.mxu0 0
        %1585 = vmatpush1.bf16.msra.mxu0 0
        %1586 = vmatprep.subr.bf16.mxu0 0
        %1587 = vmatpush1.bf16.msra.mxu0 0
        %1588 = vmatprep.subr.bf16.mxu0 %v1495
        %1589 = vmatpush1.bf16.msra.mxu0 %v1492
        %1590 = vmatprep.subr.bf16.mxu0 0
        %1591 = vmatpush2.bf16.msra.mxu0 0
        %1592 = vmatprep.subr.bf16.mxu0 0
        %1593 = vmatpush2.bf16.msra.mxu0 0
        %1594 = vmatprep.subr.bf16.mxu0 0
        %1595 = vmatpush2.bf16.msra.mxu0 0
        %1596 = vmatprep.subr.bf16.mxu0 0
        %1597 = vmatpush2.bf16.msra.mxu0 0
        %1598 = vmatprep.subr.bf16.mxu0 0
        %1599 = vmatpush2.bf16.msra.mxu0 0
        %1600 = vmatprep.subr.bf16.mxu0 0
        %1601 = vmatpush2.bf16.msra.mxu0 0
        %1602 = vmatprep.subr.bf16.mxu0 0
        %1603 = vmatpush2.bf16.msra.mxu0 0
        %1604 = vmatprep.subr.bf16.mxu0 0
        %1605 = vmatpush2.bf16.msra.mxu0 0
        %1606 = vmatprep.mubr.bf16.mxu0 0
        %1607 = vmatmul.mubr.bf16.gmra.mxu0 %v1483
        %v1608 = vpop.f32.mrf.mxu0
        %v1609 = vadd.f32 0.0, %v1608
        %v1610 = vpop.f32.mrf.mxu0
        %v1611 = vadd.f32 0.0, %v1610
        %v1612 = vpop.f32.mrf.mxu0
        %v1613 = vpop.f32.mrf.mxu0
        %1614 = vdwg.mxu0
        %1615 = vmatprep.subr.bf16.mxu0 0
        %1616 = vmatpush1.bf16.msra.mxu0 0
        %1617 = vmatprep.subr.bf16.mxu0 0
        %1618 = vmatpush1.bf16.msra.mxu0 0
        %1619 = vmatprep.subr.bf16.mxu0 0
        %1620 = vmatpush1.bf16.msra.mxu0 0
        %1621 = vmatprep.subr.bf16.mxu0 0
        %1622 = vmatpush1.bf16.msra.mxu0 0
        %1623 = vmatprep.subr.bf16.mxu0 0
        %1624 = vmatpush1.bf16.msra.mxu0 0
        %1625 = vmatprep.subr.bf16.mxu0 0
        %1626 = vmatpush1.bf16.msra.mxu0 0
        %1627 = vmatprep.subr.bf16.mxu0 0
        %1628 = vmatpush1.bf16.msra.mxu0 0
        %1629 = vmatprep.subr.bf16.mxu0 %v1501
        %1630 = vmatpush1.bf16.msra.mxu0 %v1498
        %1631 = vmatprep.subr.bf16.mxu0 0
        %1632 = vmatpush2.bf16.msra.mxu0 0
        %1633 = vmatprep.subr.bf16.mxu0 0
        %1634 = vmatpush2.bf16.msra.mxu0 0
        %1635 = vmatprep.subr.bf16.mxu0 0
        %1636 = vmatpush2.bf16.msra.mxu0 0
        %1637 = vmatprep.subr.bf16.mxu0 0
        %1638 = vmatpush2.bf16.msra.mxu0 0
        %1639 = vmatprep.subr.bf16.mxu0 0
        %1640 = vmatpush2.bf16.msra.mxu0 0
        %1641 = vmatprep.subr.bf16.mxu0 0
        %1642 = vmatpush2.bf16.msra.mxu0 0
        %1643 = vmatprep.subr.bf16.mxu0 0
        %1644 = vmatpush2.bf16.msra.mxu0 0
        %1645 = vmatprep.subr.bf16.mxu0 0
        %1646 = vmatpush2.bf16.msra.mxu0 0
        %1647 = vmatprep.mubr.bf16.mxu0 0
        %1648 = vmatmul.mubr.bf16.gmra.mxu0 %v1483
        %v1649 = vpop.f32.mrf.mxu0
        %v1650 = vadd.f32 0.0, %v1649
        %v1651 = vpop.f32.mrf.mxu0
        %v1652 = vadd.f32 0.0, %v1651
        %v1653 = vpop.f32.mrf.mxu0
        %v1654 = vpop.f32.mrf.mxu0
        %1655 = vdwg.mxu0
        %1656 = vmatprep.subr.bf16.mxu0 0
        %1657 = vmatpush1.bf16.msra.mxu0 0
        %1658 = vmatprep.subr.bf16.mxu0 0
        %1659 = vmatpush1.bf16.msra.mxu0 0
        %1660 = vmatprep.subr.bf16.mxu0 0
        %1661 = vmatpush1.bf16.msra.mxu0 0
        %1662 = vmatprep.subr.bf16.mxu0 0
        %1663 = vmatpush1.bf16.msra.mxu0 0
        %1664 = vmatprep.subr.bf16.mxu0 0
        %1665 = vmatpush1.bf16.msra.mxu0 0
        %1666 = vmatprep.subr.bf16.mxu0 0
        %1667 = vmatpush1.bf16.msra.mxu0 0
        %1668 = vmatprep.subr.bf16.mxu0 0
        %1669 = vmatpush1.bf16.msra.mxu0 0
        %1670 = vmatprep.subr.bf16.mxu0 %v1507
        %1671 = vmatpush1.bf16.msra.mxu0 %v1504
        %1672 = vmatprep.subr.bf16.mxu0 0
        %1673 = vmatpush2.bf16.msra.mxu0 0
        %1674 = vmatprep.subr.bf16.mxu0 0
        %1675 = vmatpush2.bf16.msra.mxu0 0
        %1676 = vmatprep.subr.bf16.mxu0 0
        %1677 = vmatpush2.bf16.msra.mxu0 0
        %1678 = vmatprep.subr.bf16.mxu0 0
        %1679 = vmatpush2.bf16.msra.mxu0 0
        %1680 = vmatprep.subr.bf16.mxu0 0
        %1681 = vmatpush2.bf16.msra.mxu0 0
        %1682 = vmatprep.subr.bf16.mxu0 0
        %1683 = vmatpush2.bf16.msra.mxu0 0
        %1684 = vmatprep.subr.bf16.mxu0 0
        %1685 = vmatpush2.bf16.msra.mxu0 0
        %1686 = vmatprep.subr.bf16.mxu0 0
        %1687 = vmatpush2.bf16.msra.mxu0 0
        %1688 = vmatprep.mubr.bf16.mxu0 0
        %1689 = vmatmul.mubr.bf16.gmra.mxu0 %v1483
        %v1690 = vpop.f32.mrf.mxu0
        %v1691 = vadd.f32 0.0, %v1690
        %v1692 = vpop.f32.mrf.mxu0
        %v1693 = vadd.f32 0.0, %v1692
        %v1694 = vpop.f32.mrf.mxu0
        %v1695 = vpop.f32.mrf.mxu0
        %1696 = vdwg.mxu0
        %1697 = vmatprep.subr.bf16.mxu0 0
        %1698 = vmatpush1.bf16.msra.mxu0 0
        %1699 = vmatprep.subr.bf16.mxu0 0
        %1700 = vmatpush1.bf16.msra.mxu0 0
        %1701 = vmatprep.subr.bf16.mxu0 0
        %1702 = vmatpush1.bf16.msra.mxu0 0
        %1703 = vmatprep.subr.bf16.mxu0 0
        %1704 = vmatpush1.bf16.msra.mxu0 0
        %1705 = vmatprep.subr.bf16.mxu0 0
        %1706 = vmatpush1.bf16.msra.mxu0 0
        %1707 = vmatprep.subr.bf16.mxu0 0
        %1708 = vmatpush1.bf16.msra.mxu0 0
        %1709 = vmatprep.subr.bf16.mxu0 0
        %1710 = vmatpush1.bf16.msra.mxu0 0
        %1711 = vmatprep.subr.bf16.mxu0 %v1513
        %1712 = vmatpush1.bf16.msra.mxu0 %v1510
        %1713 = vmatprep.subr.bf16.mxu0 0
        %1714 = vmatpush2.bf16.msra.mxu0 0
        %1715 = vmatprep.subr.bf16.mxu0 0
        %1716 = vmatpush2.bf16.msra.mxu0 0
        %1717 = vmatprep.subr.bf16.mxu0 0
        %1718 = vmatpush2.bf16.msra.mxu0 0
        %1719 = vmatprep.subr.bf16.mxu0 0
        %1720 = vmatpush2.bf16.msra.mxu0 0
        %1721 = vmatprep.subr.bf16.mxu0 0
        %1722 = vmatpush2.bf16.msra.mxu0 0
        %1723 = vmatprep.subr.bf16.mxu0 0
        %1724 = vmatpush2.bf16.msra.mxu0 0
        %1725 = vmatprep.subr.bf16.mxu0 0
        %1726 = vmatpush2.bf16.msra.mxu0 0
        %1727 = vmatprep.subr.bf16.mxu0 0
        %1728 = vmatpush2.bf16.msra.mxu0 0
        %1729 = vmatprep.mubr.bf16.mxu0 0
        %1730 = vmatmul.mubr.bf16.gmra.mxu0 %v1483
        %v1731 = vpop.f32.mrf.mxu0
        %v1732 = vadd.f32 0.0, %v1731
        %v1733 = vpop.f32.mrf.mxu0
        %v1734 = vadd.f32 0.0, %v1733
        %v1735 = vpop.f32.mrf.mxu0
        %v1736 = vpop.f32.mrf.mxu0
        %1737 = vdwg.mxu0
        %1738 = vmatprep.subr.bf16.mxu0 0
        %1739 = vmatpush1.bf16.msra.mxu0 0
        %1740 = vmatprep.subr.bf16.mxu0 0
        %1741 = vmatpush1.bf16.msra.mxu0 0
        %1742 = vmatprep.subr.bf16.mxu0 0
        %1743 = vmatpush1.bf16.msra.mxu0 0
        %1744 = vmatprep.subr.bf16.mxu0 0
        %1745 = vmatpush1.bf16.msra.mxu0 0
        %1746 = vmatprep.subr.bf16.mxu0 0
        %1747 = vmatpush1.bf16.msra.mxu0 0
        %1748 = vmatprep.subr.bf16.mxu0 0
        %1749 = vmatpush1.bf16.msra.mxu0 0
        %1750 = vmatprep.subr.bf16.mxu0 0
        %1751 = vmatpush1.bf16.msra.mxu0 0
        %1752 = vmatprep.subr.bf16.mxu0 %v1519
        %1753 = vmatpush1.bf16.msra.mxu0 %v1516
        %1754 = vmatprep.subr.bf16.mxu0 0
        %1755 = vmatpush2.bf16.msra.mxu0 0
        %1756 = vmatprep.subr.bf16.mxu0 0
        %1757 = vmatpush2.bf16.msra.mxu0 0
        %1758 = vmatprep.subr.bf16.mxu0 0
        %1759 = vmatpush2.bf16.msra.mxu0 0
        %1760 = vmatprep.subr.bf16.mxu0 0
        %1761 = vmatpush2.bf16.msra.mxu0 0
        %1762 = vmatprep.subr.bf16.mxu0 0
        %1763 = vmatpush2.bf16.msra.mxu0 0
        %1764 = vmatprep.subr.bf16.mxu0 0
        %1765 = vmatpush2.bf16.msra.mxu0 0
        %1766 = vmatprep.subr.bf16.mxu0 0
        %1767 = vmatpush2.bf16.msra.mxu0 0
        %1768 = vmatprep.subr.bf16.mxu0 0
        %1769 = vmatpush2.bf16.msra.mxu0 0
        %1770 = vmatprep.mubr.bf16.mxu0 0
        %1771 = vmatmul.mubr.bf16.gmra.mxu0 %v1483
        %v1772 = vpop.f32.mrf.mxu0
        %v1773 = vadd.f32 0.0, %v1772
        %v1774 = vpop.f32.mrf.mxu0
        %v1775 = vadd.f32 0.0, %v1774
        %v1776 = vpop.f32.mrf.mxu0
        %v1777 = vpop.f32.mrf.mxu0
        %1778 = vdwg.mxu0
        %1779 = vmatprep.subr.bf16.mxu0 0
        %1780 = vmatpush1.bf16.msra.mxu0 0
        %1781 = vmatprep.subr.bf16.mxu0 0
        %1782 = vmatpush1.bf16.msra.mxu0 0
        %1783 = vmatprep.subr.bf16.mxu0 0
        %1784 = vmatpush1.bf16.msra.mxu0 0
        %1785 = vmatprep.subr.bf16.mxu0 0
        %1786 = vmatpush1.bf16.msra.mxu0 0
        %1787 = vmatprep.subr.bf16.mxu0 0
        %1788 = vmatpush1.bf16.msra.mxu0 0
        %1789 = vmatprep.subr.bf16.mxu0 0
        %1790 = vmatpush1.bf16.msra.mxu0 0
        %1791 = vmatprep.subr.bf16.mxu0 0
        %1792 = vmatpush1.bf16.msra.mxu0 0
        %1793 = vmatprep.subr.bf16.mxu0 %v1525
        %1794 = vmatpush1.bf16.msra.mxu0 %v1522
        %1795 = vmatprep.subr.bf16.mxu0 0
        %1796 = vmatpush2.bf16.msra.mxu0 0
        %1797 = vmatprep.subr.bf16.mxu0 0
        %1798 = vmatpush2.bf16.msra.mxu0 0
        %1799 = vmatprep.subr.bf16.mxu0 0
        %1800 = vmatpush2.bf16.msra.mxu0 0
        %1801 = vmatprep.subr.bf16.mxu0 0
        %1802 = vmatpush2.bf16.msra.mxu0 0
        %1803 = vmatprep.subr.bf16.mxu0 0
        %1804 = vmatpush2.bf16.msra.mxu0 0
        %1805 = vmatprep.subr.bf16.mxu0 0
        %1806 = vmatpush2.bf16.msra.mxu0 0
        %1807 = vmatprep.subr.bf16.mxu0 0
        %1808 = vmatpush2.bf16.msra.mxu0 0
        %1809 = vmatprep.subr.bf16.mxu0 0
        %1810 = vmatpush2.bf16.msra.mxu0 0
        %1811 = vmatprep.mubr.bf16.mxu0 0
        %1812 = vmatmul.mubr.bf16.gmra.mxu0 %v1483
        %v1813 = vpop.f32.mrf.mxu0
        %v1814 = vadd.f32 0.0, %v1813
        %v1815 = vpop.f32.mrf.mxu0
        %v1816 = vadd.f32 0.0, %v1815
        %v1817 = vpop.f32.mrf.mxu0
        %v1818 = vpop.f32.mrf.mxu0
        %1819 = vdwg.mxu0
        %1820 = vmatprep.subr.bf16.mxu0 0
        %1821 = vmatpush1.bf16.msra.mxu0 0
        %1822 = vmatprep.subr.bf16.mxu0 0
        %1823 = vmatpush1.bf16.msra.mxu0 0
        %1824 = vmatprep.subr.bf16.mxu0 0
        %1825 = vmatpush1.bf16.msra.mxu0 0
        %1826 = vmatprep.subr.bf16.mxu0 0
        %1827 = vmatpush1.bf16.msra.mxu0 0
        %1828 = vmatprep.subr.bf16.mxu0 0
        %1829 = vmatpush1.bf16.msra.mxu0 0
        %1830 = vmatprep.subr.bf16.mxu0 0
        %1831 = vmatpush1.bf16.msra.mxu0 0
        %1832 = vmatprep.subr.bf16.mxu0 0
        %1833 = vmatpush1.bf16.msra.mxu0 0
        %1834 = vmatprep.subr.bf16.mxu0 %v1531
        %1835 = vmatpush1.bf16.msra.mxu0 %v1528
        %1836 = vmatprep.subr.bf16.mxu0 0
        %1837 = vmatpush2.bf16.msra.mxu0 0
        %1838 = vmatprep.subr.bf16.mxu0 0
        %1839 = vmatpush2.bf16.msra.mxu0 0
        %1840 = vmatprep.subr.bf16.mxu0 0
        %1841 = vmatpush2.bf16.msra.mxu0 0
        %1842 = vmatprep.subr.bf16.mxu0 0
        %1843 = vmatpush2.bf16.msra.mxu0 0
        %1844 = vmatprep.subr.bf16.mxu0 0
        %1845 = vmatpush2.bf16.msra.mxu0 0
        %1846 = vmatprep.subr.bf16.mxu0 0
        %1847 = vmatpush2.bf16.msra.mxu0 0
        %1848 = vmatprep.subr.bf16.mxu0 0
        %1849 = vmatpush2.bf16.msra.mxu0 0
        %1850 = vmatprep.subr.bf16.mxu0 0
        %1851 = vmatpush2.bf16.msra.mxu0 0
        %1852 = vmatprep.mubr.bf16.mxu0 0
        %1853 = vmatmul.mubr.bf16.gmra.mxu0 %v1483
        %v1854 = vpop.f32.mrf.mxu0
        %v1855 = vadd.f32 0.0, %v1854
        %v1856 = vpop.f32.mrf.mxu0
        %v1857 = vadd.f32 0.0, %v1856
        %v1858 = vpop.f32.mrf.mxu0
        %v1859 = vpop.f32.mrf.mxu0
        %1860 = vdwg.mxu0
        %v1861 = vadd.f32 %v1018, %v1568
        %v1862 = vadd.f32 %v1020, %v1570
        %v1863 = vadd.f32 %v1059, %v1609
        %v1864 = vadd.f32 %v1061, %v1611
        %v1865 = vadd.f32 %v1100, %v1650
        %v1866 = vadd.f32 %v1102, %v1652
        %v1867 = vadd.f32 %v1141, %v1691
        %v1868 = vadd.f32 %v1143, %v1693
        %v1869 = vadd.f32 %v1182, %v1732
        %v1870 = vadd.f32 %v1184, %v1734
        %v1871 = vadd.f32 %v1223, %v1773
        %v1872 = vadd.f32 %v1225, %v1775
        %v1873 = vadd.f32 %v1264, %v1814
        %v1874 = vadd.f32 %v1266, %v1816
        %v1875 = vadd.f32 %v1305, %v1855
        %v1876 = vadd.f32 %v1307, %v1857
        %v1877 = vld [vmem:[%s3] sm:$0xff]
        %1879 = vset.pattern.permute.xlu0 0
        %1880 = vperm.xlu0 %1879, %v1877
        %v1881 = vpop.permute.xlu0 %1880
        %v1883 = vadd.f32 %v1861, %v1881
        %v1884 = vadd.f32 %v1862, %v1881
        %v1885 = vadd.f32 %v1863, %v1881
        %v1886 = vadd.f32 %v1864, %v1881
        %v1887 = vadd.f32 %v1865, %v1881
        %v1888 = vadd.f32 %v1866, %v1881
        %v1889 = vadd.f32 %v1867, %v1881
        %v1890 = vadd.f32 %v1868, %v1881
        %v1891 = vadd.f32 %v1869, %v1881
        %v1892 = vadd.f32 %v1870, %v1881
        %v1893 = vadd.f32 %v1871, %v1881
        %v1894 = vadd.f32 %v1872, %v1881
        %v1895 = vadd.f32 %v1873, %v1881
        %v1896 = vadd.f32 %v1874, %v1881
        %v1897 = vadd.f32 %v1875, %v1881
        %v1898 = vadd.f32 %v1876, %v1881
        %v1899 = vtanh.pop %v1883
        %v1900 = vtanh.pop %v1884
        %v1901 = vtanh.pop %v1885
        %v1902 = vtanh.pop %v1886
        %v1903 = vtanh.pop %v1887
        %v1904 = vtanh.pop %v1888
        %v1905 = vtanh.pop %v1889
        %v1906 = vtanh.pop %v1890
        %v1907 = vtanh.pop %v1891
        %v1908 = vtanh.pop %v1892
        %v1909 = vtanh.pop %v1893
        %v1910 = vtanh.pop %v1894
        %v1911 = vtanh.pop %v1895
        %v1912 = vtanh.pop %v1896
        %v1913 = vtanh.pop %v1897
        %v1914 = vtanh.pop %v1898
        %1915 = vst [vmem:[%s310] sm:$0xff] %v1899
        %1916 = vst [vmem:[%s310 + $0x8] sm:$0xff] %v1900
        %1917 = vst [vmem:[%s310 + $0x10] sm:$0xff] %v1901
        %1918 = vst [vmem:[%s310 + $0x18] sm:$0xff] %v1902
        %1919 = vst [vmem:[%s310 + $0x20] sm:$0xff] %v1903
        %1920 = vst [vmem:[%s310 + $0x28] sm:$0xff] %v1904
        %1921 = vst [vmem:[%s310 + $0x30] sm:$0xff] %v1905
        %1922 = vst [vmem:[%s310 + $0x38] sm:$0xff] %v1906
        %1923 = vst [vmem:[%s310 + $0x40] sm:$0xff] %v1907
        %1924 = vst [vmem:[%s310 + $0x48] sm:$0xff] %v1908
        %1925 = vst [vmem:[%s310 + $0x50] sm:$0xff] %v1909
        %1926 = vst [vmem:[%s310 + $0x58] sm:$0xff] %v1910
        %1927 = vst [vmem:[%s310 + $0x60] sm:$0xff] %v1911
        %1928 = vst [vmem:[%s310 + $0x68] sm:$0xff] %v1912
        %1929 = vst [vmem:[%s310 + $0x70] sm:$0xff] %v1913
        %1930 = vst [vmem:[%s310 + $0x78] sm:$0xff] %v1914
        %1931 = vst [vmem:[#allocation2] sm:$0xff] 0
        %1932 = vst [vmem:[#allocation2 + $0x8] sm:$0xff] 0
        %1933 = vst [vmem:[#allocation2 + $0x10] sm:$0xff] 0
        %1934 = vst [vmem:[#allocation2 + $0x18] sm:$0xff] 0
        %1935 = vst [vmem:[#allocation2 + $0x20] sm:$0xff] 0
        %1936 = vst [vmem:[#allocation2 + $0x28] sm:$0xff] 0
        %1937 = vst [vmem:[#allocation2 + $0x30] sm:$0xff] 0
        %1938 = vst [vmem:[#allocation2 + $0x38] sm:$0xff] 0
        %vm1939 = vcmask 11264
        %1940 = vst.msk [vmem:[#allocation2 + $0x40] sm:$0xf] %vm1939, 0
        %v1941 = vpack.c.bf16 %v1899, %v1899
        %v1942 = vpack.c.bf16 %v1900, %v1900
        %v1943 = vpack.c.bf16 %v1901, %v1901
        %v1944 = vpack.c.bf16 %v1902, %v1902
        %v1945 = vpack.c.bf16 %v1903, %v1903
        %v1946 = vpack.c.bf16 %v1904, %v1904
        %v1947 = vpack.c.bf16 %v1905, %v1905
        %v1948 = vpack.c.bf16 %v1906, %v1906
        %v1949 = vpack.c.bf16 %v1907, %v1907
        %v1950 = vpack.c.bf16 %v1908, %v1908
        %v1951 = vpack.c.bf16 %v1909, %v1909
        %v1952 = vpack.c.bf16 %v1910, %v1910
        %v1953 = vpack.c.bf16 %v1911, %v1911
        %v1954 = vpack.c.bf16 %v1912, %v1912
        %v1955 = vpack.c.bf16 %v1913, %v1913
        %v1956 = vpack.c.bf16 %v1914, %v1914
        %v1973 = vunpack.c.l.b16 %v1941
        %v1974 = vunpack.c.l.b16 %v1942
        %v1975 = vunpack.c.l.b16 %v1943
        %v1976 = vunpack.c.l.b16 %v1944
        %v1977 = vunpack.c.l.b16 %v1945
        %v1978 = vunpack.c.l.b16 %v1946
        %v1979 = vunpack.c.l.b16 %v1947
        %v1980 = vunpack.c.l.b16 %v1948
        %v1981 = vunpack.c.l.b16 %v1949
        %v1982 = vunpack.c.l.b16 %v1950
        %v1983 = vunpack.c.l.b16 %v1951
        %v1984 = vunpack.c.l.b16 %v1952
        %v1985 = vunpack.c.l.b16 %v1953
        %v1986 = vunpack.c.l.b16 %v1954
        %v1987 = vunpack.c.l.b16 %v1955
        %v1988 = vunpack.c.l.b16 %v1956
        %v1989 = vpack.c.b16 %v1974, %v1973
        %v1990 = vpack.c.b16 %v1976, %v1975
        %v1991 = vpack.c.b16 %v1978, %v1977
        %v1992 = vpack.c.b16 %v1980, %v1979
        %v1993 = vpack.c.b16 %v1982, %v1981
        %v1994 = vpack.c.b16 %v1984, %v1983
        %v1995 = vpack.c.b16 %v1986, %v1985
        %v1996 = vpack.c.b16 %v1988, %v1987
        %1997 = vrot.lane.b32.xlu0 %v1989, 1
        %v1998 = vpop.permute.xlu0 %1997
        %1999 = vrot.lane.b32.xlu0 %v1990, 1
        %v2000 = vpop.permute.xlu0 %1999
        %2001 = vrot.lane.b32.xlu0 %v1991, 1
        %v2002 = vpop.permute.xlu0 %2001
        %2003 = vrot.lane.b32.xlu0 %v1992, 1
        %v2004 = vpop.permute.xlu0 %2003
        %2005 = vrot.lane.b32.xlu0 %v1993, 1
        %v2006 = vpop.permute.xlu0 %2005
        %2007 = vrot.lane.b32.xlu0 %v1994, 1
        %v2008 = vpop.permute.xlu0 %2007
        %2009 = vrot.lane.b32.xlu0 %v1995, 1
        %v2010 = vpop.permute.xlu0 %2009
        %2011 = vrot.lane.b32.xlu0 %v1996, 1
        %v2012 = vpop.permute.xlu0 %2011
        %v2013 = vrot.slane %v1998, 4
        %v2014 = vrot.slane %v2000, 4
        %v2015 = vrot.slane %v2002, 4
        %v2016 = vrot.slane %v2004, 4
        %v2017 = vrot.slane %v2006, 4
        %v2018 = vrot.slane %v2008, 4
        %v2019 = vrot.slane %v2010, 4
        %v2020 = vrot.slane %v2012, 4
        %vm2021 = vcmask 7168
        %v2022 = vsel %vm2021, %v2013, %v1998
        %vm2023 = vcmask 1043456
        %v2024 = vsel %vm2023, %v2013, %v2014
        %v2025 = vsel %vm2021, %v2024, %v2000
        %v2026 = vsel %vm2023, %v2014, %v2015
        %v2027 = vsel %vm2021, %v2026, %v2002
        %v2028 = vsel %vm2023, %v2015, %v2016
        %v2029 = vsel %vm2021, %v2028, %v2004
        %v2030 = vsel %vm2023, %v2016, %v2017
        %v2031 = vsel %vm2021, %v2030, %v2006
        %v2032 = vsel %vm2023, %v2017, %v2018
        %v2033 = vsel %vm2021, %v2032, %v2008
        %v2034 = vsel %vm2023, %v2018, %v2019
        %v2035 = vsel %vm2021, %v2034, %v2010
        %v2036 = vsel %vm2023, %v2019, %v2020
        %v2037 = vsel %vm2021, %v2036, %v2012
        %vm2047 = vcmask 1043464
        %vm2048 = vcmask 1047556
        %vm2049 = vmor %vm2048, %vm2047
        %2050 = vst.msk [vmem:[#allocation2] sm:$0xff] %vm2049, %v2022
        %2051 = vst [vmem:[#allocation2 + $0x8] sm:$0xff] %v2025
        %2052 = vst [vmem:[#allocation2 + $0x10] sm:$0xff] %v2027
        %2053 = vst [vmem:[#allocation2 + $0x18] sm:$0xff] %v2029
        %2054 = vst [vmem:[#allocation2 + $0x20] sm:$0xff] %v2031
        %2055 = vst [vmem:[#allocation2 + $0x28] sm:$0xff] %v2033
        %2056 = vst [vmem:[#allocation2 + $0x30] sm:$0xff] %v2035
        %2057 = vst [vmem:[#allocation2 + $0x38] sm:$0xff] %v2037
        %vm2058 = vcmask 3072
        %2059 = vst.msk [vmem:[#allocation2 + $0x40] sm:$0xf] %vm2058, %v2020
        %v2060 = vld [vmem:[%s4] sm:$0x1]
        %v2061 = vld [vmem:[#allocation2] sm:$0xff]
        %v2062 = vld [vmem:[#allocation2 + $0x8] sm:$0xff]
        %v2063 = vld [vmem:[#allocation2 + $0x10] sm:$0xff]
        %v2064 = vld [vmem:[#allocation2 + $0x18] sm:$0xff]
        %v2065 = vld [vmem:[#allocation2 + $0x20] sm:$0xff]
        %v2066 = vld [vmem:[#allocation2 + $0x28] sm:$0xff]
        %v2067 = vld [vmem:[#allocation2 + $0x30] sm:$0xff]
        %v2068 = vld [vmem:[#allocation2 + $0x38] sm:$0xff]
        %s2069 = scalar_lea.vmem %s4, 1
        %v2070 = vld [vmem:[%s2069] sm:$0x1]
        %v2071 = vld [vmem:[#allocation2 + $0x40] sm:$0xf]
        %v2081 = vunpack.c.l.b16 %v2061
        %v2082 = vunpack.c.h.b16 %v2061
        %v2083 = vunpack.c.l.b16 %v2062
        %v2084 = vunpack.c.h.b16 %v2062
        %v2085 = vunpack.c.l.b16 %v2063
        %v2086 = vunpack.c.h.b16 %v2063
        %v2087 = vunpack.c.l.b16 %v2064
        %v2088 = vunpack.c.h.b16 %v2064
        %v2089 = vunpack.c.l.b16 %v2065
        %v2090 = vunpack.c.h.b16 %v2065
        %v2091 = vunpack.c.l.b16 %v2066
        %v2092 = vunpack.c.h.b16 %v2066
        %v2093 = vunpack.c.l.b16 %v2067
        %v2094 = vunpack.c.h.b16 %v2067
        %v2095 = vunpack.c.l.b16 %v2068
        %v2096 = vunpack.c.h.b16 %v2068
        %v2097 = vunpack.c.l.b16 %v2071
        %v2098 = vpack.c.b16 %v2081, %v2081
        %v2099 = vpack.c.b16 %v2082, %v2082
        %v2100 = vpack.c.b16 %v2083, %v2083
        %v2101 = vpack.c.b16 %v2084, %v2084
        %v2102 = vpack.c.b16 %v2085, %v2085
        %v2103 = vpack.c.b16 %v2086, %v2086
        %v2104 = vpack.c.b16 %v2087, %v2087
        %v2105 = vpack.c.b16 %v2088, %v2088
        %v2106 = vpack.c.b16 %v2089, %v2089
        %v2107 = vpack.c.b16 %v2090, %v2090
        %v2108 = vpack.c.b16 %v2091, %v2091
        %v2109 = vpack.c.b16 %v2092, %v2092
        %v2110 = vpack.c.b16 %v2093, %v2093
        %v2111 = vpack.c.b16 %v2094, %v2094
        %v2112 = vpack.c.b16 %v2095, %v2095
        %v2113 = vpack.c.b16 %v2096, %v2096
        %v2114 = vpack.c.b16 %v2097, %v2097
        %2115 = vrot.lane.b32.xlu0 %v2098, 127
        %v2116 = vpop.permute.xlu0 %2115
        %2117 = vrot.lane.b32.xlu0 %v2099, 127
        %v2118 = vpop.permute.xlu0 %2117
        %2119 = vrot.lane.b32.xlu0 %v2100, 127
        %v2120 = vpop.permute.xlu0 %2119
        %2121 = vrot.lane.b32.xlu0 %v2101, 127
        %v2122 = vpop.permute.xlu0 %2121
        %2123 = vrot.lane.b32.xlu0 %v2102, 127
        %v2124 = vpop.permute.xlu0 %2123
        %2125 = vrot.lane.b32.xlu0 %v2103, 127
        %v2126 = vpop.permute.xlu0 %2125
        %2127 = vrot.lane.b32.xlu0 %v2104, 127
        %v2128 = vpop.permute.xlu0 %2127
        %2129 = vrot.lane.b32.xlu0 %v2105, 127
        %v2130 = vpop.permute.xlu0 %2129
        %2131 = vrot.lane.b32.xlu0 %v2106, 127
        %v2132 = vpop.permute.xlu0 %2131
        %2133 = vrot.lane.b32.xlu0 %v2107, 127
        %v2134 = vpop.permute.xlu0 %2133
        %2135 = vrot.lane.b32.xlu0 %v2108, 127
        %v2136 = vpop.permute.xlu0 %2135
        %2137 = vrot.lane.b32.xlu0 %v2109, 127
        %v2138 = vpop.permute.xlu0 %2137
        %2139 = vrot.lane.b32.xlu0 %v2110, 127
        %v2140 = vpop.permute.xlu0 %2139
        %2141 = vrot.lane.b32.xlu0 %v2111, 127
        %v2142 = vpop.permute.xlu0 %2141
        %2143 = vrot.lane.b32.xlu0 %v2112, 127
        %v2144 = vpop.permute.xlu0 %2143
        %2145 = vrot.lane.b32.xlu0 %v2113, 127
        %v2146 = vpop.permute.xlu0 %2145
        %2147 = vrot.lane.b32.xlu0 %v2114, 127
        %v2148 = vpop.permute.xlu0 %2147
        %v2149 = vsel %vm1465, %v2116, %v2118
        %v2150 = vsel %vm1465, %v2118, %v2120
        %v2151 = vsel %vm1465, %v2120, %v2122
        %v2152 = vsel %vm1465, %v2122, %v2124
        %v2153 = vsel %vm1465, %v2124, %v2126
        %v2154 = vsel %vm1465, %v2126, %v2128
        %v2155 = vsel %vm1465, %v2128, %v2130
        %v2156 = vsel %vm1465, %v2130, %v2132
        %v2157 = vsel %vm1465, %v2132, %v2134
        %v2158 = vsel %vm1465, %v2134, %v2136
        %v2159 = vsel %vm1465, %v2136, %v2138
        %v2160 = vsel %vm1465, %v2138, %v2140
        %v2161 = vsel %vm1465, %v2140, %v2142
        %v2162 = vsel %vm1465, %v2142, %v2144
        %v2163 = vsel %vm1465, %v2144, %v2146
        %v2164 = vsel %vm1465, %v2146, %v2148
        %vm2165 = vcmask 64512
        %v2167 = vsel %vm2165, %v2070, 0
        %vm2169 = vcmask 1043456
        %v2171 = vsel %vm2169, %v2149, 0
        %v2174 = vsel %vm2169, %v2150, 0
        %v2177 = vsel %vm2169, %v2151, 0
        %v2180 = vsel %vm2169, %v2152, 0
        %v2183 = vsel %vm2169, %v2153, 0
        %v2186 = vsel %vm2169, %v2154, 0
        %v2189 = vsel %vm2169, %v2155, 0
        %v2192 = vsel %vm2169, %v2156, 0
        %v2195 = vsel %vm2169, %v2157, 0
        %v2198 = vsel %vm2169, %v2158, 0
        %v2201 = vsel %vm2169, %v2159, 0
        %v2204 = vsel %vm2169, %v2160, 0
        %v2207 = vsel %vm2169, %v2161, 0
        %v2210 = vsel %vm2169, %v2162, 0
        %v2213 = vsel %vm2169, %v2163, 0
        %v2216 = vsel %vm2169, %v2164, 0
        %2218 = vmatprep.subr.bf16.mxu0 0
        %2219 = vmatpush1.bf16.msra.mxu0 0
        %2220 = vmatprep.subr.bf16.mxu0 0
        %2221 = vmatpush1.bf16.msra.mxu0 0
        %2222 = vmatprep.subr.bf16.mxu0 0
        %2223 = vmatpush1.bf16.msra.mxu0 0
        %2224 = vmatprep.subr.bf16.mxu0 0
        %2225 = vmatpush1.bf16.msra.mxu0 0
        %2226 = vmatprep.subr.bf16.mxu0 0
        %2227 = vmatpush1.bf16.msra.mxu0 0
        %2228 = vmatprep.subr.bf16.mxu0 0
        %2229 = vmatpush1.bf16.msra.mxu0 0
        %2230 = vmatprep.subr.bf16.mxu0 0
        %2231 = vmatpush1.bf16.msra.mxu0 0
        %2232 = vmatprep.subr.bf16.mxu0 %v2174
        %2233 = vmatpush1.bf16.msra.mxu0 %v2171
        %2234 = vmatprep.subr.bf16.mxu0 0
        %2235 = vmatpush2.bf16.msra.mxu0 0
        %2236 = vmatprep.subr.bf16.mxu0 0
        %2237 = vmatpush2.bf16.msra.mxu0 0
        %2238 = vmatprep.subr.bf16.mxu0 0
        %2239 = vmatpush2.bf16.msra.mxu0 0
        %2240 = vmatprep.subr.bf16.mxu0 0
        %2241 = vmatpush2.bf16.msra.mxu0 0
        %2242 = vmatprep.subr.bf16.mxu0 0
        %2243 = vmatpush2.bf16.msra.mxu0 0
        %2244 = vmatprep.subr.bf16.mxu0 0
        %2245 = vmatpush2.bf16.msra.mxu0 0
        %2246 = vmatprep.subr.bf16.mxu0 0
        %2247 = vmatpush2.bf16.msra.mxu0 0
        %2248 = vmatprep.subr.bf16.mxu0 0
        %2249 = vmatpush2.bf16.msra.mxu0 0
        %2250 = vmatprep.mubr.bf16.mxu0 0
        %2251 = vmatmul.mubr.bf16.gmra.mxu0 %v2167
        %v2252 = vpop.f32.mrf.mxu0
        %v2253 = vadd.f32 0.0, %v2252
        %v2254 = vpop.f32.mrf.mxu0
        %v2255 = vadd.f32 0.0, %v2254
        %v2256 = vpop.f32.mrf.mxu0
        %v2257 = vpop.f32.mrf.mxu0
        %2258 = vdwg.mxu0
        %2259 = vmatprep.subr.bf16.mxu0 0
        %2260 = vmatpush1.bf16.msra.mxu0 0
        %2261 = vmatprep.subr.bf16.mxu0 0
        %2262 = vmatpush1.bf16.msra.mxu0 0
        %2263 = vmatprep.subr.bf16.mxu0 0
        %2264 = vmatpush1.bf16.msra.mxu0 0
        %2265 = vmatprep.subr.bf16.mxu0 0
        %2266 = vmatpush1.bf16.msra.mxu0 0
        %2267 = vmatprep.subr.bf16.mxu0 0
        %2268 = vmatpush1.bf16.msra.mxu0 0
        %2269 = vmatprep.subr.bf16.mxu0 0
        %2270 = vmatpush1.bf16.msra.mxu0 0
        %2271 = vmatprep.subr.bf16.mxu0 0
        %2272 = vmatpush1.bf16.msra.mxu0 0
        %2273 = vmatprep.subr.bf16.mxu0 %v2180
        %2274 = vmatpush1.bf16.msra.mxu0 %v2177
        %2275 = vmatprep.subr.bf16.mxu0 0
        %2276 = vmatpush2.bf16.msra.mxu0 0
        %2277 = vmatprep.subr.bf16.mxu0 0
        %2278 = vmatpush2.bf16.msra.mxu0 0
        %2279 = vmatprep.subr.bf16.mxu0 0
        %2280 = vmatpush2.bf16.msra.mxu0 0
        %2281 = vmatprep.subr.bf16.mxu0 0
        %2282 = vmatpush2.bf16.msra.mxu0 0
        %2283 = vmatprep.subr.bf16.mxu0 0
        %2284 = vmatpush2.bf16.msra.mxu0 0
        %2285 = vmatprep.subr.bf16.mxu0 0
        %2286 = vmatpush2.bf16.msra.mxu0 0
        %2287 = vmatprep.subr.bf16.mxu0 0
        %2288 = vmatpush2.bf16.msra.mxu0 0
        %2289 = vmatprep.subr.bf16.mxu0 0
        %2290 = vmatpush2.bf16.msra.mxu0 0
        %2291 = vmatprep.mubr.bf16.mxu0 0
        %2292 = vmatmul.mubr.bf16.gmra.mxu0 %v2167
        %v2293 = vpop.f32.mrf.mxu0
        %v2294 = vadd.f32 0.0, %v2293
        %v2295 = vpop.f32.mrf.mxu0
        %v2296 = vadd.f32 0.0, %v2295
        %v2297 = vpop.f32.mrf.mxu0
        %v2298 = vpop.f32.mrf.mxu0
        %2299 = vdwg.mxu0
        %2300 = vmatprep.subr.bf16.mxu0 0
        %2301 = vmatpush1.bf16.msra.mxu0 0
        %2302 = vmatprep.subr.bf16.mxu0 0
        %2303 = vmatpush1.bf16.msra.mxu0 0
        %2304 = vmatprep.subr.bf16.mxu0 0
        %2305 = vmatpush1.bf16.msra.mxu0 0
        %2306 = vmatprep.subr.bf16.mxu0 0
        %2307 = vmatpush1.bf16.msra.mxu0 0
        %2308 = vmatprep.subr.bf16.mxu0 0
        %2309 = vmatpush1.bf16.msra.mxu0 0
        %2310 = vmatprep.subr.bf16.mxu0 0
        %2311 = vmatpush1.bf16.msra.mxu0 0
        %2312 = vmatprep.subr.bf16.mxu0 0
        %2313 = vmatpush1.bf16.msra.mxu0 0
        %2314 = vmatprep.subr.bf16.mxu0 %v2186
        %2315 = vmatpush1.bf16.msra.mxu0 %v2183
        %2316 = vmatprep.subr.bf16.mxu0 0
        %2317 = vmatpush2.bf16.msra.mxu0 0
        %2318 = vmatprep.subr.bf16.mxu0 0
        %2319 = vmatpush2.bf16.msra.mxu0 0
        %2320 = vmatprep.subr.bf16.mxu0 0
        %2321 = vmatpush2.bf16.msra.mxu0 0
        %2322 = vmatprep.subr.bf16.mxu0 0
        %2323 = vmatpush2.bf16.msra.mxu0 0
        %2324 = vmatprep.subr.bf16.mxu0 0
        %2325 = vmatpush2.bf16.msra.mxu0 0
        %2326 = vmatprep.subr.bf16.mxu0 0
        %2327 = vmatpush2.bf16.msra.mxu0 0
        %2328 = vmatprep.subr.bf16.mxu0 0
        %2329 = vmatpush2.bf16.msra.mxu0 0
        %2330 = vmatprep.subr.bf16.mxu0 0
        %2331 = vmatpush2.bf16.msra.mxu0 0
        %2332 = vmatprep.mubr.bf16.mxu0 0
        %2333 = vmatmul.mubr.bf16.gmra.mxu0 %v2167
        %v2334 = vpop.f32.mrf.mxu0
        %v2335 = vadd.f32 0.0, %v2334
        %v2336 = vpop.f32.mrf.mxu0
        %v2337 = vadd.f32 0.0, %v2336
        %v2338 = vpop.f32.mrf.mxu0
        %v2339 = vpop.f32.mrf.mxu0
        %2340 = vdwg.mxu0
        %2341 = vmatprep.subr.bf16.mxu0 0
        %2342 = vmatpush1.bf16.msra.mxu0 0
        %2343 = vmatprep.subr.bf16.mxu0 0
        %2344 = vmatpush1.bf16.msra.mxu0 0
        %2345 = vmatprep.subr.bf16.mxu0 0
        %2346 = vmatpush1.bf16.msra.mxu0 0
        %2347 = vmatprep.subr.bf16.mxu0 0
        %2348 = vmatpush1.bf16.msra.mxu0 0
        %2349 = vmatprep.subr.bf16.mxu0 0
        %2350 = vmatpush1.bf16.msra.mxu0 0
        %2351 = vmatprep.subr.bf16.mxu0 0
        %2352 = vmatpush1.bf16.msra.mxu0 0
        %2353 = vmatprep.subr.bf16.mxu0 0
        %2354 = vmatpush1.bf16.msra.mxu0 0
        %2355 = vmatprep.subr.bf16.mxu0 %v2192
        %2356 = vmatpush1.bf16.msra.mxu0 %v2189
        %2357 = vmatprep.subr.bf16.mxu0 0
        %2358 = vmatpush2.bf16.msra.mxu0 0
        %2359 = vmatprep.subr.bf16.mxu0 0
        %2360 = vmatpush2.bf16.msra.mxu0 0
        %2361 = vmatprep.subr.bf16.mxu0 0
        %2362 = vmatpush2.bf16.msra.mxu0 0
        %2363 = vmatprep.subr.bf16.mxu0 0
        %2364 = vmatpush2.bf16.msra.mxu0 0
        %2365 = vmatprep.subr.bf16.mxu0 0
        %2366 = vmatpush2.bf16.msra.mxu0 0
        %2367 = vmatprep.subr.bf16.mxu0 0
        %2368 = vmatpush2.bf16.msra.mxu0 0
        %2369 = vmatprep.subr.bf16.mxu0 0
        %2370 = vmatpush2.bf16.msra.mxu0 0
        %2371 = vmatprep.subr.bf16.mxu0 0
        %2372 = vmatpush2.bf16.msra.mxu0 0
        %2373 = vmatprep.mubr.bf16.mxu0 0
        %2374 = vmatmul.mubr.bf16.gmra.mxu0 %v2167
        %v2375 = vpop.f32.mrf.mxu0
        %v2376 = vadd.f32 0.0, %v2375
        %v2377 = vpop.f32.mrf.mxu0
        %v2378 = vadd.f32 0.0, %v2377
        %v2379 = vpop.f32.mrf.mxu0
        %v2380 = vpop.f32.mrf.mxu0
        %2381 = vdwg.mxu0
        %2382 = vmatprep.subr.bf16.mxu0 0
        %2383 = vmatpush1.bf16.msra.mxu0 0
        %2384 = vmatprep.subr.bf16.mxu0 0
        %2385 = vmatpush1.bf16.msra.mxu0 0
        %2386 = vmatprep.subr.bf16.mxu0 0
        %2387 = vmatpush1.bf16.msra.mxu0 0
        %2388 = vmatprep.subr.bf16.mxu0 0
        %2389 = vmatpush1.bf16.msra.mxu0 0
        %2390 = vmatprep.subr.bf16.mxu0 0
        %2391 = vmatpush1.bf16.msra.mxu0 0
        %2392 = vmatprep.subr.bf16.mxu0 0
        %2393 = vmatpush1.bf16.msra.mxu0 0
        %2394 = vmatprep.subr.bf16.mxu0 0
        %2395 = vmatpush1.bf16.msra.mxu0 0
        %2396 = vmatprep.subr.bf16.mxu0 %v2198
        %2397 = vmatpush1.bf16.msra.mxu0 %v2195
        %2398 = vmatprep.subr.bf16.mxu0 0
        %2399 = vmatpush2.bf16.msra.mxu0 0
        %2400 = vmatprep.subr.bf16.mxu0 0
        %2401 = vmatpush2.bf16.msra.mxu0 0
        %2402 = vmatprep.subr.bf16.mxu0 0
        %2403 = vmatpush2.bf16.msra.mxu0 0
        %2404 = vmatprep.subr.bf16.mxu0 0
        %2405 = vmatpush2.bf16.msra.mxu0 0
        %2406 = vmatprep.subr.bf16.mxu0 0
        %2407 = vmatpush2.bf16.msra.mxu0 0
        %2408 = vmatprep.subr.bf16.mxu0 0
        %2409 = vmatpush2.bf16.msra.mxu0 0
        %2410 = vmatprep.subr.bf16.mxu0 0
        %2411 = vmatpush2.bf16.msra.mxu0 0
        %2412 = vmatprep.subr.bf16.mxu0 0
        %2413 = vmatpush2.bf16.msra.mxu0 0
        %2414 = vmatprep.mubr.bf16.mxu0 0
        %2415 = vmatmul.mubr.bf16.gmra.mxu0 %v2167
        %v2416 = vpop.f32.mrf.mxu0
        %v2417 = vadd.f32 0.0, %v2416
        %v2418 = vpop.f32.mrf.mxu0
        %v2419 = vadd.f32 0.0, %v2418
        %v2420 = vpop.f32.mrf.mxu0
        %v2421 = vpop.f32.mrf.mxu0
        %2422 = vdwg.mxu0
        %2423 = vmatprep.subr.bf16.mxu0 0
        %2424 = vmatpush1.bf16.msra.mxu0 0
        %2425 = vmatprep.subr.bf16.mxu0 0
        %2426 = vmatpush1.bf16.msra.mxu0 0
        %2427 = vmatprep.subr.bf16.mxu0 0
        %2428 = vmatpush1.bf16.msra.mxu0 0
        %2429 = vmatprep.subr.bf16.mxu0 0
        %2430 = vmatpush1.bf16.msra.mxu0 0
        %2431 = vmatprep.subr.bf16.mxu0 0
        %2432 = vmatpush1.bf16.msra.mxu0 0
        %2433 = vmatprep.subr.bf16.mxu0 0
        %2434 = vmatpush1.bf16.msra.mxu0 0
        %2435 = vmatprep.subr.bf16.mxu0 0
        %2436 = vmatpush1.bf16.msra.mxu0 0
        %2437 = vmatprep.subr.bf16.mxu0 %v2204
        %2438 = vmatpush1.bf16.msra.mxu0 %v2201
        %2439 = vmatprep.subr.bf16.mxu0 0
        %2440 = vmatpush2.bf16.msra.mxu0 0
        %2441 = vmatprep.subr.bf16.mxu0 0
        %2442 = vmatpush2.bf16.msra.mxu0 0
        %2443 = vmatprep.subr.bf16.mxu0 0
        %2444 = vmatpush2.bf16.msra.mxu0 0
        %2445 = vmatprep.subr.bf16.mxu0 0
        %2446 = vmatpush2.bf16.msra.mxu0 0
        %2447 = vmatprep.subr.bf16.mxu0 0
        %2448 = vmatpush2.bf16.msra.mxu0 0
        %2449 = vmatprep.subr.bf16.mxu0 0
        %2450 = vmatpush2.bf16.msra.mxu0 0
        %2451 = vmatprep.subr.bf16.mxu0 0
        %2452 = vmatpush2.bf16.msra.mxu0 0
        %2453 = vmatprep.subr.bf16.mxu0 0
        %2454 = vmatpush2.bf16.msra.mxu0 0
        %2455 = vmatprep.mubr.bf16.mxu0 0
        %2456 = vmatmul.mubr.bf16.gmra.mxu0 %v2167
        %v2457 = vpop.f32.mrf.mxu0
        %v2458 = vadd.f32 0.0, %v2457
        %v2459 = vpop.f32.mrf.mxu0
        %v2460 = vadd.f32 0.0, %v2459
        %v2461 = vpop.f32.mrf.mxu0
        %v2462 = vpop.f32.mrf.mxu0
        %2463 = vdwg.mxu0
        %2464 = vmatprep.subr.bf16.mxu0 0
        %2465 = vmatpush1.bf16.msra.mxu0 0
        %2466 = vmatprep.subr.bf16.mxu0 0
        %2467 = vmatpush1.bf16.msra.mxu0 0
        %2468 = vmatprep.subr.bf16.mxu0 0
        %2469 = vmatpush1.bf16.msra.mxu0 0
        %2470 = vmatprep.subr.bf16.mxu0 0
        %2471 = vmatpush1.bf16.msra.mxu0 0
        %2472 = vmatprep.subr.bf16.mxu0 0
        %2473 = vmatpush1.bf16.msra.mxu0 0
        %2474 = vmatprep.subr.bf16.mxu0 0
        %2475 = vmatpush1.bf16.msra.mxu0 0
        %2476 = vmatprep.subr.bf16.mxu0 0
        %2477 = vmatpush1.bf16.msra.mxu0 0
        %2478 = vmatprep.subr.bf16.mxu0 %v2210
        %2479 = vmatpush1.bf16.msra.mxu0 %v2207
        %2480 = vmatprep.subr.bf16.mxu0 0
        %2481 = vmatpush2.bf16.msra.mxu0 0
        %2482 = vmatprep.subr.bf16.mxu0 0
        %2483 = vmatpush2.bf16.msra.mxu0 0
        %2484 = vmatprep.subr.bf16.mxu0 0
        %2485 = vmatpush2.bf16.msra.mxu0 0
        %2486 = vmatprep.subr.bf16.mxu0 0
        %2487 = vmatpush2.bf16.msra.mxu0 0
        %2488 = vmatprep.subr.bf16.mxu0 0
        %2489 = vmatpush2.bf16.msra.mxu0 0
        %2490 = vmatprep.subr.bf16.mxu0 0
        %2491 = vmatpush2.bf16.msra.mxu0 0
        %2492 = vmatprep.subr.bf16.mxu0 0
        %2493 = vmatpush2.bf16.msra.mxu0 0
        %2494 = vmatprep.subr.bf16.mxu0 0
        %2495 = vmatpush2.bf16.msra.mxu0 0
        %2496 = vmatprep.mubr.bf16.mxu0 0
        %2497 = vmatmul.mubr.bf16.gmra.mxu0 %v2167
        %v2498 = vpop.f32.mrf.mxu0
        %v2499 = vadd.f32 0.0, %v2498
        %v2500 = vpop.f32.mrf.mxu0
        %v2501 = vadd.f32 0.0, %v2500
        %v2502 = vpop.f32.mrf.mxu0
        %v2503 = vpop.f32.mrf.mxu0
        %2504 = vdwg.mxu0
        %2505 = vmatprep.subr.bf16.mxu0 0
        %2506 = vmatpush1.bf16.msra.mxu0 0
        %2507 = vmatprep.subr.bf16.mxu0 0
        %2508 = vmatpush1.bf16.msra.mxu0 0
        %2509 = vmatprep.subr.bf16.mxu0 0
        %2510 = vmatpush1.bf16.msra.mxu0 0
        %2511 = vmatprep.subr.bf16.mxu0 0
        %2512 = vmatpush1.bf16.msra.mxu0 0
        %2513 = vmatprep.subr.bf16.mxu0 0
        %2514 = vmatpush1.bf16.msra.mxu0 0
        %2515 = vmatprep.subr.bf16.mxu0 0
        %2516 = vmatpush1.bf16.msra.mxu0 0
        %2517 = vmatprep.subr.bf16.mxu0 0
        %2518 = vmatpush1.bf16.msra.mxu0 0
        %2519 = vmatprep.subr.bf16.mxu0 %v2216
        %2520 = vmatpush1.bf16.msra.mxu0 %v2213
        %2521 = vmatprep.subr.bf16.mxu0 0
        %2522 = vmatpush2.bf16.msra.mxu0 0
        %2523 = vmatprep.subr.bf16.mxu0 0
        %2524 = vmatpush2.bf16.msra.mxu0 0
        %2525 = vmatprep.subr.bf16.mxu0 0
        %2526 = vmatpush2.bf16.msra.mxu0 0
        %2527 = vmatprep.subr.bf16.mxu0 0
        %2528 = vmatpush2.bf16.msra.mxu0 0
        %2529 = vmatprep.subr.bf16.mxu0 0
        %2530 = vmatpush2.bf16.msra.mxu0 0
        %2531 = vmatprep.subr.bf16.mxu0 0
        %2532 = vmatpush2.bf16.msra.mxu0 0
        %2533 = vmatprep.subr.bf16.mxu0 0
        %2534 = vmatpush2.bf16.msra.mxu0 0
        %2535 = vmatprep.subr.bf16.mxu0 0
        %2536 = vmatpush2.bf16.msra.mxu0 0
        %2537 = vmatprep.mubr.bf16.mxu0 0
        %2538 = vmatmul.mubr.bf16.gmra.mxu0 %v2167
        %v2539 = vpop.f32.mrf.mxu0
        %v2540 = vadd.f32 0.0, %v2539
        %v2541 = vpop.f32.mrf.mxu0
        %v2542 = vadd.f32 0.0, %v2541
        %v2543 = vpop.f32.mrf.mxu0
        %v2544 = vpop.f32.mrf.mxu0
        %2545 = vdwg.mxu0
        %v2547 = vsel %vm2165, %v2060, 0
        %v2550 = vsel %vm2169, %v2098, 0
        %v2553 = vsel %vm2169, %v2099, 0
        %v2556 = vsel %vm2169, %v2100, 0
        %v2559 = vsel %vm2169, %v2101, 0
        %v2562 = vsel %vm2169, %v2102, 0
        %v2565 = vsel %vm2169, %v2103, 0
        %v2568 = vsel %vm2169, %v2104, 0
        %v2571 = vsel %vm2169, %v2105, 0
        %v2574 = vsel %vm2169, %v2106, 0
        %v2577 = vsel %vm2169, %v2107, 0
        %v2580 = vsel %vm2169, %v2108, 0
        %v2583 = vsel %vm2169, %v2109, 0
        %v2586 = vsel %vm2169, %v2110, 0
        %v2589 = vsel %vm2169, %v2111, 0
        %v2592 = vsel %vm2169, %v2112, 0
        %v2595 = vsel %vm2169, %v2113, 0
        %2597 = vmatprep.subr.bf16.mxu0 0
        %2598 = vmatpush1.bf16.msra.mxu0 0
        %2599 = vmatprep.subr.bf16.mxu0 0
        %2600 = vmatpush1.bf16.msra.mxu0 0
        %2601 = vmatprep.subr.bf16.mxu0 0
        %2602 = vmatpush1.bf16.msra.mxu0 0
        %2603 = vmatprep.subr.bf16.mxu0 0
        %2604 = vmatpush1.bf16.msra.mxu0 0
        %2605 = vmatprep.subr.bf16.mxu0 0
        %2606 = vmatpush1.bf16.msra.mxu0 0
        %2607 = vmatprep.subr.bf16.mxu0 0
        %2608 = vmatpush1.bf16.msra.mxu0 0
        %2609 = vmatprep.subr.bf16.mxu0 0
        %2610 = vmatpush1.bf16.msra.mxu0 0
        %2611 = vmatprep.subr.bf16.mxu0 %v2553
        %2612 = vmatpush1.bf16.msra.mxu0 %v2550
        %2613 = vmatprep.subr.bf16.mxu0 0
        %2614 = vmatpush2.bf16.msra.mxu0 0
        %2615 = vmatprep.subr.bf16.mxu0 0
        %2616 = vmatpush2.bf16.msra.mxu0 0
        %2617 = vmatprep.subr.bf16.mxu0 0
        %2618 = vmatpush2.bf16.msra.mxu0 0
        %2619 = vmatprep.subr.bf16.mxu0 0
        %2620 = vmatpush2.bf16.msra.mxu0 0
        %2621 = vmatprep.subr.bf16.mxu0 0
        %2622 = vmatpush2.bf16.msra.mxu0 0
        %2623 = vmatprep.subr.bf16.mxu0 0
        %2624 = vmatpush2.bf16.msra.mxu0 0
        %2625 = vmatprep.subr.bf16.mxu0 0
        %2626 = vmatpush2.bf16.msra.mxu0 0
        %2627 = vmatprep.subr.bf16.mxu0 0
        %2628 = vmatpush2.bf16.msra.mxu0 0
        %2629 = vmatprep.mubr.bf16.mxu0 0
        %2630 = vmatmul.mubr.bf16.gmra.mxu0 %v2547
        %v2631 = vpop.f32.mrf.mxu0
        %v2632 = vadd.f32 %v2253, %v2631
        %v2633 = vpop.f32.mrf.mxu0
        %v2634 = vadd.f32 %v2255, %v2633
        %v2635 = vpop.f32.mrf.mxu0
        %v2636 = vpop.f32.mrf.mxu0
        %2637 = vdwg.mxu0
        %2638 = vmatprep.subr.bf16.mxu0 0
        %2639 = vmatpush1.bf16.msra.mxu0 0
        %2640 = vmatprep.subr.bf16.mxu0 0
        %2641 = vmatpush1.bf16.msra.mxu0 0
        %2642 = vmatprep.subr.bf16.mxu0 0
        %2643 = vmatpush1.bf16.msra.mxu0 0
        %2644 = vmatprep.subr.bf16.mxu0 0
        %2645 = vmatpush1.bf16.msra.mxu0 0
        %2646 = vmatprep.subr.bf16.mxu0 0
        %2647 = vmatpush1.bf16.msra.mxu0 0
        %2648 = vmatprep.subr.bf16.mxu0 0
        %2649 = vmatpush1.bf16.msra.mxu0 0
        %2650 = vmatprep.subr.bf16.mxu0 0
        %2651 = vmatpush1.bf16.msra.mxu0 0
        %2652 = vmatprep.subr.bf16.mxu0 %v2559
        %2653 = vmatpush1.bf16.msra.mxu0 %v2556
        %2654 = vmatprep.subr.bf16.mxu0 0
        %2655 = vmatpush2.bf16.msra.mxu0 0
        %2656 = vmatprep.subr.bf16.mxu0 0
        %2657 = vmatpush2.bf16.msra.mxu0 0
        %2658 = vmatprep.subr.bf16.mxu0 0
        %2659 = vmatpush2.bf16.msra.mxu0 0
        %2660 = vmatprep.subr.bf16.mxu0 0
        %2661 = vmatpush2.bf16.msra.mxu0 0
        %2662 = vmatprep.subr.bf16.mxu0 0
        %2663 = vmatpush2.bf16.msra.mxu0 0
        %2664 = vmatprep.subr.bf16.mxu0 0
        %2665 = vmatpush2.bf16.msra.mxu0 0
        %2666 = vmatprep.subr.bf16.mxu0 0
        %2667 = vmatpush2.bf16.msra.mxu0 0
        %2668 = vmatprep.subr.bf16.mxu0 0
        %2669 = vmatpush2.bf16.msra.mxu0 0
        %2670 = vmatprep.mubr.bf16.mxu0 0
        %2671 = vmatmul.mubr.bf16.gmra.mxu0 %v2547
        %v2672 = vpop.f32.mrf.mxu0
        %v2673 = vadd.f32 %v2294, %v2672
        %v2674 = vpop.f32.mrf.mxu0
        %v2675 = vadd.f32 %v2296, %v2674
        %v2676 = vpop.f32.mrf.mxu0
        %v2677 = vpop.f32.mrf.mxu0
        %2678 = vdwg.mxu0
        %2679 = vmatprep.subr.bf16.mxu0 0
        %2680 = vmatpush1.bf16.msra.mxu0 0
        %2681 = vmatprep.subr.bf16.mxu0 0
        %2682 = vmatpush1.bf16.msra.mxu0 0
        %2683 = vmatprep.subr.bf16.mxu0 0
        %2684 = vmatpush1.bf16.msra.mxu0 0
        %2685 = vmatprep.subr.bf16.mxu0 0
        %2686 = vmatpush1.bf16.msra.mxu0 0
        %2687 = vmatprep.subr.bf16.mxu0 0
        %2688 = vmatpush1.bf16.msra.mxu0 0
        %2689 = vmatprep.subr.bf16.mxu0 0
        %2690 = vmatpush1.bf16.msra.mxu0 0
        %2691 = vmatprep.subr.bf16.mxu0 0
        %2692 = vmatpush1.bf16.msra.mxu0 0
        %2693 = vmatprep.subr.bf16.mxu0 %v2565
        %2694 = vmatpush1.bf16.msra.mxu0 %v2562
        %2695 = vmatprep.subr.bf16.mxu0 0
        %2696 = vmatpush2.bf16.msra.mxu0 0
        %2697 = vmatprep.subr.bf16.mxu0 0
        %2698 = vmatpush2.bf16.msra.mxu0 0
        %2699 = vmatprep.subr.bf16.mxu0 0
        %2700 = vmatpush2.bf16.msra.mxu0 0
        %2701 = vmatprep.subr.bf16.mxu0 0
        %2702 = vmatpush2.bf16.msra.mxu0 0
        %2703 = vmatprep.subr.bf16.mxu0 0
        %2704 = vmatpush2.bf16.msra.mxu0 0
        %2705 = vmatprep.subr.bf16.mxu0 0
        %2706 = vmatpush2.bf16.msra.mxu0 0
        %2707 = vmatprep.subr.bf16.mxu0 0
        %2708 = vmatpush2.bf16.msra.mxu0 0
        %2709 = vmatprep.subr.bf16.mxu0 0
        %2710 = vmatpush2.bf16.msra.mxu0 0
        %2711 = vmatprep.mubr.bf16.mxu0 0
        %2712 = vmatmul.mubr.bf16.gmra.mxu0 %v2547
        %v2713 = vpop.f32.mrf.mxu0
        %v2714 = vadd.f32 %v2335, %v2713
        %v2715 = vpop.f32.mrf.mxu0
        %v2716 = vadd.f32 %v2337, %v2715
        %v2717 = vpop.f32.mrf.mxu0
        %v2718 = vpop.f32.mrf.mxu0
        %2719 = vdwg.mxu0
        %2720 = vmatprep.subr.bf16.mxu0 0
        %2721 = vmatpush1.bf16.msra.mxu0 0
        %2722 = vmatprep.subr.bf16.mxu0 0
        %2723 = vmatpush1.bf16.msra.mxu0 0
        %2724 = vmatprep.subr.bf16.mxu0 0
        %2725 = vmatpush1.bf16.msra.mxu0 0
        %2726 = vmatprep.subr.bf16.mxu0 0
        %2727 = vmatpush1.bf16.msra.mxu0 0
        %2728 = vmatprep.subr.bf16.mxu0 0
        %2729 = vmatpush1.bf16.msra.mxu0 0
        %2730 = vmatprep.subr.bf16.mxu0 0
        %2731 = vmatpush1.bf16.msra.mxu0 0
        %2732 = vmatprep.subr.bf16.mxu0 0
        %2733 = vmatpush1.bf16.msra.mxu0 0
        %2734 = vmatprep.subr.bf16.mxu0 %v2571
        %2735 = vmatpush1.bf16.msra.mxu0 %v2568
        %2736 = vmatprep.subr.bf16.mxu0 0
        %2737 = vmatpush2.bf16.msra.mxu0 0
        %2738 = vmatprep.subr.bf16.mxu0 0
        %2739 = vmatpush2.bf16.msra.mxu0 0
        %2740 = vmatprep.subr.bf16.mxu0 0
        %2741 = vmatpush2.bf16.msra.mxu0 0
        %2742 = vmatprep.subr.bf16.mxu0 0
        %2743 = vmatpush2.bf16.msra.mxu0 0
        %2744 = vmatprep.subr.bf16.mxu0 0
        %2745 = vmatpush2.bf16.msra.mxu0 0
        %2746 = vmatprep.subr.bf16.mxu0 0
        %2747 = vmatpush2.bf16.msra.mxu0 0
        %2748 = vmatprep.subr.bf16.mxu0 0
        %2749 = vmatpush2.bf16.msra.mxu0 0
        %2750 = vmatprep.subr.bf16.mxu0 0
        %2751 = vmatpush2.bf16.msra.mxu0 0
        %2752 = vmatprep.mubr.bf16.mxu0 0
        %2753 = vmatmul.mubr.bf16.gmra.mxu0 %v2547
        %v2754 = vpop.f32.mrf.mxu0
        %v2755 = vadd.f32 %v2376, %v2754
        %v2756 = vpop.f32.mrf.mxu0
        %v2757 = vadd.f32 %v2378, %v2756
        %v2758 = vpop.f32.mrf.mxu0
        %v2759 = vpop.f32.mrf.mxu0
        %2760 = vdwg.mxu0
        %2761 = vmatprep.subr.bf16.mxu0 0
        %2762 = vmatpush1.bf16.msra.mxu0 0
        %2763 = vmatprep.subr.bf16.mxu0 0
        %2764 = vmatpush1.bf16.msra.mxu0 0
        %2765 = vmatprep.subr.bf16.mxu0 0
        %2766 = vmatpush1.bf16.msra.mxu0 0
        %2767 = vmatprep.subr.bf16.mxu0 0
        %2768 = vmatpush1.bf16.msra.mxu0 0
        %2769 = vmatprep.subr.bf16.mxu0 0
        %2770 = vmatpush1.bf16.msra.mxu0 0
        %2771 = vmatprep.subr.bf16.mxu0 0
        %2772 = vmatpush1.bf16.msra.mxu0 0
        %2773 = vmatprep.subr.bf16.mxu0 0
        %2774 = vmatpush1.bf16.msra.mxu0 0
        %2775 = vmatprep.subr.bf16.mxu0 %v2577
        %2776 = vmatpush1.bf16.msra.mxu0 %v2574
        %2777 = vmatprep.subr.bf16.mxu0 0
        %2778 = vmatpush2.bf16.msra.mxu0 0
        %2779 = vmatprep.subr.bf16.mxu0 0
        %2780 = vmatpush2.bf16.msra.mxu0 0
        %2781 = vmatprep.subr.bf16.mxu0 0
        %2782 = vmatpush2.bf16.msra.mxu0 0
        %2783 = vmatprep.subr.bf16.mxu0 0
        %2784 = vmatpush2.bf16.msra.mxu0 0
        %2785 = vmatprep.subr.bf16.mxu0 0
        %2786 = vmatpush2.bf16.msra.mxu0 0
        %2787 = vmatprep.subr.bf16.mxu0 0
        %2788 = vmatpush2.bf16.msra.mxu0 0
        %2789 = vmatprep.subr.bf16.mxu0 0
        %2790 = vmatpush2.bf16.msra.mxu0 0
        %2791 = vmatprep.subr.bf16.mxu0 0
        %2792 = vmatpush2.bf16.msra.mxu0 0
        %2793 = vmatprep.mubr.bf16.mxu0 0
        %2794 = vmatmul.mubr.bf16.gmra.mxu0 %v2547
        %v2795 = vpop.f32.mrf.mxu0
        %v2796 = vadd.f32 %v2417, %v2795
        %v2797 = vpop.f32.mrf.mxu0
        %v2798 = vadd.f32 %v2419, %v2797
        %v2799 = vpop.f32.mrf.mxu0
        %v2800 = vpop.f32.mrf.mxu0
        %2801 = vdwg.mxu0
        %2802 = vmatprep.subr.bf16.mxu0 0
        %2803 = vmatpush1.bf16.msra.mxu0 0
        %2804 = vmatprep.subr.bf16.mxu0 0
        %2805 = vmatpush1.bf16.msra.mxu0 0
        %2806 = vmatprep.subr.bf16.mxu0 0
        %2807 = vmatpush1.bf16.msra.mxu0 0
        %2808 = vmatprep.subr.bf16.mxu0 0
        %2809 = vmatpush1.bf16.msra.mxu0 0
        %2810 = vmatprep.subr.bf16.mxu0 0
        %2811 = vmatpush1.bf16.msra.mxu0 0
        %2812 = vmatprep.subr.bf16.mxu0 0
        %2813 = vmatpush1.bf16.msra.mxu0 0
        %2814 = vmatprep.subr.bf16.mxu0 0
        %2815 = vmatpush1.bf16.msra.mxu0 0
        %2816 = vmatprep.subr.bf16.mxu0 %v2583
        %2817 = vmatpush1.bf16.msra.mxu0 %v2580
        %2818 = vmatprep.subr.bf16.mxu0 0
        %2819 = vmatpush2.bf16.msra.mxu0 0
        %2820 = vmatprep.subr.bf16.mxu0 0
        %2821 = vmatpush2.bf16.msra.mxu0 0
        %2822 = vmatprep.subr.bf16.mxu0 0
        %2823 = vmatpush2.bf16.msra.mxu0 0
        %2824 = vmatprep.subr.bf16.mxu0 0
        %2825 = vmatpush2.bf16.msra.mxu0 0
        %2826 = vmatprep.subr.bf16.mxu0 0
        %2827 = vmatpush2.bf16.msra.mxu0 0
        %2828 = vmatprep.subr.bf16.mxu0 0
        %2829 = vmatpush2.bf16.msra.mxu0 0
        %2830 = vmatprep.subr.bf16.mxu0 0
        %2831 = vmatpush2.bf16.msra.mxu0 0
        %2832 = vmatprep.subr.bf16.mxu0 0
        %2833 = vmatpush2.bf16.msra.mxu0 0
        %2834 = vmatprep.mubr.bf16.mxu0 0
        %2835 = vmatmul.mubr.bf16.gmra.mxu0 %v2547
        %v2836 = vpop.f32.mrf.mxu0
        %v2837 = vadd.f32 %v2458, %v2836
        %v2838 = vpop.f32.mrf.mxu0
        %v2839 = vadd.f32 %v2460, %v2838
        %v2840 = vpop.f32.mrf.mxu0
        %v2841 = vpop.f32.mrf.mxu0
        %2842 = vdwg.mxu0
        %2843 = vmatprep.subr.bf16.mxu0 0
        %2844 = vmatpush1.bf16.msra.mxu0 0
        %2845 = vmatprep.subr.bf16.mxu0 0
        %2846 = vmatpush1.bf16.msra.mxu0 0
        %2847 = vmatprep.subr.bf16.mxu0 0
        %2848 = vmatpush1.bf16.msra.mxu0 0
        %2849 = vmatprep.subr.bf16.mxu0 0
        %2850 = vmatpush1.bf16.msra.mxu0 0
        %2851 = vmatprep.subr.bf16.mxu0 0
        %2852 = vmatpush1.bf16.msra.mxu0 0
        %2853 = vmatprep.subr.bf16.mxu0 0
        %2854 = vmatpush1.bf16.msra.mxu0 0
        %2855 = vmatprep.subr.bf16.mxu0 0
        %2856 = vmatpush1.bf16.msra.mxu0 0
        %2857 = vmatprep.subr.bf16.mxu0 %v2589
        %2858 = vmatpush1.bf16.msra.mxu0 %v2586
        %2859 = vmatprep.subr.bf16.mxu0 0
        %2860 = vmatpush2.bf16.msra.mxu0 0
        %2861 = vmatprep.subr.bf16.mxu0 0
        %2862 = vmatpush2.bf16.msra.mxu0 0
        %2863 = vmatprep.subr.bf16.mxu0 0
        %2864 = vmatpush2.bf16.msra.mxu0 0
        %2865 = vmatprep.subr.bf16.mxu0 0
        %2866 = vmatpush2.bf16.msra.mxu0 0
        %2867 = vmatprep.subr.bf16.mxu0 0
        %2868 = vmatpush2.bf16.msra.mxu0 0
        %2869 = vmatprep.subr.bf16.mxu0 0
        %2870 = vmatpush2.bf16.msra.mxu0 0
        %2871 = vmatprep.subr.bf16.mxu0 0
        %2872 = vmatpush2.bf16.msra.mxu0 0
        %2873 = vmatprep.subr.bf16.mxu0 0
        %2874 = vmatpush2.bf16.msra.mxu0 0
        %2875 = vmatprep.mubr.bf16.mxu0 0
        %2876 = vmatmul.mubr.bf16.gmra.mxu0 %v2547
        %v2877 = vpop.f32.mrf.mxu0
        %v2878 = vadd.f32 %v2499, %v2877
        %v2879 = vpop.f32.mrf.mxu0
        %v2880 = vadd.f32 %v2501, %v2879
        %v2881 = vpop.f32.mrf.mxu0
        %v2882 = vpop.f32.mrf.mxu0
        %2883 = vdwg.mxu0
        %2884 = vmatprep.subr.bf16.mxu0 0
        %2885 = vmatpush1.bf16.msra.mxu0 0
        %2886 = vmatprep.subr.bf16.mxu0 0
        %2887 = vmatpush1.bf16.msra.mxu0 0
        %2888 = vmatprep.subr.bf16.mxu0 0
        %2889 = vmatpush1.bf16.msra.mxu0 0
        %2890 = vmatprep.subr.bf16.mxu0 0
        %2891 = vmatpush1.bf16.msra.mxu0 0
        %2892 = vmatprep.subr.bf16.mxu0 0
        %2893 = vmatpush1.bf16.msra.mxu0 0
        %2894 = vmatprep.subr.bf16.mxu0 0
        %2895 = vmatpush1.bf16.msra.mxu0 0
        %2896 = vmatprep.subr.bf16.mxu0 0
        %2897 = vmatpush1.bf16.msra.mxu0 0
        %2898 = vmatprep.subr.bf16.mxu0 %v2595
        %2899 = vmatpush1.bf16.msra.mxu0 %v2592
        %2900 = vmatprep.subr.bf16.mxu0 0
        %2901 = vmatpush2.bf16.msra.mxu0 0
        %2902 = vmatprep.subr.bf16.mxu0 0
        %2903 = vmatpush2.bf16.msra.mxu0 0
        %2904 = vmatprep.subr.bf16.mxu0 0
        %2905 = vmatpush2.bf16.msra.mxu0 0
        %2906 = vmatprep.subr.bf16.mxu0 0
        %2907 = vmatpush2.bf16.msra.mxu0 0
        %2908 = vmatprep.subr.bf16.mxu0 0
        %2909 = vmatpush2.bf16.msra.mxu0 0
        %2910 = vmatprep.subr.bf16.mxu0 0
        %2911 = vmatpush2.bf16.msra.mxu0 0
        %2912 = vmatprep.subr.bf16.mxu0 0
        %2913 = vmatpush2.bf16.msra.mxu0 0
        %2914 = vmatprep.subr.bf16.mxu0 0
        %2915 = vmatpush2.bf16.msra.mxu0 0
        %2916 = vmatprep.mubr.bf16.mxu0 0
        %2917 = vmatmul.mubr.bf16.gmra.mxu0 %v2547
        %v2918 = vpop.f32.mrf.mxu0
        %v2919 = vadd.f32 %v2540, %v2918
        %v2920 = vpop.f32.mrf.mxu0
        %v2921 = vadd.f32 %v2542, %v2920
        %v2922 = vpop.f32.mrf.mxu0
        %v2923 = vpop.f32.mrf.mxu0
        %2924 = vdwg.mxu0
        %s2925 = scalar_lea.vmem %s4, 2
        %v2926 = vld [vmem:[%s2925] sm:$0x1]
        %s2927 = scalar_lea.vmem %s4, 3
        %v2928 = vld [vmem:[%s2927] sm:$0x1]
        %2929 = vrot.lane.b32.xlu0 %v2098, 126
        %v2930 = vpop.permute.xlu0 %2929
        %2931 = vrot.lane.b32.xlu0 %v2099, 126
        %v2932 = vpop.permute.xlu0 %2931
        %2933 = vrot.lane.b32.xlu0 %v2100, 126
        %v2934 = vpop.permute.xlu0 %2933
        %2935 = vrot.lane.b32.xlu0 %v2101, 126
        %v2936 = vpop.permute.xlu0 %2935
        %2937 = vrot.lane.b32.xlu0 %v2102, 126
        %v2938 = vpop.permute.xlu0 %2937
        %2939 = vrot.lane.b32.xlu0 %v2103, 126
        %v2940 = vpop.permute.xlu0 %2939
        %2941 = vrot.lane.b32.xlu0 %v2104, 126
        %v2942 = vpop.permute.xlu0 %2941
        %2943 = vrot.lane.b32.xlu0 %v2105, 126
        %v2944 = vpop.permute.xlu0 %2943
        %2945 = vrot.lane.b32.xlu0 %v2106, 126
        %v2946 = vpop.permute.xlu0 %2945
        %2947 = vrot.lane.b32.xlu0 %v2107, 126
        %v2948 = vpop.permute.xlu0 %2947
        %2949 = vrot.lane.b32.xlu0 %v2108, 126
        %v2950 = vpop.permute.xlu0 %2949
        %2951 = vrot.lane.b32.xlu0 %v2109, 126
        %v2952 = vpop.permute.xlu0 %2951
        %2953 = vrot.lane.b32.xlu0 %v2110, 126
        %v2954 = vpop.permute.xlu0 %2953
        %2955 = vrot.lane.b32.xlu0 %v2111, 126
        %v2956 = vpop.permute.xlu0 %2955
        %2957 = vrot.lane.b32.xlu0 %v2112, 126
        %v2958 = vpop.permute.xlu0 %2957
        %2959 = vrot.lane.b32.xlu0 %v2113, 126
        %v2960 = vpop.permute.xlu0 %2959
        %2961 = vrot.lane.b32.xlu0 %v2114, 126
        %v2962 = vpop.permute.xlu0 %2961
        %vm2963 = vcmask 1031168
        %v2964 = vsel %vm2963, %v2930, %v2932
        %v2965 = vsel %vm2963, %v2932, %v2934
        %v2966 = vsel %vm2963, %v2934, %v2936
        %v2967 = vsel %vm2963, %v2936, %v2938
        %v2968 = vsel %vm2963, %v2938, %v2940
        %v2969 = vsel %vm2963, %v2940, %v2942
        %v2970 = vsel %vm2963, %v2942, %v2944
        %v2971 = vsel %vm2963, %v2944, %v2946
        %v2972 = vsel %vm2963, %v2946, %v2948
        %v2973 = vsel %vm2963, %v2948, %v2950
        %v2974 = vsel %vm2963, %v2950, %v2952
        %v2975 = vsel %vm2963, %v2952, %v2954
        %v2976 = vsel %vm2963, %v2954, %v2956
        %v2977 = vsel %vm2963, %v2956, %v2958
        %v2978 = vsel %vm2963, %v2958, %v2960
        %v2979 = vsel %vm2963, %v2960, %v2962
        %v2981 = vsel %vm2165, %v2928, 0
        %v2984 = vsel %vm2169, %v2964, 0
        %v2987 = vsel %vm2169, %v2965, 0
        %v2990 = vsel %vm2169, %v2966, 0
        %v2993 = vsel %vm2169, %v2967, 0
        %v2996 = vsel %vm2169, %v2968, 0
        %v2999 = vsel %vm2169, %v2969, 0
        %v3002 = vsel %vm2169, %v2970, 0
        %v3005 = vsel %vm2169, %v2971, 0
        %v3008 = vsel %vm2169, %v2972, 0
        %v3011 = vsel %vm2169, %v2973, 0
        %v3014 = vsel %vm2169, %v2974, 0
        %v3017 = vsel %vm2169, %v2975, 0
        %v3020 = vsel %vm2169, %v2976, 0
        %v3023 = vsel %vm2169, %v2977, 0
        %v3026 = vsel %vm2169, %v2978, 0
        %v3029 = vsel %vm2169, %v2979, 0
        %3031 = vmatprep.subr.bf16.mxu0 0
        %3032 = vmatpush1.bf16.msra.mxu0 0
        %3033 = vmatprep.subr.bf16.mxu0 0
        %3034 = vmatpush1.bf16.msra.mxu0 0
        %3035 = vmatprep.subr.bf16.mxu0 0
        %3036 = vmatpush1.bf16.msra.mxu0 0
        %3037 = vmatprep.subr.bf16.mxu0 0
        %3038 = vmatpush1.bf16.msra.mxu0 0
        %3039 = vmatprep.subr.bf16.mxu0 0
        %3040 = vmatpush1.bf16.msra.mxu0 0
        %3041 = vmatprep.subr.bf16.mxu0 0
        %3042 = vmatpush1.bf16.msra.mxu0 0
        %3043 = vmatprep.subr.bf16.mxu0 0
        %3044 = vmatpush1.bf16.msra.mxu0 0
        %3045 = vmatprep.subr.bf16.mxu0 %v2987
        %3046 = vmatpush1.bf16.msra.mxu0 %v2984
        %3047 = vmatprep.subr.bf16.mxu0 0
        %3048 = vmatpush2.bf16.msra.mxu0 0
        %3049 = vmatprep.subr.bf16.mxu0 0
        %3050 = vmatpush2.bf16.msra.mxu0 0
        %3051 = vmatprep.subr.bf16.mxu0 0
        %3052 = vmatpush2.bf16.msra.mxu0 0
        %3053 = vmatprep.subr.bf16.mxu0 0
        %3054 = vmatpush2.bf16.msra.mxu0 0
        %3055 = vmatprep.subr.bf16.mxu0 0
        %3056 = vmatpush2.bf16.msra.mxu0 0
        %3057 = vmatprep.subr.bf16.mxu0 0
        %3058 = vmatpush2.bf16.msra.mxu0 0
        %3059 = vmatprep.subr.bf16.mxu0 0
        %3060 = vmatpush2.bf16.msra.mxu0 0
        %3061 = vmatprep.subr.bf16.mxu0 0
        %3062 = vmatpush2.bf16.msra.mxu0 0
        %3063 = vmatprep.mubr.bf16.mxu0 0
        %3064 = vmatmul.mubr.bf16.gmra.mxu0 %v2981
        %v3065 = vpop.f32.mrf.mxu0
        %v3066 = vadd.f32 0.0, %v3065
        %v3067 = vpop.f32.mrf.mxu0
        %v3068 = vadd.f32 0.0, %v3067
        %v3069 = vpop.f32.mrf.mxu0
        %v3070 = vpop.f32.mrf.mxu0
        %3071 = vdwg.mxu0
        %3072 = vmatprep.subr.bf16.mxu0 0
        %3073 = vmatpush1.bf16.msra.mxu0 0
        %3074 = vmatprep.subr.bf16.mxu0 0
        %3075 = vmatpush1.bf16.msra.mxu0 0
        %3076 = vmatprep.subr.bf16.mxu0 0
        %3077 = vmatpush1.bf16.msra.mxu0 0
        %3078 = vmatprep.subr.bf16.mxu0 0
        %3079 = vmatpush1.bf16.msra.mxu0 0
        %3080 = vmatprep.subr.bf16.mxu0 0
        %3081 = vmatpush1.bf16.msra.mxu0 0
        %3082 = vmatprep.subr.bf16.mxu0 0
        %3083 = vmatpush1.bf16.msra.mxu0 0
        %3084 = vmatprep.subr.bf16.mxu0 0
        %3085 = vmatpush1.bf16.msra.mxu0 0
        %3086 = vmatprep.subr.bf16.mxu0 %v2993
        %3087 = vmatpush1.bf16.msra.mxu0 %v2990
        %3088 = vmatprep.subr.bf16.mxu0 0
        %3089 = vmatpush2.bf16.msra.mxu0 0
        %3090 = vmatprep.subr.bf16.mxu0 0
        %3091 = vmatpush2.bf16.msra.mxu0 0
        %3092 = vmatprep.subr.bf16.mxu0 0
        %3093 = vmatpush2.bf16.msra.mxu0 0
        %3094 = vmatprep.subr.bf16.mxu0 0
        %3095 = vmatpush2.bf16.msra.mxu0 0
        %3096 = vmatprep.subr.bf16.mxu0 0
        %3097 = vmatpush2.bf16.msra.mxu0 0
        %3098 = vmatprep.subr.bf16.mxu0 0
        %3099 = vmatpush2.bf16.msra.mxu0 0
        %3100 = vmatprep.subr.bf16.mxu0 0
        %3101 = vmatpush2.bf16.msra.mxu0 0
        %3102 = vmatprep.subr.bf16.mxu0 0
        %3103 = vmatpush2.bf16.msra.mxu0 0
        %3104 = vmatprep.mubr.bf16.mxu0 0
        %3105 = vmatmul.mubr.bf16.gmra.mxu0 %v2981
        %v3106 = vpop.f32.mrf.mxu0
        %v3107 = vadd.f32 0.0, %v3106
        %v3108 = vpop.f32.mrf.mxu0
        %v3109 = vadd.f32 0.0, %v3108
        %v3110 = vpop.f32.mrf.mxu0
        %v3111 = vpop.f32.mrf.mxu0
        %3112 = vdwg.mxu0
        %3113 = vmatprep.subr.bf16.mxu0 0
        %3114 = vmatpush1.bf16.msra.mxu0 0
        %3115 = vmatprep.subr.bf16.mxu0 0
        %3116 = vmatpush1.bf16.msra.mxu0 0
        %3117 = vmatprep.subr.bf16.mxu0 0
        %3118 = vmatpush1.bf16.msra.mxu0 0
        %3119 = vmatprep.subr.bf16.mxu0 0
        %3120 = vmatpush1.bf16.msra.mxu0 0
        %3121 = vmatprep.subr.bf16.mxu0 0
        %3122 = vmatpush1.bf16.msra.mxu0 0
        %3123 = vmatprep.subr.bf16.mxu0 0
        %3124 = vmatpush1.bf16.msra.mxu0 0
        %3125 = vmatprep.subr.bf16.mxu0 0
        %3126 = vmatpush1.bf16.msra.mxu0 0
        %3127 = vmatprep.subr.bf16.mxu0 %v2999
        %3128 = vmatpush1.bf16.msra.mxu0 %v2996
        %3129 = vmatprep.subr.bf16.mxu0 0
        %3130 = vmatpush2.bf16.msra.mxu0 0
        %3131 = vmatprep.subr.bf16.mxu0 0
        %3132 = vmatpush2.bf16.msra.mxu0 0
        %3133 = vmatprep.subr.bf16.mxu0 0
        %3134 = vmatpush2.bf16.msra.mxu0 0
        %3135 = vmatprep.subr.bf16.mxu0 0
        %3136 = vmatpush2.bf16.msra.mxu0 0
        %3137 = vmatprep.subr.bf16.mxu0 0
        %3138 = vmatpush2.bf16.msra.mxu0 0
        %3139 = vmatprep.subr.bf16.mxu0 0
        %3140 = vmatpush2.bf16.msra.mxu0 0
        %3141 = vmatprep.subr.bf16.mxu0 0
        %3142 = vmatpush2.bf16.msra.mxu0 0
        %3143 = vmatprep.subr.bf16.mxu0 0
        %3144 = vmatpush2.bf16.msra.mxu0 0
        %3145 = vmatprep.mubr.bf16.mxu0 0
        %3146 = vmatmul.mubr.bf16.gmra.mxu0 %v2981
        %v3147 = vpop.f32.mrf.mxu0
        %v3148 = vadd.f32 0.0, %v3147
        %v3149 = vpop.f32.mrf.mxu0
        %v3150 = vadd.f32 0.0, %v3149
        %v3151 = vpop.f32.mrf.mxu0
        %v3152 = vpop.f32.mrf.mxu0
        %3153 = vdwg.mxu0
        %3154 = vmatprep.subr.bf16.mxu0 0
        %3155 = vmatpush1.bf16.msra.mxu0 0
        %3156 = vmatprep.subr.bf16.mxu0 0
        %3157 = vmatpush1.bf16.msra.mxu0 0
        %3158 = vmatprep.subr.bf16.mxu0 0
        %3159 = vmatpush1.bf16.msra.mxu0 0
        %3160 = vmatprep.subr.bf16.mxu0 0
        %3161 = vmatpush1.bf16.msra.mxu0 0
        %3162 = vmatprep.subr.bf16.mxu0 0
        %3163 = vmatpush1.bf16.msra.mxu0 0
        %3164 = vmatprep.subr.bf16.mxu0 0
        %3165 = vmatpush1.bf16.msra.mxu0 0
        %3166 = vmatprep.subr.bf16.mxu0 0
        %3167 = vmatpush1.bf16.msra.mxu0 0
        %3168 = vmatprep.subr.bf16.mxu0 %v3005
        %3169 = vmatpush1.bf16.msra.mxu0 %v3002
        %3170 = vmatprep.subr.bf16.mxu0 0
        %3171 = vmatpush2.bf16.msra.mxu0 0
        %3172 = vmatprep.subr.bf16.mxu0 0
        %3173 = vmatpush2.bf16.msra.mxu0 0
        %3174 = vmatprep.subr.bf16.mxu0 0
        %3175 = vmatpush2.bf16.msra.mxu0 0
        %3176 = vmatprep.subr.bf16.mxu0 0
        %3177 = vmatpush2.bf16.msra.mxu0 0
        %3178 = vmatprep.subr.bf16.mxu0 0
        %3179 = vmatpush2.bf16.msra.mxu0 0
        %3180 = vmatprep.subr.bf16.mxu0 0
        %3181 = vmatpush2.bf16.msra.mxu0 0
        %3182 = vmatprep.subr.bf16.mxu0 0
        %3183 = vmatpush2.bf16.msra.mxu0 0
        %3184 = vmatprep.subr.bf16.mxu0 0
        %3185 = vmatpush2.bf16.msra.mxu0 0
        %3186 = vmatprep.mubr.bf16.mxu0 0
        %3187 = vmatmul.mubr.bf16.gmra.mxu0 %v2981
        %v3188 = vpop.f32.mrf.mxu0
        %v3189 = vadd.f32 0.0, %v3188
        %v3190 = vpop.f32.mrf.mxu0
        %v3191 = vadd.f32 0.0, %v3190
        %v3192 = vpop.f32.mrf.mxu0
        %v3193 = vpop.f32.mrf.mxu0
        %3194 = vdwg.mxu0
        %3195 = vmatprep.subr.bf16.mxu0 0
        %3196 = vmatpush1.bf16.msra.mxu0 0
        %3197 = vmatprep.subr.bf16.mxu0 0
        %3198 = vmatpush1.bf16.msra.mxu0 0
        %3199 = vmatprep.subr.bf16.mxu0 0
        %3200 = vmatpush1.bf16.msra.mxu0 0
        %3201 = vmatprep.subr.bf16.mxu0 0
        %3202 = vmatpush1.bf16.msra.mxu0 0
        %3203 = vmatprep.subr.bf16.mxu0 0
        %3204 = vmatpush1.bf16.msra.mxu0 0
        %3205 = vmatprep.subr.bf16.mxu0 0
        %3206 = vmatpush1.bf16.msra.mxu0 0
        %3207 = vmatprep.subr.bf16.mxu0 0
        %3208 = vmatpush1.bf16.msra.mxu0 0
        %3209 = vmatprep.subr.bf16.mxu0 %v3011
        %3210 = vmatpush1.bf16.msra.mxu0 %v3008
        %3211 = vmatprep.subr.bf16.mxu0 0
        %3212 = vmatpush2.bf16.msra.mxu0 0
        %3213 = vmatprep.subr.bf16.mxu0 0
        %3214 = vmatpush2.bf16.msra.mxu0 0
        %3215 = vmatprep.subr.bf16.mxu0 0
        %3216 = vmatpush2.bf16.msra.mxu0 0
        %3217 = vmatprep.subr.bf16.mxu0 0
        %3218 = vmatpush2.bf16.msra.mxu0 0
        %3219 = vmatprep.subr.bf16.mxu0 0
        %3220 = vmatpush2.bf16.msra.mxu0 0
        %3221 = vmatprep.subr.bf16.mxu0 0
        %3222 = vmatpush2.bf16.msra.mxu0 0
        %3223 = vmatprep.subr.bf16.mxu0 0
        %3224 = vmatpush2.bf16.msra.mxu0 0
        %3225 = vmatprep.subr.bf16.mxu0 0
        %3226 = vmatpush2.bf16.msra.mxu0 0
        %3227 = vmatprep.mubr.bf16.mxu0 0
        %3228 = vmatmul.mubr.bf16.gmra.mxu0 %v2981
        %v3229 = vpop.f32.mrf.mxu0
        %v3230 = vadd.f32 0.0, %v3229
        %v3231 = vpop.f32.mrf.mxu0
        %v3232 = vadd.f32 0.0, %v3231
        %v3233 = vpop.f32.mrf.mxu0
        %v3234 = vpop.f32.mrf.mxu0
        %3235 = vdwg.mxu0
        %3236 = vmatprep.subr.bf16.mxu0 0
        %3237 = vmatpush1.bf16.msra.mxu0 0
        %3238 = vmatprep.subr.bf16.mxu0 0
        %3239 = vmatpush1.bf16.msra.mxu0 0
        %3240 = vmatprep.subr.bf16.mxu0 0
        %3241 = vmatpush1.bf16.msra.mxu0 0
        %3242 = vmatprep.subr.bf16.mxu0 0
        %3243 = vmatpush1.bf16.msra.mxu0 0
        %3244 = vmatprep.subr.bf16.mxu0 0
        %3245 = vmatpush1.bf16.msra.mxu0 0
        %3246 = vmatprep.subr.bf16.mxu0 0
        %3247 = vmatpush1.bf16.msra.mxu0 0
        %3248 = vmatprep.subr.bf16.mxu0 0
        %3249 = vmatpush1.bf16.msra.mxu0 0
        %3250 = vmatprep.subr.bf16.mxu0 %v3017
        %3251 = vmatpush1.bf16.msra.mxu0 %v3014
        %3252 = vmatprep.subr.bf16.mxu0 0
        %3253 = vmatpush2.bf16.msra.mxu0 0
        %3254 = vmatprep.subr.bf16.mxu0 0
        %3255 = vmatpush2.bf16.msra.mxu0 0
        %3256 = vmatprep.subr.bf16.mxu0 0
        %3257 = vmatpush2.bf16.msra.mxu0 0
        %3258 = vmatprep.subr.bf16.mxu0 0
        %3259 = vmatpush2.bf16.msra.mxu0 0
        %3260 = vmatprep.subr.bf16.mxu0 0
        %3261 = vmatpush2.bf16.msra.mxu0 0
        %3262 = vmatprep.subr.bf16.mxu0 0
        %3263 = vmatpush2.bf16.msra.mxu0 0
        %3264 = vmatprep.subr.bf16.mxu0 0
        %3265 = vmatpush2.bf16.msra.mxu0 0
        %3266 = vmatprep.subr.bf16.mxu0 0
        %3267 = vmatpush2.bf16.msra.mxu0 0
        %3268 = vmatprep.mubr.bf16.mxu0 0
        %3269 = vmatmul.mubr.bf16.gmra.mxu0 %v2981
        %v3270 = vpop.f32.mrf.mxu0
        %v3271 = vadd.f32 0.0, %v3270
        %v3272 = vpop.f32.mrf.mxu0
        %v3273 = vadd.f32 0.0, %v3272
        %v3274 = vpop.f32.mrf.mxu0
        %v3275 = vpop.f32.mrf.mxu0
        %3276 = vdwg.mxu0
        %3277 = vmatprep.subr.bf16.mxu0 0
        %3278 = vmatpush1.bf16.msra.mxu0 0
        %3279 = vmatprep.subr.bf16.mxu0 0
        %3280 = vmatpush1.bf16.msra.mxu0 0
        %3281 = vmatprep.subr.bf16.mxu0 0
        %3282 = vmatpush1.bf16.msra.mxu0 0
        %3283 = vmatprep.subr.bf16.mxu0 0
        %3284 = vmatpush1.bf16.msra.mxu0 0
        %3285 = vmatprep.subr.bf16.mxu0 0
        %3286 = vmatpush1.bf16.msra.mxu0 0
        %3287 = vmatprep.subr.bf16.mxu0 0
        %3288 = vmatpush1.bf16.msra.mxu0 0
        %3289 = vmatprep.subr.bf16.mxu0 0
        %3290 = vmatpush1.bf16.msra.mxu0 0
        %3291 = vmatprep.subr.bf16.mxu0 %v3023
        %3292 = vmatpush1.bf16.msra.mxu0 %v3020
        %3293 = vmatprep.subr.bf16.mxu0 0
        %3294 = vmatpush2.bf16.msra.mxu0 0
        %3295 = vmatprep.subr.bf16.mxu0 0
        %3296 = vmatpush2.bf16.msra.mxu0 0
        %3297 = vmatprep.subr.bf16.mxu0 0
        %3298 = vmatpush2.bf16.msra.mxu0 0
        %3299 = vmatprep.subr.bf16.mxu0 0
        %3300 = vmatpush2.bf16.msra.mxu0 0
        %3301 = vmatprep.subr.bf16.mxu0 0
        %3302 = vmatpush2.bf16.msra.mxu0 0
        %3303 = vmatprep.subr.bf16.mxu0 0
        %3304 = vmatpush2.bf16.msra.mxu0 0
        %3305 = vmatprep.subr.bf16.mxu0 0
        %3306 = vmatpush2.bf16.msra.mxu0 0
        %3307 = vmatprep.subr.bf16.mxu0 0
        %3308 = vmatpush2.bf16.msra.mxu0 0
        %3309 = vmatprep.mubr.bf16.mxu0 0
        %3310 = vmatmul.mubr.bf16.gmra.mxu0 %v2981
        %v3311 = vpop.f32.mrf.mxu0
        %v3312 = vadd.f32 0.0, %v3311
        %v3313 = vpop.f32.mrf.mxu0
        %v3314 = vadd.f32 0.0, %v3313
        %v3315 = vpop.f32.mrf.mxu0
        %v3316 = vpop.f32.mrf.mxu0
        %3317 = vdwg.mxu0
        %3318 = vmatprep.subr.bf16.mxu0 0
        %3319 = vmatpush1.bf16.msra.mxu0 0
        %3320 = vmatprep.subr.bf16.mxu0 0
        %3321 = vmatpush1.bf16.msra.mxu0 0
        %3322 = vmatprep.subr.bf16.mxu0 0
        %3323 = vmatpush1.bf16.msra.mxu0 0
        %3324 = vmatprep.subr.bf16.mxu0 0
        %3325 = vmatpush1.bf16.msra.mxu0 0
        %3326 = vmatprep.subr.bf16.mxu0 0
        %3327 = vmatpush1.bf16.msra.mxu0 0
        %3328 = vmatprep.subr.bf16.mxu0 0
        %3329 = vmatpush1.bf16.msra.mxu0 0
        %3330 = vmatprep.subr.bf16.mxu0 0
        %3331 = vmatpush1.bf16.msra.mxu0 0
        %3332 = vmatprep.subr.bf16.mxu0 %v3029
        %3333 = vmatpush1.bf16.msra.mxu0 %v3026
        %3334 = vmatprep.subr.bf16.mxu0 0
        %3335 = vmatpush2.bf16.msra.mxu0 0
        %3336 = vmatprep.subr.bf16.mxu0 0
        %3337 = vmatpush2.bf16.msra.mxu0 0
        %3338 = vmatprep.subr.bf16.mxu0 0
        %3339 = vmatpush2.bf16.msra.mxu0 0
        %3340 = vmatprep.subr.bf16.mxu0 0
        %3341 = vmatpush2.bf16.msra.mxu0 0
        %3342 = vmatprep.subr.bf16.mxu0 0
        %3343 = vmatpush2.bf16.msra.mxu0 0
        %3344 = vmatprep.subr.bf16.mxu0 0
        %3345 = vmatpush2.bf16.msra.mxu0 0
        %3346 = vmatprep.subr.bf16.mxu0 0
        %3347 = vmatpush2.bf16.msra.mxu0 0
        %3348 = vmatprep.subr.bf16.mxu0 0
        %3349 = vmatpush2.bf16.msra.mxu0 0
        %3350 = vmatprep.mubr.bf16.mxu0 0
        %3351 = vmatmul.mubr.bf16.gmra.mxu0 %v2981
        %v3352 = vpop.f32.mrf.mxu0
        %v3353 = vadd.f32 0.0, %v3352
        %v3354 = vpop.f32.mrf.mxu0
        %v3355 = vadd.f32 0.0, %v3354
        %v3356 = vpop.f32.mrf.mxu0
        %v3357 = vpop.f32.mrf.mxu0
        %3358 = vdwg.mxu0
        %v3360 = vsel %vm2165, %v2926, 0
        %3362 = vmatprep.subr.bf16.mxu0 0
        %3363 = vmatpush1.bf16.msra.mxu0 0
        %3364 = vmatprep.subr.bf16.mxu0 0
        %3365 = vmatpush1.bf16.msra.mxu0 0
        %3366 = vmatprep.subr.bf16.mxu0 0
        %3367 = vmatpush1.bf16.msra.mxu0 0
        %3368 = vmatprep.subr.bf16.mxu0 0
        %3369 = vmatpush1.bf16.msra.mxu0 0
        %3370 = vmatprep.subr.bf16.mxu0 0
        %3371 = vmatpush1.bf16.msra.mxu0 0
        %3372 = vmatprep.subr.bf16.mxu0 0
        %3373 = vmatpush1.bf16.msra.mxu0 0
        %3374 = vmatprep.subr.bf16.mxu0 0
        %3375 = vmatpush1.bf16.msra.mxu0 0
        %3376 = vmatprep.subr.bf16.mxu0 %v2174
        %3377 = vmatpush1.bf16.msra.mxu0 %v2171
        %3378 = vmatprep.subr.bf16.mxu0 0
        %3379 = vmatpush2.bf16.msra.mxu0 0
        %3380 = vmatprep.subr.bf16.mxu0 0
        %3381 = vmatpush2.bf16.msra.mxu0 0
        %3382 = vmatprep.subr.bf16.mxu0 0
        %3383 = vmatpush2.bf16.msra.mxu0 0
        %3384 = vmatprep.subr.bf16.mxu0 0
        %3385 = vmatpush2.bf16.msra.mxu0 0
        %3386 = vmatprep.subr.bf16.mxu0 0
        %3387 = vmatpush2.bf16.msra.mxu0 0
        %3388 = vmatprep.subr.bf16.mxu0 0
        %3389 = vmatpush2.bf16.msra.mxu0 0
        %3390 = vmatprep.subr.bf16.mxu0 0
        %3391 = vmatpush2.bf16.msra.mxu0 0
        %3392 = vmatprep.subr.bf16.mxu0 0
        %3393 = vmatpush2.bf16.msra.mxu0 0
        %3394 = vmatprep.mubr.bf16.mxu0 0
        %3395 = vmatmul.mubr.bf16.gmra.mxu0 %v3360
        %v3396 = vpop.f32.mrf.mxu0
        %v3397 = vadd.f32 %v3066, %v3396
        %v3398 = vpop.f32.mrf.mxu0
        %v3399 = vadd.f32 %v3068, %v3398
        %v3400 = vpop.f32.mrf.mxu0
        %v3401 = vpop.f32.mrf.mxu0
        %3402 = vdwg.mxu0
        %3403 = vmatprep.subr.bf16.mxu0 0
        %3404 = vmatpush1.bf16.msra.mxu0 0
        %3405 = vmatprep.subr.bf16.mxu0 0
        %3406 = vmatpush1.bf16.msra.mxu0 0
        %3407 = vmatprep.subr.bf16.mxu0 0
        %3408 = vmatpush1.bf16.msra.mxu0 0
        %3409 = vmatprep.subr.bf16.mxu0 0
        %3410 = vmatpush1.bf16.msra.mxu0 0
        %3411 = vmatprep.subr.bf16.mxu0 0
        %3412 = vmatpush1.bf16.msra.mxu0 0
        %3413 = vmatprep.subr.bf16.mxu0 0
        %3414 = vmatpush1.bf16.msra.mxu0 0
        %3415 = vmatprep.subr.bf16.mxu0 0
        %3416 = vmatpush1.bf16.msra.mxu0 0
        %3417 = vmatprep.subr.bf16.mxu0 %v2180
        %3418 = vmatpush1.bf16.msra.mxu0 %v2177
        %3419 = vmatprep.subr.bf16.mxu0 0
        %3420 = vmatpush2.bf16.msra.mxu0 0
        %3421 = vmatprep.subr.bf16.mxu0 0
        %3422 = vmatpush2.bf16.msra.mxu0 0
        %3423 = vmatprep.subr.bf16.mxu0 0
        %3424 = vmatpush2.bf16.msra.mxu0 0
        %3425 = vmatprep.subr.bf16.mxu0 0
        %3426 = vmatpush2.bf16.msra.mxu0 0
        %3427 = vmatprep.subr.bf16.mxu0 0
        %3428 = vmatpush2.bf16.msra.mxu0 0
        %3429 = vmatprep.subr.bf16.mxu0 0
        %3430 = vmatpush2.bf16.msra.mxu0 0
        %3431 = vmatprep.subr.bf16.mxu0 0
        %3432 = vmatpush2.bf16.msra.mxu0 0
        %3433 = vmatprep.subr.bf16.mxu0 0
        %3434 = vmatpush2.bf16.msra.mxu0 0
        %3435 = vmatprep.mubr.bf16.mxu0 0
        %3436 = vmatmul.mubr.bf16.gmra.mxu0 %v3360
        %v3437 = vpop.f32.mrf.mxu0
        %v3438 = vadd.f32 %v3107, %v3437
        %v3439 = vpop.f32.mrf.mxu0
        %v3440 = vadd.f32 %v3109, %v3439
        %v3441 = vpop.f32.mrf.mxu0
        %v3442 = vpop.f32.mrf.mxu0
        %3443 = vdwg.mxu0
        %3444 = vmatprep.subr.bf16.mxu0 0
        %3445 = vmatpush1.bf16.msra.mxu0 0
        %3446 = vmatprep.subr.bf16.mxu0 0
        %3447 = vmatpush1.bf16.msra.mxu0 0
        %3448 = vmatprep.subr.bf16.mxu0 0
        %3449 = vmatpush1.bf16.msra.mxu0 0
        %3450 = vmatprep.subr.bf16.mxu0 0
        %3451 = vmatpush1.bf16.msra.mxu0 0
        %3452 = vmatprep.subr.bf16.mxu0 0
        %3453 = vmatpush1.bf16.msra.mxu0 0
        %3454 = vmatprep.subr.bf16.mxu0 0
        %3455 = vmatpush1.bf16.msra.mxu0 0
        %3456 = vmatprep.subr.bf16.mxu0 0
        %3457 = vmatpush1.bf16.msra.mxu0 0
        %3458 = vmatprep.subr.bf16.mxu0 %v2186
        %3459 = vmatpush1.bf16.msra.mxu0 %v2183
        %3460 = vmatprep.subr.bf16.mxu0 0
        %3461 = vmatpush2.bf16.msra.mxu0 0
        %3462 = vmatprep.subr.bf16.mxu0 0
        %3463 = vmatpush2.bf16.msra.mxu0 0
        %3464 = vmatprep.subr.bf16.mxu0 0
        %3465 = vmatpush2.bf16.msra.mxu0 0
        %3466 = vmatprep.subr.bf16.mxu0 0
        %3467 = vmatpush2.bf16.msra.mxu0 0
        %3468 = vmatprep.subr.bf16.mxu0 0
        %3469 = vmatpush2.bf16.msra.mxu0 0
        %3470 = vmatprep.subr.bf16.mxu0 0
        %3471 = vmatpush2.bf16.msra.mxu0 0
        %3472 = vmatprep.subr.bf16.mxu0 0
        %3473 = vmatpush2.bf16.msra.mxu0 0
        %3474 = vmatprep.subr.bf16.mxu0 0
        %3475 = vmatpush2.bf16.msra.mxu0 0
        %3476 = vmatprep.mubr.bf16.mxu0 0
        %3477 = vmatmul.mubr.bf16.gmra.mxu0 %v3360
        %v3478 = vpop.f32.mrf.mxu0
        %v3479 = vadd.f32 %v3148, %v3478
        %v3480 = vpop.f32.mrf.mxu0
        %v3481 = vadd.f32 %v3150, %v3480
        %v3482 = vpop.f32.mrf.mxu0
        %v3483 = vpop.f32.mrf.mxu0
        %3484 = vdwg.mxu0
        %3485 = vmatprep.subr.bf16.mxu0 0
        %3486 = vmatpush1.bf16.msra.mxu0 0
        %3487 = vmatprep.subr.bf16.mxu0 0
        %3488 = vmatpush1.bf16.msra.mxu0 0
        %3489 = vmatprep.subr.bf16.mxu0 0
        %3490 = vmatpush1.bf16.msra.mxu0 0
        %3491 = vmatprep.subr.bf16.mxu0 0
        %3492 = vmatpush1.bf16.msra.mxu0 0
        %3493 = vmatprep.subr.bf16.mxu0 0
        %3494 = vmatpush1.bf16.msra.mxu0 0
        %3495 = vmatprep.subr.bf16.mxu0 0
        %3496 = vmatpush1.bf16.msra.mxu0 0
        %3497 = vmatprep.subr.bf16.mxu0 0
        %3498 = vmatpush1.bf16.msra.mxu0 0
        %3499 = vmatprep.subr.bf16.mxu0 %v2192
        %3500 = vmatpush1.bf16.msra.mxu0 %v2189
        %3501 = vmatprep.subr.bf16.mxu0 0
        %3502 = vmatpush2.bf16.msra.mxu0 0
        %3503 = vmatprep.subr.bf16.mxu0 0
        %3504 = vmatpush2.bf16.msra.mxu0 0
        %3505 = vmatprep.subr.bf16.mxu0 0
        %3506 = vmatpush2.bf16.msra.mxu0 0
        %3507 = vmatprep.subr.bf16.mxu0 0
        %3508 = vmatpush2.bf16.msra.mxu0 0
        %3509 = vmatprep.subr.bf16.mxu0 0
        %3510 = vmatpush2.bf16.msra.mxu0 0
        %3511 = vmatprep.subr.bf16.mxu0 0
        %3512 = vmatpush2.bf16.msra.mxu0 0
        %3513 = vmatprep.subr.bf16.mxu0 0
        %3514 = vmatpush2.bf16.msra.mxu0 0
        %3515 = vmatprep.subr.bf16.mxu0 0
        %3516 = vmatpush2.bf16.msra.mxu0 0
        %3517 = vmatprep.mubr.bf16.mxu0 0
        %3518 = vmatmul.mubr.bf16.gmra.mxu0 %v3360
        %v3519 = vpop.f32.mrf.mxu0
        %v3520 = vadd.f32 %v3189, %v3519
        %v3521 = vpop.f32.mrf.mxu0
        %v3522 = vadd.f32 %v3191, %v3521
        %v3523 = vpop.f32.mrf.mxu0
        %v3524 = vpop.f32.mrf.mxu0
        %3525 = vdwg.mxu0
        %3526 = vmatprep.subr.bf16.mxu0 0
        %3527 = vmatpush1.bf16.msra.mxu0 0
        %3528 = vmatprep.subr.bf16.mxu0 0
        %3529 = vmatpush1.bf16.msra.mxu0 0
        %3530 = vmatprep.subr.bf16.mxu0 0
        %3531 = vmatpush1.bf16.msra.mxu0 0
        %3532 = vmatprep.subr.bf16.mxu0 0
        %3533 = vmatpush1.bf16.msra.mxu0 0
        %3534 = vmatprep.subr.bf16.mxu0 0
        %3535 = vmatpush1.bf16.msra.mxu0 0
        %3536 = vmatprep.subr.bf16.mxu0 0
        %3537 = vmatpush1.bf16.msra.mxu0 0
        %3538 = vmatprep.subr.bf16.mxu0 0
        %3539 = vmatpush1.bf16.msra.mxu0 0
        %3540 = vmatprep.subr.bf16.mxu0 %v2198
        %3541 = vmatpush1.bf16.msra.mxu0 %v2195
        %3542 = vmatprep.subr.bf16.mxu0 0
        %3543 = vmatpush2.bf16.msra.mxu0 0
        %3544 = vmatprep.subr.bf16.mxu0 0
        %3545 = vmatpush2.bf16.msra.mxu0 0
        %3546 = vmatprep.subr.bf16.mxu0 0
        %3547 = vmatpush2.bf16.msra.mxu0 0
        %3548 = vmatprep.subr.bf16.mxu0 0
        %3549 = vmatpush2.bf16.msra.mxu0 0
        %3550 = vmatprep.subr.bf16.mxu0 0
        %3551 = vmatpush2.bf16.msra.mxu0 0
        %3552 = vmatprep.subr.bf16.mxu0 0
        %3553 = vmatpush2.bf16.msra.mxu0 0
        %3554 = vmatprep.subr.bf16.mxu0 0
        %3555 = vmatpush2.bf16.msra.mxu0 0
        %3556 = vmatprep.subr.bf16.mxu0 0
        %3557 = vmatpush2.bf16.msra.mxu0 0
        %3558 = vmatprep.mubr.bf16.mxu0 0
        %3559 = vmatmul.mubr.bf16.gmra.mxu0 %v3360
        %v3560 = vpop.f32.mrf.mxu0
        %v3561 = vadd.f32 %v3230, %v3560
        %v3562 = vpop.f32.mrf.mxu0
        %v3563 = vadd.f32 %v3232, %v3562
        %v3564 = vpop.f32.mrf.mxu0
        %v3565 = vpop.f32.mrf.mxu0
        %3566 = vdwg.mxu0
        %3567 = vmatprep.subr.bf16.mxu0 0
        %3568 = vmatpush1.bf16.msra.mxu0 0
        %3569 = vmatprep.subr.bf16.mxu0 0
        %3570 = vmatpush1.bf16.msra.mxu0 0
        %3571 = vmatprep.subr.bf16.mxu0 0
        %3572 = vmatpush1.bf16.msra.mxu0 0
        %3573 = vmatprep.subr.bf16.mxu0 0
        %3574 = vmatpush1.bf16.msra.mxu0 0
        %3575 = vmatprep.subr.bf16.mxu0 0
        %3576 = vmatpush1.bf16.msra.mxu0 0
        %3577 = vmatprep.subr.bf16.mxu0 0
        %3578 = vmatpush1.bf16.msra.mxu0 0
        %3579 = vmatprep.subr.bf16.mxu0 0
        %3580 = vmatpush1.bf16.msra.mxu0 0
        %3581 = vmatprep.subr.bf16.mxu0 %v2204
        %3582 = vmatpush1.bf16.msra.mxu0 %v2201
        %3583 = vmatprep.subr.bf16.mxu0 0
        %3584 = vmatpush2.bf16.msra.mxu0 0
        %3585 = vmatprep.subr.bf16.mxu0 0
        %3586 = vmatpush2.bf16.msra.mxu0 0
        %3587 = vmatprep.subr.bf16.mxu0 0
        %3588 = vmatpush2.bf16.msra.mxu0 0
        %3589 = vmatprep.subr.bf16.mxu0 0
        %3590 = vmatpush2.bf16.msra.mxu0 0
        %3591 = vmatprep.subr.bf16.mxu0 0
        %3592 = vmatpush2.bf16.msra.mxu0 0
        %3593 = vmatprep.subr.bf16.mxu0 0
        %3594 = vmatpush2.bf16.msra.mxu0 0
        %3595 = vmatprep.subr.bf16.mxu0 0
        %3596 = vmatpush2.bf16.msra.mxu0 0
        %3597 = vmatprep.subr.bf16.mxu0 0
        %3598 = vmatpush2.bf16.msra.mxu0 0
        %3599 = vmatprep.mubr.bf16.mxu0 0
        %3600 = vmatmul.mubr.bf16.gmra.mxu0 %v3360
        %v3601 = vpop.f32.mrf.mxu0
        %v3602 = vadd.f32 %v3271, %v3601
        %v3603 = vpop.f32.mrf.mxu0
        %v3604 = vadd.f32 %v3273, %v3603
        %v3605 = vpop.f32.mrf.mxu0
        %v3606 = vpop.f32.mrf.mxu0
        %3607 = vdwg.mxu0
        %3608 = vmatprep.subr.bf16.mxu0 0
        %3609 = vmatpush1.bf16.msra.mxu0 0
        %3610 = vmatprep.subr.bf16.mxu0 0
        %3611 = vmatpush1.bf16.msra.mxu0 0
        %3612 = vmatprep.subr.bf16.mxu0 0
        %3613 = vmatpush1.bf16.msra.mxu0 0
        %3614 = vmatprep.subr.bf16.mxu0 0
        %3615 = vmatpush1.bf16.msra.mxu0 0
        %3616 = vmatprep.subr.bf16.mxu0 0
        %3617 = vmatpush1.bf16.msra.mxu0 0
        %3618 = vmatprep.subr.bf16.mxu0 0
        %3619 = vmatpush1.bf16.msra.mxu0 0
        %3620 = vmatprep.subr.bf16.mxu0 0
        %3621 = vmatpush1.bf16.msra.mxu0 0
        %3622 = vmatprep.subr.bf16.mxu0 %v2210
        %3623 = vmatpush1.bf16.msra.mxu0 %v2207
        %3624 = vmatprep.subr.bf16.mxu0 0
        %3625 = vmatpush2.bf16.msra.mxu0 0
        %3626 = vmatprep.subr.bf16.mxu0 0
        %3627 = vmatpush2.bf16.msra.mxu0 0
        %3628 = vmatprep.subr.bf16.mxu0 0
        %3629 = vmatpush2.bf16.msra.mxu0 0
        %3630 = vmatprep.subr.bf16.mxu0 0
        %3631 = vmatpush2.bf16.msra.mxu0 0
        %3632 = vmatprep.subr.bf16.mxu0 0
        %3633 = vmatpush2.bf16.msra.mxu0 0
        %3634 = vmatprep.subr.bf16.mxu0 0
        %3635 = vmatpush2.bf16.msra.mxu0 0
        %3636 = vmatprep.subr.bf16.mxu0 0
        %3637 = vmatpush2.bf16.msra.mxu0 0
        %3638 = vmatprep.subr.bf16.mxu0 0
        %3639 = vmatpush2.bf16.msra.mxu0 0
        %3640 = vmatprep.mubr.bf16.mxu0 0
        %3641 = vmatmul.mubr.bf16.gmra.mxu0 %v3360
        %v3642 = vpop.f32.mrf.mxu0
        %v3643 = vadd.f32 %v3312, %v3642
        %v3644 = vpop.f32.mrf.mxu0
        %v3645 = vadd.f32 %v3314, %v3644
        %v3646 = vpop.f32.mrf.mxu0
        %v3647 = vpop.f32.mrf.mxu0
        %3648 = vdwg.mxu0
        %3649 = vmatprep.subr.bf16.mxu0 0
        %3650 = vmatpush1.bf16.msra.mxu0 0
        %3651 = vmatprep.subr.bf16.mxu0 0
        %3652 = vmatpush1.bf16.msra.mxu0 0
        %3653 = vmatprep.subr.bf16.mxu0 0
        %3654 = vmatpush1.bf16.msra.mxu0 0
        %3655 = vmatprep.subr.bf16.mxu0 0
        %3656 = vmatpush1.bf16.msra.mxu0 0
        %3657 = vmatprep.subr.bf16.mxu0 0
        %3658 = vmatpush1.bf16.msra.mxu0 0
        %3659 = vmatprep.subr.bf16.mxu0 0
        %3660 = vmatpush1.bf16.msra.mxu0 0
        %3661 = vmatprep.subr.bf16.mxu0 0
        %3662 = vmatpush1.bf16.msra.mxu0 0
        %3663 = vmatprep.subr.bf16.mxu0 %v2216
        %3664 = vmatpush1.bf16.msra.mxu0 %v2213
        %3665 = vmatprep.subr.bf16.mxu0 0
        %3666 = vmatpush2.bf16.msra.mxu0 0
        %3667 = vmatprep.subr.bf16.mxu0 0
        %3668 = vmatpush2.bf16.msra.mxu0 0
        %3669 = vmatprep.subr.bf16.mxu0 0
        %3670 = vmatpush2.bf16.msra.mxu0 0
        %3671 = vmatprep.subr.bf16.mxu0 0
        %3672 = vmatpush2.bf16.msra.mxu0 0
        %3673 = vmatprep.subr.bf16.mxu0 0
        %3674 = vmatpush2.bf16.msra.mxu0 0
        %3675 = vmatprep.subr.bf16.mxu0 0
        %3676 = vmatpush2.bf16.msra.mxu0 0
        %3677 = vmatprep.subr.bf16.mxu0 0
        %3678 = vmatpush2.bf16.msra.mxu0 0
        %3679 = vmatprep.subr.bf16.mxu0 0
        %3680 = vmatpush2.bf16.msra.mxu0 0
        %3681 = vmatprep.mubr.bf16.mxu0 0
        %3682 = vmatmul.mubr.bf16.gmra.mxu0 %v3360
        %v3683 = vpop.f32.mrf.mxu0
        %v3684 = vadd.f32 %v3353, %v3683
        %v3685 = vpop.f32.mrf.mxu0
        %v3686 = vadd.f32 %v3355, %v3685
        %v3687 = vpop.f32.mrf.mxu0
        %v3688 = vpop.f32.mrf.mxu0
        %3689 = vdwg.mxu0
        %v3690 = vld [vmem:[%s5] sm:$0x3]
        %3692 = vset.pattern.permute.xlu0 0
        %3693 = vperm.xlu0 %3692, %v3690
        %v3694 = vpop.permute.xlu0 %3693
        %v3696 = vadd.f32 %v2632, %v3694
        %v3697 = vadd.f32 %v2634, %v3694
        %v3698 = vadd.f32 %v2673, %v3694
        %v3699 = vadd.f32 %v2675, %v3694
        %v3700 = vadd.f32 %v2714, %v3694
        %v3701 = vadd.f32 %v2716, %v3694
        %v3702 = vadd.f32 %v2755, %v3694
        %v3703 = vadd.f32 %v2757, %v3694
        %v3704 = vadd.f32 %v2796, %v3694
        %v3705 = vadd.f32 %v2798, %v3694
        %v3706 = vadd.f32 %v2837, %v3694
        %v3707 = vadd.f32 %v2839, %v3694
        %v3708 = vadd.f32 %v2878, %v3694
        %v3709 = vadd.f32 %v2880, %v3694
        %v3710 = vadd.f32 %v2919, %v3694
        %v3711 = vadd.f32 %v2921, %v3694
        %v3712 = vadd.f32 %v3397, %v3694
        %v3713 = vadd.f32 %v3399, %v3694
        %v3714 = vadd.f32 %v3438, %v3694
        %v3715 = vadd.f32 %v3440, %v3694
        %v3716 = vadd.f32 %v3479, %v3694
        %v3717 = vadd.f32 %v3481, %v3694
        %v3718 = vadd.f32 %v3520, %v3694
        %v3719 = vadd.f32 %v3522, %v3694
        %v3720 = vadd.f32 %v3561, %v3694
        %v3721 = vadd.f32 %v3563, %v3694
        %v3722 = vadd.f32 %v3602, %v3694
        %v3723 = vadd.f32 %v3604, %v3694
        %v3724 = vadd.f32 %v3643, %v3694
        %v3725 = vadd.f32 %v3645, %v3694
        %v3726 = vadd.f32 %v3684, %v3694
        %v3727 = vadd.f32 %v3686, %v3694
        %v3744 = vcombine.low %v3696, %v3697
        %v3745 = vcombine.low %v3698, %v3699
        %v3747 = vunpack.c.l.s4 1983009808
        %v3748 = vunpack.c.0.s8 %v3747
        %v3749 = vlaneseq
        %v3750 = vshrl.u32 %v3749, 7
        %v3751 = vsub.s32 %v3748, %v3750
        %v3752 = vrot.slane %v3744, %v3751
        %v3754 = vunpack.c.l.s4 1983009808
        %v3755 = vunpack.c.0.s8 %v3754
        %v3756 = vlaneseq
        %v3757 = vshrl.u32 %v3756, 7
        %v3758 = vsub.s32 %v3755, %v3757
        %v3759 = vrot.slane %v3745, %v3758
        %v3760 = vcombine.low %v3752, %v3759
        %v3761 = vcombine.low %v3700, %v3701
        %v3762 = vcombine.low %v3702, %v3703
        %v3764 = vunpack.c.l.s4 1983009808
        %v3765 = vunpack.c.0.s8 %v3764
        %v3766 = vlaneseq
        %v3767 = vshrl.u32 %v3766, 7
        %v3768 = vsub.s32 %v3765, %v3767
        %v3769 = vrot.slane %v3761, %v3768
        %v3771 = vunpack.c.l.s4 1983009808
        %v3772 = vunpack.c.0.s8 %v3771
        %v3773 = vlaneseq
        %v3774 = vshrl.u32 %v3773, 7
        %v3775 = vsub.s32 %v3772, %v3774
        %v3776 = vrot.slane %v3762, %v3775
        %v3777 = vcombine.low %v3769, %v3776
        %v3778 = vcombine.low %v3704, %v3705
        %v3779 = vcombine.low %v3706, %v3707
        %v3781 = vunpack.c.l.s4 1983009808
        %v3782 = vunpack.c.0.s8 %v3781
        %v3783 = vlaneseq
        %v3784 = vshrl.u32 %v3783, 7
        %v3785 = vsub.s32 %v3782, %v3784
        %v3786 = vrot.slane %v3778, %v3785
        %v3788 = vunpack.c.l.s4 1983009808
        %v3789 = vunpack.c.0.s8 %v3788
        %v3790 = vlaneseq
        %v3791 = vshrl.u32 %v3790, 7
        %v3792 = vsub.s32 %v3789, %v3791
        %v3793 = vrot.slane %v3779, %v3792
        %v3794 = vcombine.low %v3786, %v3793
        %v3795 = vcombine.low %v3708, %v3709
        %v3796 = vcombine.low %v3710, %v3711
        %v3798 = vunpack.c.l.s4 1983009808
        %v3799 = vunpack.c.0.s8 %v3798
        %v3800 = vlaneseq
        %v3801 = vshrl.u32 %v3800, 7
        %v3802 = vsub.s32 %v3799, %v3801
        %v3803 = vrot.slane %v3795, %v3802
        %v3805 = vunpack.c.l.s4 1983009808
        %v3806 = vunpack.c.0.s8 %v3805
        %v3807 = vlaneseq
        %v3808 = vshrl.u32 %v3807, 7
        %v3809 = vsub.s32 %v3806, %v3808
        %v3810 = vrot.slane %v3796, %v3809
        %v3811 = vcombine.low %v3803, %v3810
        %3816 = vst [vmem:[%s337] sm:$0xff] %v3760
        %3817 = vst [vmem:[%s337 + $0x8] sm:$0xff] %v3777
        %3818 = vst [vmem:[%s337 + $0x10] sm:$0xff] %v3794
        %3819 = vst [vmem:[%s337 + $0x18] sm:$0xff] %v3811
        %v3836 = vcombine.low %v3712, %v3713
        %v3837 = vcombine.low %v3714, %v3715
        %v3839 = vunpack.c.l.s4 1983009808
        %v3840 = vunpack.c.0.s8 %v3839
        %v3841 = vlaneseq
        %v3842 = vshrl.u32 %v3841, 7
        %v3843 = vsub.s32 %v3840, %v3842
        %v3844 = vrot.slane %v3836, %v3843
        %v3846 = vunpack.c.l.s4 1983009808
        %v3847 = vunpack.c.0.s8 %v3846
        %v3848 = vlaneseq
        %v3849 = vshrl.u32 %v3848, 7
        %v3850 = vsub.s32 %v3847, %v3849
        %v3851 = vrot.slane %v3837, %v3850
        %v3852 = vcombine.low %v3844, %v3851
        %v3853 = vcombine.low %v3716, %v3717
        %v3854 = vcombine.low %v3718, %v3719
        %v3856 = vunpack.c.l.s4 1983009808
        %v3857 = vunpack.c.0.s8 %v3856
        %v3858 = vlaneseq
        %v3859 = vshrl.u32 %v3858, 7
        %v3860 = vsub.s32 %v3857, %v3859
        %v3861 = vrot.slane %v3853, %v3860
        %v3863 = vunpack.c.l.s4 1983009808
        %v3864 = vunpack.c.0.s8 %v3863
        %v3865 = vlaneseq
        %v3866 = vshrl.u32 %v3865, 7
        %v3867 = vsub.s32 %v3864, %v3866
        %v3868 = vrot.slane %v3854, %v3867
        %v3869 = vcombine.low %v3861, %v3868
        %v3870 = vcombine.low %v3720, %v3721
        %v3871 = vcombine.low %v3722, %v3723
        %v3873 = vunpack.c.l.s4 1983009808
        %v3874 = vunpack.c.0.s8 %v3873
        %v3875 = vlaneseq
        %v3876 = vshrl.u32 %v3875, 7
        %v3877 = vsub.s32 %v3874, %v3876
        %v3878 = vrot.slane %v3870, %v3877
        %v3880 = vunpack.c.l.s4 1983009808
        %v3881 = vunpack.c.0.s8 %v3880
        %v3882 = vlaneseq
        %v3883 = vshrl.u32 %v3882, 7
        %v3884 = vsub.s32 %v3881, %v3883
        %v3885 = vrot.slane %v3871, %v3884
        %v3886 = vcombine.low %v3878, %v3885
        %v3887 = vcombine.low %v3724, %v3725
        %v3888 = vcombine.low %v3726, %v3727
        %v3890 = vunpack.c.l.s4 1983009808
        %v3891 = vunpack.c.0.s8 %v3890
        %v3892 = vlaneseq
        %v3893 = vshrl.u32 %v3892, 7
        %v3894 = vsub.s32 %v3891, %v3893
        %v3895 = vrot.slane %v3887, %v3894
        %v3897 = vunpack.c.l.s4 1983009808
        %v3898 = vunpack.c.0.s8 %v3897
        %v3899 = vlaneseq
        %v3900 = vshrl.u32 %v3899, 7
        %v3901 = vsub.s32 %v3898, %v3900
        %v3902 = vrot.slane %v3888, %v3901
        %v3903 = vcombine.low %v3895, %v3902
        %3908 = vst [vmem:[%s342] sm:$0xff] %v3852
        %3909 = vst [vmem:[%s342 + $0x8] sm:$0xff] %v3869
        %3910 = vst [vmem:[%s342 + $0x10] sm:$0xff] %v3886
        %3911 = vst [vmem:[%s342 + $0x18] sm:$0xff] %v3903
        %s3912 = sand.u32 %s167, 1
        %s3913 = scalar_lea.sflag [#allocation4], %s3912
        %s3914 = sand.u32 %s167, 1
        %s3915 = smul.addr %s3914, 128
        %s3916 = scalar_lea.vmem [#allocation3], %s3915
        %p3917 = scmp.lt.s32.totalorder %s23, 1
        %s3918 = scalar_select %p3917, %s23, 1
        %s3919 = smul.addr %s3918, 16
        %s3920 = smul.addr %s3919, 2
        %s3921 = scalar_lea.vmem %s7, %s3920
        %p3922 = scmp.lt.s32.totalorder %s23, 1
        %s3923 = scalar_select %p3922, %s23, 1
        %s3924 = smul.addr %s3923, 16
        %s3925 = smul.addr %s3924, 2
        %s3926 = scalar_lea.vmem %s8, %s3925
        // Predicated region
        $region45: #{_ae_encode_decode_impl.1} parent=43 // pred_check
          %p3927 = pneg %p177
        $region46: #{_ae_encode_decode_impl.1} parent=43 // pred_check_branch
          %3929 = sbr.rel (%p3927) target = $region48
        $region47: #{_ae_encode_decode_impl.1} parent=43 // pred_region
          %s3931 = ssub.s32 2048, 2048
          %3932 = vsyncadd %s3913, %s3931
          %s3933 = smul.addr %s23, 16
          %s3934 = smul.addr %s3933, 128
          %s3935 = scalar_lea.hbm %s6, %s3934
          %s3937 = sshll.u32 %s3916, 4
          %s3938 = int_to_ptr.vmem [resolvable:$true] %s3937
          %3940 = dma.vmem_to_hbm [thread:$0]  %s3938, 2048, %s3935, %s3913
        $region48: #{_ae_encode_decode_impl.1} parent=43 // pred_fallthru
          _
        // Predicated region
        $region49: #{_ae_encode_decode_impl.1} parent=43 // pred_check
          %p3941 = pneg %p203
        $region50: #{_ae_encode_decode_impl.1} parent=43 // pred_check_branch
          %3943 = sbr.rel (%p3941) target = $region52
        $region51: #{_ae_encode_decode_impl.1} parent=43 // pred_region
          _
        $region52: #{_ae_encode_decode_impl.1} parent=43 // pred_fallthru
          _
        // Predicated region
        $region53: #{_ae_encode_decode_impl.1} parent=43 // pred_check
          %p3944 = pneg %p229
        $region54: #{_ae_encode_decode_impl.1} parent=43 // pred_check_branch
          %3946 = sbr.rel (%p3944) target = $region56
        $region55: #{_ae_encode_decode_impl.1} parent=43 // pred_region
          _
        $region56: #{_ae_encode_decode_impl.1} parent=43 // pred_fallthru
          _
      $region44: #{_ae_encode_decode_impl.1} parent=5 // pred_fallthru
        _
      %p3947 = scmp.le.s32.totalorder 2, %s18
      // Predicated region
      $region57: #{_ae_encode_decode_impl.1} parent=5 // pred_check
        %p3948 = pneg %p3947
      $region58: #{_ae_encode_decode_impl.1} parent=5 // pred_check_branch
        %3950 = sbr.rel (%p3948) target = $region60
      $region59: #{_ae_encode_decode_impl.1} parent=5 // pred_region
        %s3951 = ssub.s32 %s18, 2
        // Predicated region
        $region61: #{_ae_encode_decode_impl.1} parent=59 // pred_check
          %p3952 = pneg %p183
        $region62: #{_ae_encode_decode_impl.1} parent=59 // pred_check_branch
          %3954 = sbr.rel (%p3952) target = $region64
        $region63: #{_ae_encode_decode_impl.1} parent=59 // pred_region
          %s3955 = sand.u32 %s168, 1
          %s3956 = scalar_lea.sflag [#allocation4], %s3955
          %s3957 = sand.u32 %s168, 1
          %s3958 = smul.addr %s3957, 128
          %s3959 = scalar_lea.vmem [#allocation3], %s3958
          %3960 = dma.done %s3956, 2048
        $region64: #{_ae_encode_decode_impl.1} parent=59 // pred_fallthru
          _
        // Predicated region
        $region65: #{_ae_encode_decode_impl.1} parent=59 // pred_check
          %p3961 = pneg %p209
        $region66: #{_ae_encode_decode_impl.1} parent=59 // pred_check_branch
          %3963 = sbr.rel (%p3961) target = $region68
        $region67: #{_ae_encode_decode_impl.1} parent=59 // pred_region
          %p3964 = scmp.lt.s32.totalorder %s24, 1
          %s3965 = scalar_select %p3964, %s24, 1
          %s3966 = smul.addr %s3965, 16
          %s3967 = smul.addr %s3966, 2
          %s3968 = scalar_lea.vmem %s7, %s3967
        $region68: #{_ae_encode_decode_impl.1} parent=59 // pred_fallthru
          _
        // Predicated region
        $region69: #{_ae_encode_decode_impl.1} parent=59 // pred_check
          %p3969 = pneg %p235
        $region70: #{_ae_encode_decode_impl.1} parent=59 // pred_check_branch
          %3971 = sbr.rel (%p3969) target = $region72
        $region71: #{_ae_encode_decode_impl.1} parent=59 // pred_region
          %p3972 = scmp.lt.s32.totalorder %s24, 1
          %s3973 = scalar_select %p3972, %s24, 1
          %s3974 = smul.addr %s3973, 16
          %s3975 = smul.addr %s3974, 2
          %s3976 = scalar_lea.vmem %s8, %s3975
        $region72: #{_ae_encode_decode_impl.1} parent=59 // pred_fallthru
          _
      $region60: #{_ae_encode_decode_impl.1} parent=5 // pred_fallthru
        _
    $region6: #{_ae_encode_decode_impl.1} parent=1 // loop_footer
      %s22 = sadd.s32 1, %s18
    $region7: #{_ae_encode_decode_impl.1} parent=1 // loop_footer_branch
      %17 = sbr.rel target = $region3
    $region8: #{_ae_encode_decode_impl.1} parent=1 // loop_exit
      _
    %3977 = vsyncpa [#allocation4], 1
    %s3978 = scalar_lea.sflag [#allocation4], 1
    %3979 = vsyncpa %s3978, 1

</llo_original>
